<compile_context>
chip_gen: v7x
topology: tpu7x:2x2x1
jax: 0.10.0
libtpu: 0.0.40
codegen_flags: <defaults>
</compile_context>

<pallas_src>
from functools import partial

import jax
import jax.numpy as jnp
from jax.experimental import pallas as pl
from jax.experimental.pallas import tpu as pltpu


_VMEM_LIMIT = 32 * 1024 * 1024  # safe on v5e/v6e (128 MiB phys) and v7x (64 MiB phys)


def _pick_tile(total, cap=512):
    """Largest multiple-of-16 divisor of `total` that is <= cap (or `total`)."""
    if total <= cap:
        return total
    start = cap - (cap % 16)
    for cand in range(start, 0, -16):
        if total % cand == 0:
            return cand
    return total


def _pick_cout_tile(cout):
    # Prefer 256 (matches 2x256^2 MXU on v6e/v7x, multiple of 128 for v5e).
    return 256 if (cout > 256 and cout % 256 == 0) else cout


# ----------------------------------------------------------------------------
# Pallas kernels
# ----------------------------------------------------------------------------

def _dense_kernel(x_ref, w_ref, b_ref, o_ref, *, relu):
    y = jnp.dot(x_ref[...], w_ref[...], preferred_element_type=jnp.float32)
    y = y + b_ref[...]                       # bias/ReLU in f32 (v5e: no bf16 VPU)
    if relu:
        y = jnp.maximum(y, 0.0)
    o_ref[...] = y.astype(o_ref.dtype)


def dense(x, w, b, *, relu, out_dtype):
    """x: (M, K), w: (K, Cout), b: (Cout,) -> (M, Cout). Matmul in x.dtype."""
    M, K = x.shape
    Cout = w.shape[1]
    w = w.astype(x.dtype)
    b2 = b.astype(jnp.float32).reshape(1, -1)
    tm = _pick_tile(M, 512)
    tn = _pick_cout_tile(Cout)
    assert M % tm == 0 and Cout % tn == 0
    grid = (M // tm, Cout // tn)
    return pl.pallas_call(
        partial(_dense_kernel, relu=relu),
        out_shape=jax.ShapeDtypeStruct((M, Cout), out_dtype),
        grid=grid,
        in_specs=[
            pl.BlockSpec((tm, K), lambda i, j: (i, 0)),
            pl.BlockSpec((K, tn), lambda i, j: (0, j)),
            pl.BlockSpec((1, tn), lambda i, j: (0, j)),
        ],
        out_specs=pl.BlockSpec((tm, tn), lambda i, j: (i, j)),
        compiler_params=pltpu.CompilerParams(
            dimension_semantics=("parallel", "parallel"),
            vmem_limit_bytes=_VMEM_LIMIT),
    )(x, w, b2)


def _conv_pool_kernel(x_ref, w_ref, b_ref, o_ref, *, relu):
    n = pl.program_id(2)

    @pl.when(n == 0)
    def _():
        o_ref[...] = jnp.full_like(o_ref, -jnp.inf)

    y = jnp.dot(x_ref[0], w_ref[...], preferred_element_type=jnp.float32)
    y = y + b_ref[...]
    if relu:
        y = jnp.maximum(y, 0.0)
    m = jnp.max(y, axis=0, keepdims=True)              # (1, tn)
    o_ref[0] = jnp.maximum(o_ref[0], m)                # running max over point chunks


def conv_pool(x, w, b, *, relu):
    """Fused conv1d(k=1) + global max-pool: x (B,N,K), w (K,Cout) -> (B,Cout) f32."""
    B, N, K = x.shape
    Cout = w.shape[1]
    w = w.astype(x.dtype)
    b2 = b.astype(jnp.float32).reshape(1, -1)
    tp = _pick_tile(N, 512)
    tn = _pick_cout_tile(Cout)
    assert N % tp == 0 and Cout % tn == 0
    grid = (B, Cout // tn, N // tp)                    # reduction axis last
    out = pl.pallas_call(
        partial(_conv_pool_kernel, relu=relu),
        out_shape=jax.ShapeDtypeStruct((B, 1, Cout), jnp.float32),
        grid=grid,
        in_specs=[
            pl.BlockSpec((1, tp, K), lambda bb, j, n: (bb, n, 0)),
            pl.BlockSpec((K, tn), lambda bb, j, n: (0, j)),
            pl.BlockSpec((1, tn), lambda bb, j, n: (0, j)),
        ],
        out_specs=pl.BlockSpec((1, 1, tn), lambda bb, j, n: (bb, 0, j)),
        compiler_params=pltpu.CompilerParams(
            dimension_semantics=("parallel", "parallel", "arbitrary"),
            vmem_limit_bytes=_VMEM_LIMIT),
    )(x, w, b2)
    return out.reshape(B, Cout)


def _bmm_dense_kernel(x_ref, w_ref, b_ref, o_ref, *, relu):
    y = jnp.dot(x_ref[0], w_ref[0], preferred_element_type=jnp.float32)
    y = y + b_ref[...]
    if relu:
        y = jnp.maximum(y, 0.0)
    o_ref[0] = y.astype(o_ref.dtype)


def bmm_dense(x, w_b, bias, *, relu, out_dtype):
    """Fused (x @ m_b) @ W + b  via per-batch combined weight w_b = m_b @ W.

    x: (B, N, Kin), w_b: (B, Kin, Cout), bias: (Cout,) -> (B, N, Cout)."""
    B, N, Kin = x.shape
    Cout = w_b.shape[2]
    b2 = bias.astype(jnp.float32).reshape(1, -1)
    tp = _pick_tile(N, 512)
    assert N % tp == 0
    return pl.pallas_call(
        partial(_bmm_dense_kernel, relu=relu),
        out_shape=jax.ShapeDtypeStruct((B, N, Cout), out_dtype),
        grid=(B, N // tp),
        in_specs=[
            pl.BlockSpec((1, tp, Kin), lambda bb, n: (bb, n, 0)),
            pl.BlockSpec((1, Kin, Cout), lambda bb, n: (bb, 0, 0)),
            pl.BlockSpec((1, Cout), lambda bb, n: (0, 0)),
        ],
        out_specs=pl.BlockSpec((1, tp, Cout), lambda bb, n: (bb, n, 0)),
        compiler_params=pltpu.CompilerParams(
            dimension_semantics=("parallel", "parallel"),
            vmem_limit_bytes=_VMEM_LIMIT),
    )(x, w_b.astype(x.dtype), b2)


def _dense_logsoftmax_kernel(x_ref, w_ref, b_ref, o_ref):
    y = jnp.dot(x_ref[...], w_ref[...], preferred_element_type=jnp.float32)
    y = y + b_ref[...]
    m = jnp.max(y, axis=-1, keepdims=True)
    s = y - m
    lse = jnp.log(jnp.sum(jnp.exp(s), axis=-1, keepdims=True))
    o_ref[...] = s - lse


def dense_logsoftmax(x, w, b):
    """Final classifier head fused with log-softmax. x (B,K) f32 -> (B,classes) f32."""
    M, K = x.shape
    Cout = w.shape[1]
    return pl.pallas_call(
        _dense_logsoftmax_kernel,
        out_shape=jax.ShapeDtypeStruct((M, Cout), jnp.float32),
        compiler_params=pltpu.CompilerParams(vmem_limit_bytes=_VMEM_LIMIT),
    )(x, w, b.reshape(1, -1))


# ----------------------------------------------------------------------------
# Parameter init (deterministic, mirrors PyTorch layer shapes)
# ----------------------------------------------------------------------------

def init_linear(key, cin, cout):
    kw, kb = jax.random.split(key)
    bound = 1.0 / (cin ** 0.5)
    return {
        "w": jax.random.uniform(kw, (cin, cout), jnp.float32, -bound, bound),
        "b": jax.random.uniform(kb, (cout,), jnp.float32, -bound, bound),
    }


def init_bn(c):
    return {
        "gamma": jnp.ones((c,), jnp.float32),
        "beta": jnp.zeros((c,), jnp.float32),
        "mean": jnp.zeros((c,), jnp.float32),
        "var": jnp.ones((c,), jnp.float32),
    }


def init_tnet(key, k):
    ks = jax.random.split(key, 6)
    return {
        "conv1": init_linear(ks[0], k, 64), "bn1": init_bn(64),
        "conv2": init_linear(ks[1], 64, 128), "bn2": init_bn(128),
        "conv3": init_linear(ks[2], 128, 1024), "bn3": init_bn(1024),
        "fc1": init_linear(ks[3], 1024, 512), "bn4": init_bn(512),
        "fc2": init_linear(ks[4], 512, 256), "bn5": init_bn(256),
        "fc3": init_linear(ks[5], 256, k * k),
        "k": k,
    }


def init_transform(key):
    k1, k2, k3, k4, k5 = jax.random.split(key, 5)
    return {
        "tnet3": init_tnet(k1, 3),
        "tnet64": init_tnet(k2, 64),
        "conv1": init_linear(k3, 3, 64), "bn1": init_bn(64),
        "conv2": init_linear(k4, 64, 128), "bn2": init_bn(128),
        "conv3": init_linear(k5, 128, 1024), "bn3": init_bn(1024),
    }


def init_pointnet(key, classes=10):
    k1, k2, k3, k4 = jax.random.split(key, 4)
    return {
        "transform": init_transform(k1),
        "fc1": init_linear(k2, 1024, 512), "bn1": init_bn(512),
        "fc2": init_linear(k3, 512, 256), "bn2": init_bn(256),
        "fc3": init_linear(k4, 256, classes),
    }


# ----------------------------------------------------------------------------
# Forward pass (glue in JAX, hot path in Pallas kernels)
# ----------------------------------------------------------------------------

def fold_bn(lin, bn, eps=1e-5):
    """Fold eval-mode BatchNorm1d into the preceding linear/conv1d(k=1)."""
    scale = bn["gamma"] * jax.lax.rsqrt(bn["var"] + eps)
    w = lin["w"] * scale[None, :]
    b = (lin["b"] - bn["mean"]) * scale + bn["beta"]
    return w, b


def tnet_forward(p, x_bnc):
    """x_bnc: (B, N, k) bf16 -> (B, k, k) f32 transform matrix."""
    B, N, k = x_bnc.shape
    h = x_bnc.reshape(B * N, k)
    h = dense(h, *fold_bn(p["conv1"], p["bn1"]), relu=True,
              out_dtype=jnp.bfloat16)                               # (B*N, 64)
    h = dense(h, *fold_bn(p["conv2"], p["bn2"]), relu=True,
              out_dtype=jnp.bfloat16)                               # (B*N, 128)
    # conv3 + ReLU + global max-pool fused (no (B*N, 1024) HBM round trip)
    pooled = conv_pool(h.reshape(B, N, 128),
                       *fold_bn(p["conv3"], p["bn3"]), relu=True)   # (B, 1024) f32
    h = dense(pooled, *fold_bn(p["fc1"], p["bn4"]), relu=True,
              out_dtype=jnp.float32)                                # (B, 512)
    h = dense(h, *fold_bn(p["fc2"], p["bn5"]), relu=True,
              out_dtype=jnp.float32)                                # (B, 256)
    m = dense(h, p["fc3"]["w"], p["fc3"]["b"], relu=False,
              out_dtype=jnp.float32)                                # (B, k*k)
    return m.reshape(B, k, k) + jnp.eye(k, dtype=jnp.float32)[None]


def transform_forward(p, x_bnc):
    """x_bnc: (B, N, 3) bf16 -> ((B, 1024) f32, (B, 3, 3) f32, (B, 64, 64) f32)."""
    B, N, _ = x_bnc.shape
    matrix3x3 = tnet_forward(p["tnet3"], x_bnc)                     # (B, 3, 3)

    # Fuse bmm(x, m3) into conv1: combined per-batch weight m3 @ W1 (B, 3, 64).
    w1, b1 = fold_bn(p["conv1"], p["bn1"])
    w1b = jnp.einsum("bij,jc->bic", matrix3x3, w1)
    h_bnc = bmm_dense(x_bnc, w1b, b1, relu=True,
                      out_dtype=jnp.bfloat16)                       # (B, N, 64)

    matrix64x64 = tnet_forward(p["tnet64"], h_bnc)                  # (B, 64, 64)

    # Fuse bmm(h, m64) into conv2: combined per-batch weight m64 @ W2 (B, 64, 128).
    w2, b2 = fold_bn(p["conv2"], p["bn2"])
    w2b = jnp.einsum("bij,jc->bic", matrix64x64, w2)
    h2 = bmm_dense(h_bnc, w2b, b2, relu=True,
                   out_dtype=jnp.bfloat16)                          # (B, N, 128)

    # conv3 (no ReLU) + global max-pool fused.
    pooled = conv_pool(h2, *fold_bn(p["conv3"], p["bn3"]), relu=False)  # (B, 1024)
    return pooled, matrix3x3, matrix64x64


@jax.jit
def pointnet_forward(params, x_ncw):
    """x_ncw: (B, 3, N) like PyTorch NCW input."""
    x_bnc = jnp.transpose(x_ncw, (0, 2, 1)).astype(jnp.bfloat16)    # -> (B, N, 3)
    feat, m3, m64 = transform_forward(params["transform"], x_bnc)
    h = dense(feat, *fold_bn(params["fc1"], params["bn1"]), relu=True,
              out_dtype=jnp.float32)                                # (B, 512)
    # TODO(synk): Dropout(p=0.3) is identity in eval mode.
    h = dense(h, *fold_bn(params["fc2"], params["bn2"]), relu=True,
              out_dtype=jnp.float32)                                # (B, 256)
    logp = dense_logsoftmax(h, params["fc3"]["w"], params["fc3"]["b"])
    return logp, m3, m64


# ----------------------------------------------------------------------------

if __name__ == "__main__":
    key = jax.random.PRNGKey(0)
    k_in, k_params = jax.random.split(key)

    B, N, classes = 2, 16, 10
    x = jax.random.normal(k_in, (B, 3, N), dtype=jnp.float32)  # PyTorch NCW layout
    params = init_pointnet(k_params, classes=classes)

    logp, matrix3x3, matrix64x64 = pointnet_forward(params, x)
    jax.block_until_ready((logp, matrix3x3, matrix64x64))

    assert logp.shape == (B, classes)
    assert matrix3x3.shape == (B, 3, 3)
    assert matrix64x64.shape == (B, 64, 64)
    print("KERNEL_OK")
</pallas_src>

<mosaic_0001>
module attributes {stable_mosaic.version = 11 : i64} {
  func.func @_dense_kernel(%arg0: i32, %arg1: i32, %arg2: memref<32x64xbf16, #tpu.memory_space<vmem>>, %arg3: memref<64x128xbf16, #tpu.memory_space<vmem>>, %arg4: memref<1x128xf32, #tpu.memory_space<vmem>>, %arg5: memref<32x128xbf16, #tpu.memory_space<vmem>>) attributes {dimension_semantics = [#tpu.dimension_semantics<parallel>, #tpu.dimension_semantics<parallel>], iteration_bounds = array<i64: 1, 1>, scalar_prefetch = 0 : i64, scratch_operands = 0 : i64, tpu.core_type = #tpu.core_type<tc>, window_params = [{transform_indices = @transform_0, window_bounds = array<i64: 32, 64>}, {transform_indices = @transform_1, window_bounds = array<i64: 64, 128>}, {transform_indices = @transform_2, window_bounds = array<i64: 1, 128>}, {transform_indices = @transform_3, window_bounds = array<i64: 32, 128>}]} {
    %c0 = arith.constant 0 : index
    %c0_0 = arith.constant 0 : index
    %0 = vector.load %arg2[%c0, %c0_0] : memref<32x64xbf16, #tpu.memory_space<vmem>>, vector<32x64xbf16>
    %c0_1 = arith.constant 0 : index
    %c0_2 = arith.constant 0 : index
    %1 = vector.load %arg3[%c0_1, %c0_2] : memref<64x128xbf16, #tpu.memory_space<vmem>>, vector<64x128xbf16>
    %cst = arith.constant dense<0.000000e+00> : vector<32x128xf32>
    %2 = tpu.matmul %0, %1, %cst {dimension_numbers = #tpu.dot_dimension_numbers<[1], [0], [0], [1], [0, 0, 1, 1], [], []>} : vector<32x64xbf16>, vector<64x128xbf16>, vector<32x128xf32> -> vector<32x128xf32>
    %c0_3 = arith.constant 0 : index
    %c0_4 = arith.constant 0 : index
    %3 = vector.load %arg4[%c0_3, %c0_4] : memref<1x128xf32, #tpu.memory_space<vmem>>, vector<1x128xf32>
    %4 = vector.broadcast %3 : vector<1x128xf32> to vector<32x128xf32>
    %5 = arith.addf %2, %4 : vector<32x128xf32>
    %cst_5 = arith.constant 0.000000e+00 : f32
    %6 = vector.broadcast %cst_5 : f32 to vector<32x128xf32>
    %7 = arith.maximumf %5, %6 : vector<32x128xf32>
    %8 = arith.truncf %7 : vector<32x128xf32> to vector<32x128xbf16>
    %c0_6 = arith.constant 0 : index
    %c0_7 = arith.constant 0 : index
    %9 = vector.load %arg5[%c0_6, %c0_7] : memref<32x128xbf16, #tpu.memory_space<vmem>>, vector<32x128xbf16>
    tpu.vector_store %arg5[%c0_6, %c0_7], %8 {strides = array<i32>} : memref<32x128xbf16, #tpu.memory_space<vmem>>, vector<32x128xbf16>,
    return
  }
  func.func @transform_0(%arg0: i32, %arg1: i32) -> (i32, i32) {
    %c0_i32 = arith.constant 0 : i32
    %c0_i32_0 = arith.constant 0 : i32
    return %arg0, %c0_i32 : i32, i32
  }
  func.func @transform_1(%arg0: i32, %arg1: i32) -> (i32, i32) {
    %c0_i32 = arith.constant 0 : i32
    %c0_i32_0 = arith.constant 0 : i32
    return %c0_i32, %arg1 : i32, i32
  }
  func.func @transform_2(%arg0: i32, %arg1: i32) -> (i32, i32) {
    %c0_i32 = arith.constant 0 : i32
    %c0_i32_0 = arith.constant 0 : i32
    return %c0_i32, %arg1 : i32, i32
  }
  func.func @transform_3(%arg0: i32, %arg1: i32) -> (i32, i32) {
    %c0_i32 = arith.constant 0 : i32
    return %arg0, %arg1 : i32, i32
  }
}

module attributes {stable_mosaic.version = 11 : i64} {
  func.func @_dense_kernel(%arg0: i32, %arg1: i32, %arg2: memref<32x3xbf16, #tpu.memory_space<vmem>>, %arg3: memref<3x64xbf16, #tpu.memory_space<vmem>>, %arg4: memref<1x64xf32, #tpu.memory_space<vmem>>, %arg5: memref<32x64xbf16, #tpu.memory_space<vmem>>) attributes {dimension_semantics = [#tpu.dimension_semantics<parallel>, #tpu.dimension_semantics<parallel>], iteration_bounds = array<i64: 1, 1>, scalar_prefetch = 0 : i64, scratch_operands = 0 : i64, tpu.core_type = #tpu.core_type<tc>, window_params = [{transform_indices = @transform_0, window_bounds = array<i64: 32, 3>}, {transform_indices = @transform_1, window_bounds = array<i64: 3, 64>}, {transform_indices = @transform_2, window_bounds = array<i64: 1, 64>}, {transform_indices = @transform_3, window_bounds = array<i64: 32, 64>}]} {
    %c0 = arith.constant 0 : index
    %c0_0 = arith.constant 0 : index
    %0 = vector.load %arg2[%c0, %c0_0] : memref<32x3xbf16, #tpu.memory_space<vmem>>, vector<32x3xbf16>
    %c0_1 = arith.constant 0 : index
    %c0_2 = arith.constant 0 : index
    %1 = vector.load %arg3[%c0_1, %c0_2] : memref<3x64xbf16, #tpu.memory_space<vmem>>, vector<3x64xbf16>
    %cst = arith.constant dense<0.000000e+00> : vector<32x64xf32>
    %2 = tpu.matmul %0, %1, %cst {dimension_numbers = #tpu.dot_dimension_numbers<[1], [0], [0], [1], [0, 0, 1, 1], [], []>} : vector<32x3xbf16>, vector<3x64xbf16>, vector<32x64xf32> -> vector<32x64xf32>
    %c0_3 = arith.constant 0 : index
    %c0_4 = arith.constant 0 : index
    %3 = vector.load %arg4[%c0_3, %c0_4] : memref<1x64xf32, #tpu.memory_space<vmem>>, vector<1x64xf32>
    %4 = vector.broadcast %3 : vector<1x64xf32> to vector<32x64xf32>
    %5 = arith.addf %2, %4 : vector<32x64xf32>
    %cst_5 = arith.constant 0.000000e+00 : f32
    %6 = vector.broadcast %cst_5 : f32 to vector<32x64xf32>
    %7 = arith.maximumf %5, %6 : vector<32x64xf32>
    %8 = arith.truncf %7 : vector<32x64xf32> to vector<32x64xbf16>
    %c0_6 = arith.constant 0 : index
    %c0_7 = arith.constant 0 : index
    %9 = vector.load %arg5[%c0_6, %c0_7] : memref<32x64xbf16, #tpu.memory_space<vmem>>, vector<32x64xbf16>
    tpu.vector_store %arg5[%c0_6, %c0_7], %8 {strides = array<i32>} : memref<32x64xbf16, #tpu.memory_space<vmem>>, vector<32x64xbf16>,
    return
  }
  func.func @transform_0(%arg0: i32, %arg1: i32) -> (i32, i32) {
    %c0_i32 = arith.constant 0 : i32
    %c0_i32_0 = arith.constant 0 : i32
    return %arg0, %c0_i32 : i32, i32
  }
  func.func @transform_1(%arg0: i32, %arg1: i32) -> (i32, i32) {
    %c0_i32 = arith.constant 0 : i32
    %c0_i32_0 = arith.constant 0 : i32
    return %c0_i32, %arg1 : i32, i32
  }
  func.func @transform_2(%arg0: i32, %arg1: i32) -> (i32, i32) {
    %c0_i32 = arith.constant 0 : i32
    %c0_i32_0 = arith.constant 0 : i32
    return %c0_i32, %arg1 : i32, i32
  }
  func.func @transform_3(%arg0: i32, %arg1: i32) -> (i32, i32) {
    %c0_i32 = arith.constant 0 : i32
    return %arg0, %arg1 : i32, i32
  }
}

module attributes {stable_mosaic.version = 11 : i64} {
  func.func @_conv_pool_kernel(%arg0: i32, %arg1: i32, %arg2: i32, %arg3: memref<1x16x128xbf16, #tpu.memory_space<vmem>>, %arg4: memref<128x256xbf16, #tpu.memory_space<vmem>>, %arg5: memref<1x256xf32, #tpu.memory_space<vmem>>, %arg6: memref<1x1x256xf32, #tpu.memory_space<vmem>>) attributes {dimension_semantics = [#tpu.dimension_semantics<parallel>, #tpu.dimension_semantics<parallel>, #tpu.dimension_semantics<arbitrary>], iteration_bounds = array<i64: 2, 4, 1>, scalar_prefetch = 0 : i64, scratch_operands = 0 : i64, tpu.core_type = #tpu.core_type<tc>, window_params = [{transform_indices = @transform_0, window_bounds = array<i64: 1, 16, 128>}, {transform_indices = @transform_1, window_bounds = array<i64: 128, 256>}, {transform_indices = @transform_2, window_bounds = array<i64: 1, 256>}, {transform_indices = @transform_3, window_bounds = array<i64: 1, 1, 256>}]} {
    %c0_i32 = arith.constant 0 : i32
    %0 = arith.cmpi eq, %arg2, %c0_i32 : i32
    %1 = arith.extui %0 : i1 to i32
    %c0_i32_0 = arith.constant 0 : i32
    %2 = arith.cmpi ne, %1, %c0_i32_0 : i32
    scf.if %2 {
      %cst_15 = arith.constant 0xFF800000 : f32
      %20 = vector.broadcast %cst_15 : f32 to vector<1x1x256xf32>
      %c0_16 = arith.constant 0 : index
      %c0_17 = arith.constant 0 : index
      %c0_18 = arith.constant 0 : index
      %21 = vector.load %arg6[%c0_16, %c0_17, %c0_18] : memref<1x1x256xf32, #tpu.memory_space<vmem>>, vector<1x1x256xf32>
      tpu.vector_store %arg6[%c0_16, %c0_17, %c0_18], %20 {strides = array<i32>} : memref<1x1x256xf32, #tpu.memory_space<vmem>>, vector<1x1x256xf32>,
    } else {
    }
    %c0 = arith.constant 0 : index
    %c0_1 = arith.constant 0 : index
    %c0_2 = arith.constant 0 : index
    %3 = vector.load %arg3[%c0, %c0_1, %c0_2] : memref<1x16x128xbf16, #tpu.memory_space<vmem>>, vector<1x16x128xbf16>
    %4 = vector.shape_cast %3 : vector<1x16x128xbf16> to vector<16x128xbf16>
    %c0_3 = arith.constant 0 : index
    %c0_4 = arith.constant 0 : index
    %5 = vector.load %arg4[%c0_3, %c0_4] : memref<128x256xbf16, #tpu.memory_space<vmem>>, vector<128x256xbf16>
    %cst = arith.constant dense<0.000000e+00> : vector<16x256xf32>
    %6 = tpu.matmul %4, %5, %cst {dimension_numbers = #tpu.dot_dimension_numbers<[1], [0], [0], [1], [0, 0, 1, 1], [], []>} : vector<16x128xbf16>, vector<128x256xbf16>, vector<16x256xf32> -> vector<16x256xf32>
    %c0_5 = arith.constant 0 : index
    %c0_6 = arith.constant 0 : index
    %7 = vector.load %arg5[%c0_5, %c0_6] : memref<1x256xf32, #tpu.memory_space<vmem>>, vector<1x256xf32>
    %8 = vector.broadcast %7 : vector<1x256xf32> to vector<16x256xf32>
    %9 = arith.addf %6, %8 : vector<16x256xf32>
    %cst_7 = arith.constant 0.000000e+00 : f32
    %10 = vector.broadcast %cst_7 : f32 to vector<16x256xf32>
    %11 = arith.maximumf %9, %10 : vector<16x256xf32>
    %cst_8 = arith.constant dense<0xFF800000> : vector<256xf32>
    %12 = vector.multi_reduction <maximumf>, %11, %cst_8 [0] : vector<16x256xf32> to vector<256xf32>
    %13 = vector.shape_cast %12 : vector<256xf32> to vector<1x256xf32>
    %c0_9 = arith.constant 0 : index
    %c0_10 = arith.constant 0 : index
    %c0_11 = arith.constant 0 : index
    %14 = vector.load %arg6[%c0_9, %c0_10, %c0_11] : memref<1x1x256xf32, #tpu.memory_space<vmem>>, vector<1x1x256xf32>
    %15 = vector.shape_cast %14 : vector<1x1x256xf32> to vector<1x256xf32>
    %16 = arith.maximumf %15, %13 : vector<1x256xf32>
    %c0_12 = arith.constant 0 : index
    %c0_13 = arith.constant 0 : index
    %c0_14 = arith.constant 0 : index
    %17 = vector.load %arg6[%c0_12, %c0_13, %c0_14] : memref<1x1x256xf32, #tpu.memory_space<vmem>>, vector<1x1x256xf32>
    %18 = vector.shape_cast %17 : vector<1x1x256xf32> to vector<1x256xf32>
    %19 = vector.shape_cast %16 : vector<1x256xf32> to vector<1x1x256xf32>
    tpu.vector_store %arg6[%c0_12, %c0_13, %c0_14], %19 {strides = array<i32>} : memref<1x1x256xf32, #tpu.memory_space<vmem>>, vector<1x1x256xf32>,
    return
  }
  func.func @transform_0(%arg0: i32, %arg1: i32, %arg2: i32) -> (i32, i32, i32) {
    %c0_i32 = arith.constant 0 : i32
    %c0_i32_0 = arith.constant 0 : i32
    return %arg0, %arg2, %c0_i32 : i32, i32, i32
  }
  func.func @transform_1(%arg0: i32, %arg1: i32, %arg2: i32) -> (i32, i32) {
    %c0_i32 = arith.constant 0 : i32
    %c0_i32_0 = arith.constant 0 : i32
    return %c0_i32, %arg1 : i32, i32
  }
  func.func @transform_2(%arg0: i32, %arg1: i32, %arg2: i32) -> (i32, i32) {
    %c0_i32 = arith.constant 0 : i32
    %c0_i32_0 = arith.constant 0 : i32
    return %c0_i32, %arg1 : i32, i32
  }
  func.func @transform_3(%arg0: i32, %arg1: i32, %arg2: i32) -> (i32, i32, i32) {
    %c0_i32 = arith.constant 0 : i32
    %c0_i32_0 = arith.constant 0 : i32
    return %arg0, %c0_i32, %arg1 : i32, i32, i32
  }
}

module attributes {stable_mosaic.version = 11 : i64} {
  func.func @_dense_kernel(%arg0: i32, %arg1: i32, %arg2: memref<2x1024xf32, #tpu.memory_space<vmem>>, %arg3: memref<1024x256xf32, #tpu.memory_space<vmem>>, %arg4: memref<1x256xf32, #tpu.memory_space<vmem>>, %arg5: memref<2x256xf32, #tpu.memory_space<vmem>>) attributes {dimension_semantics = [#tpu.dimension_semantics<parallel>, #tpu.dimension_semantics<parallel>], iteration_bounds = array<i64: 1, 2>, scalar_prefetch = 0 : i64, scratch_operands = 0 : i64, tpu.core_type = #tpu.core_type<tc>, window_params = [{transform_indices = @transform_0, window_bounds = array<i64: 2, 1024>}, {transform_indices = @transform_1, window_bounds = array<i64: 1024, 256>}, {transform_indices = @transform_2, window_bounds = array<i64: 1, 256>}, {transform_indices = @transform_3, window_bounds = array<i64: 2, 256>}]} {
    %c0 = arith.constant 0 : index
    %c0_0 = arith.constant 0 : index
    %0 = vector.load %arg2[%c0, %c0_0] : memref<2x1024xf32, #tpu.memory_space<vmem>>, vector<2x1024xf32>
    %c0_1 = arith.constant 0 : index
    %c0_2 = arith.constant 0 : index
    %1 = vector.load %arg3[%c0_1, %c0_2] : memref<1024x256xf32, #tpu.memory_space<vmem>>, vector<1024x256xf32>
    %cst = arith.constant dense<0.000000e+00> : vector<2x256xf32>
    %2 = tpu.matmul %0, %1, %cst {dimension_numbers = #tpu.dot_dimension_numbers<[1], [0], [0], [1], [0, 0, 1, 1], [], []>} : vector<2x1024xf32>, vector<1024x256xf32>, vector<2x256xf32> -> vector<2x256xf32>
    %c0_3 = arith.constant 0 : index
    %c0_4 = arith.constant 0 : index
    %3 = vector.load %arg4[%c0_3, %c0_4] : memref<1x256xf32, #tpu.memory_space<vmem>>, vector<1x256xf32>
    %4 = vector.broadcast %3 : vector<1x256xf32> to vector<2x256xf32>
    %5 = arith.addf %2, %4 : vector<2x256xf32>
    %cst_5 = arith.constant 0.000000e+00 : f32
    %6 = vector.broadcast %cst_5 : f32 to vector<2x256xf32>
    %7 = arith.maximumf %5, %6 : vector<2x256xf32>
    %c0_6 = arith.constant 0 : index
    %c0_7 = arith.constant 0 : index
    %8 = vector.load %arg5[%c0_6, %c0_7] : memref<2x256xf32, #tpu.memory_space<vmem>>, vector<2x256xf32>
    tpu.vector_store %arg5[%c0_6, %c0_7], %7 {strides = array<i32>} : memref<2x256xf32, #tpu.memory_space<vmem>>, vector<2x256xf32>,
    return
  }
  func.func @transform_0(%arg0: i32, %arg1: i32) -> (i32, i32) {
    %c0_i32 = arith.constant 0 : i32
    %c0_i32_0 = arith.constant 0 : i32
    return %arg0, %c0_i32 : i32, i32
  }
  func.func @transform_1(%arg0: i32, %arg1: i32) -> (i32, i32) {
    %c0_i32 = arith.constant 0 : i32
    %c0_i32_0 = arith.constant 0 : i32
    return %c0_i32, %arg1 : i32, i32
  }
  func.func @transform_2(%arg0: i32, %arg1: i32) -> (i32, i32) {
    %c0_i32 = arith.constant 0 : i32
    %c0_i32_0 = arith.constant 0 : i32
    return %c0_i32, %arg1 : i32, i32
  }
  func.func @transform_3(%arg0: i32, %arg1: i32) -> (i32, i32) {
    %c0_i32 = arith.constant 0 : i32
    return %arg0, %arg1 : i32, i32
  }
}

module attributes {stable_mosaic.version = 11 : i64} {
  func.func @_dense_kernel(%arg0: i32, %arg1: i32, %arg2: memref<2x512xf32, #tpu.memory_space<vmem>>, %arg3: memref<512x256xf32, #tpu.memory_space<vmem>>, %arg4: memref<1x256xf32, #tpu.memory_space<vmem>>, %arg5: memref<2x256xf32, #tpu.memory_space<vmem>>) attributes {dimension_semantics = [#tpu.dimension_semantics<parallel>, #tpu.dimension_semantics<parallel>], iteration_bounds = array<i64: 1, 1>, scalar_prefetch = 0 : i64, scratch_operands = 0 : i64, tpu.core_type = #tpu.core_type<tc>, window_params = [{transform_indices = @transform_0, window_bounds = array<i64: 2, 512>}, {transform_indices = @transform_1, window_bounds = array<i64: 512, 256>}, {transform_indices = @transform_2, window_bounds = array<i64: 1, 256>}, {transform_indices = @transform_3, window_bounds = array<i64: 2, 256>}]} {
    %c0 = arith.constant 0 : index
    %c0_0 = arith.constant 0 : index
    %0 = vector.load %arg2[%c0, %c0_0] : memref<2x512xf32, #tpu.memory_space<vmem>>, vector<2x512xf32>
    %c0_1 = arith.constant 0 : index
    %c0_2 = arith.constant 0 : index
    %1 = vector.load %arg3[%c0_1, %c0_2] : memref<512x256xf32, #tpu.memory_space<vmem>>, vector<512x256xf32>
    %cst = arith.constant dense<0.000000e+00> : vector<2x256xf32>
    %2 = tpu.matmul %0, %1, %cst {dimension_numbers = #tpu.dot_dimension_numbers<[1], [0], [0], [1], [0, 0, 1, 1], [], []>} : vector<2x512xf32>, vector<512x256xf32>, vector<2x256xf32> -> vector<2x256xf32>
    %c0_3 = arith.constant 0 : index
    %c0_4 = arith.constant 0 : index
    %3 = vector.load %arg4[%c0_3, %c0_4] : memref<1x256xf32, #tpu.memory_space<vmem>>, vector<1x256xf32>
    %4 = vector.broadcast %3 : vector<1x256xf32> to vector<2x256xf32>
    %5 = arith.addf %2, %4 : vector<2x256xf32>
    %cst_5 = arith.constant 0.000000e+00 : f32
    %6 = vector.broadcast %cst_5 : f32 to vector<2x256xf32>
    %7 = arith.maximumf %5, %6 : vector<2x256xf32>
    %c0_6 = arith.constant 0 : index
    %c0_7 = arith.constant 0 : index
    %8 = vector.load %arg5[%c0_6, %c0_7] : memref<2x256xf32, #tpu.memory_space<vmem>>, vector<2x256xf32>
    tpu.vector_store %arg5[%c0_6, %c0_7], %7 {strides = array<i32>} : memref<2x256xf32, #tpu.memory_space<vmem>>, vector<2x256xf32>,
    return
  }
  func.func @transform_0(%arg0: i32, %arg1: i32) -> (i32, i32) {
    %c0_i32 = arith.constant 0 : i32
    %c0_i32_0 = arith.constant 0 : i32
    return %arg0, %c0_i32 : i32, i32
  }
  func.func @transform_1(%arg0: i32, %arg1: i32) -> (i32, i32) {
    %c0_i32 = arith.constant 0 : i32
    %c0_i32_0 = arith.constant 0 : i32
    return %c0_i32, %arg1 : i32, i32
  }
  func.func @transform_2(%arg0: i32, %arg1: i32) -> (i32, i32) {
    %c0_i32 = arith.constant 0 : i32
    %c0_i32_0 = arith.constant 0 : i32
    return %c0_i32, %arg1 : i32, i32
  }
  func.func @transform_3(%arg0: i32, %arg1: i32) -> (i32, i32) {
    %c0_i32 = arith.constant 0 : i32
    return %arg0, %arg1 : i32, i32
  }
}

module attributes {stable_mosaic.version = 11 : i64} {
  func.func @_dense_kernel(%arg0: i32, %arg1: i32, %arg2: memref<2x256xf32, #tpu.memory_space<vmem>>, %arg3: memref<256x9xf32, #tpu.memory_space<vmem>>, %arg4: memref<1x9xf32, #tpu.memory_space<vmem>>, %arg5: memref<2x9xf32, #tpu.memory_space<vmem>>) attributes {dimension_semantics = [#tpu.dimension_semantics<parallel>, #tpu.dimension_semantics<parallel>], iteration_bounds = array<i64: 1, 1>, scalar_prefetch = 0 : i64, scratch_operands = 0 : i64, tpu.core_type = #tpu.core_type<tc>, window_params = [{transform_indices = @transform_0, window_bounds = array<i64: 2, 256>}, {transform_indices = @transform_1, window_bounds = array<i64: 256, 9>}, {transform_indices = @transform_2, window_bounds = array<i64: 1, 9>}, {transform_indices = @transform_3, window_bounds = array<i64: 2, 9>}]} {
    %c0 = arith.constant 0 : index
    %c0_0 = arith.constant 0 : index
    %0 = vector.load %arg2[%c0, %c0_0] : memref<2x256xf32, #tpu.memory_space<vmem>>, vector<2x256xf32>
    %c0_1 = arith.constant 0 : index
    %c0_2 = arith.constant 0 : index
    %1 = vector.load %arg3[%c0_1, %c0_2] : memref<256x9xf32, #tpu.memory_space<vmem>>, vector<256x9xf32>
    %cst = arith.constant dense<0.000000e+00> : vector<2x9xf32>
    %2 = tpu.matmul %0, %1, %cst {dimension_numbers = #tpu.dot_dimension_numbers<[1], [0], [0], [1], [0, 0, 1, 1], [], []>} : vector<2x256xf32>, vector<256x9xf32>, vector<2x9xf32> -> vector<2x9xf32>
    %c0_3 = arith.constant 0 : index
    %c0_4 = arith.constant 0 : index
    %3 = vector.load %arg4[%c0_3, %c0_4] : memref<1x9xf32, #tpu.memory_space<vmem>>, vector<1x9xf32>
    %4 = vector.broadcast %3 : vector<1x9xf32> to vector<2x9xf32>
    %5 = arith.addf %2, %4 : vector<2x9xf32>
    %c0_5 = arith.constant 0 : index
    %c0_6 = arith.constant 0 : index
    %6 = vector.load %arg5[%c0_5, %c0_6] : memref<2x9xf32, #tpu.memory_space<vmem>>, vector<2x9xf32>
    tpu.vector_store %arg5[%c0_5, %c0_6], %5 {strides = array<i32>} : memref<2x9xf32, #tpu.memory_space<vmem>>, vector<2x9xf32>,
    return
  }
  func.func @transform_0(%arg0: i32, %arg1: i32) -> (i32, i32) {
    %c0_i32 = arith.constant 0 : i32
    %c0_i32_0 = arith.constant 0 : i32
    return %arg0, %c0_i32 : i32, i32
  }
  func.func @transform_1(%arg0: i32, %arg1: i32) -> (i32, i32) {
    %c0_i32 = arith.constant 0 : i32
    %c0_i32_0 = arith.constant 0 : i32
    return %c0_i32, %arg1 : i32, i32
  }
  func.func @transform_2(%arg0: i32, %arg1: i32) -> (i32, i32) {
    %c0_i32 = arith.constant 0 : i32
    %c0_i32_0 = arith.constant 0 : i32
    return %c0_i32, %arg1 : i32, i32
  }
  func.func @transform_3(%arg0: i32, %arg1: i32) -> (i32, i32) {
    %c0_i32 = arith.constant 0 : i32
    return %arg0, %arg1 : i32, i32
  }
}

module attributes {stable_mosaic.version = 11 : i64} {
  func.func @_dense_kernel(%arg0: i32, %arg1: i32, %arg2: memref<32x64xbf16, #tpu.memory_space<vmem>>, %arg3: memref<64x64xbf16, #tpu.memory_space<vmem>>, %arg4: memref<1x64xf32, #tpu.memory_space<vmem>>, %arg5: memref<32x64xbf16, #tpu.memory_space<vmem>>) attributes {dimension_semantics = [#tpu.dimension_semantics<parallel>, #tpu.dimension_semantics<parallel>], iteration_bounds = array<i64: 1, 1>, scalar_prefetch = 0 : i64, scratch_operands = 0 : i64, tpu.core_type = #tpu.core_type<tc>, window_params = [{transform_indices = @transform_0, window_bounds = array<i64: 32, 64>}, {transform_indices = @transform_1, window_bounds = array<i64: 64, 64>}, {transform_indices = @transform_2, window_bounds = array<i64: 1, 64>}, {transform_indices = @transform_3, window_bounds = array<i64: 32, 64>}]} {
    %c0 = arith.constant 0 : index
    %c0_0 = arith.constant 0 : index
    %0 = vector.load %arg2[%c0, %c0_0] : memref<32x64xbf16, #tpu.memory_space<vmem>>, vector<32x64xbf16>
    %c0_1 = arith.constant 0 : index
    %c0_2 = arith.constant 0 : index
    %1 = vector.load %arg3[%c0_1, %c0_2] : memref<64x64xbf16, #tpu.memory_space<vmem>>, vector<64x64xbf16>
    %cst = arith.constant dense<0.000000e+00> : vector<32x64xf32>
    %2 = tpu.matmul %0, %1, %cst {dimension_numbers = #tpu.dot_dimension_numbers<[1], [0], [0], [1], [0, 0, 1, 1], [], []>} : vector<32x64xbf16>, vector<64x64xbf16>, vector<32x64xf32> -> vector<32x64xf32>
    %c0_3 = arith.constant 0 : index
    %c0_4 = arith.constant 0 : index
    %3 = vector.load %arg4[%c0_3, %c0_4] : memref<1x64xf32, #tpu.memory_space<vmem>>, vector<1x64xf32>
    %4 = vector.broadcast %3 : vector<1x64xf32> to vector<32x64xf32>
    %5 = arith.addf %2, %4 : vector<32x64xf32>
    %cst_5 = arith.constant 0.000000e+00 : f32
    %6 = vector.broadcast %cst_5 : f32 to vector<32x64xf32>
    %7 = arith.maximumf %5, %6 : vector<32x64xf32>
    %8 = arith.truncf %7 : vector<32x64xf32> to vector<32x64xbf16>
    %c0_6 = arith.constant 0 : index
    %c0_7 = arith.constant 0 : index
    %9 = vector.load %arg5[%c0_6, %c0_7] : memref<32x64xbf16, #tpu.memory_space<vmem>>, vector<32x64xbf16>
    tpu.vector_store %arg5[%c0_6, %c0_7], %8 {strides = array<i32>} : memref<32x64xbf16, #tpu.memory_space<vmem>>, vector<32x64xbf16>,
    return
  }
  func.func @transform_0(%arg0: i32, %arg1: i32) -> (i32, i32) {
    %c0_i32 = arith.constant 0 : i32
    %c0_i32_0 = arith.constant 0 : i32
    return %arg0, %c0_i32 : i32, i32
  }
  func.func @transform_1(%arg0: i32, %arg1: i32) -> (i32, i32) {
    %c0_i32 = arith.constant 0 : i32
    %c0_i32_0 = arith.constant 0 : i32
    return %c0_i32, %arg1 : i32, i32
  }
  func.func @transform_2(%arg0: i32, %arg1: i32) -> (i32, i32) {
    %c0_i32 = arith.constant 0 : i32
    %c0_i32_0 = arith.constant 0 : i32
    return %c0_i32, %arg1 : i32, i32
  }
  func.func @transform_3(%arg0: i32, %arg1: i32) -> (i32, i32) {
    %c0_i32 = arith.constant 0 : i32
    return %arg0, %arg1 : i32, i32
  }
}

module attributes {stable_mosaic.version = 11 : i64} {
  func.func @_bmm_dense_kernel(%arg0: i32, %arg1: i32, %arg2: memref<1x16x3xbf16, #tpu.memory_space<vmem>>, %arg3: memref<1x3x64xbf16, #tpu.memory_space<vmem>>, %arg4: memref<1x64xf32, #tpu.memory_space<vmem>>, %arg5: memref<1x16x64xbf16, #tpu.memory_space<vmem>>) attributes {dimension_semantics = [#tpu.dimension_semantics<parallel>, #tpu.dimension_semantics<parallel>], iteration_bounds = array<i64: 2, 1>, scalar_prefetch = 0 : i64, scratch_operands = 0 : i64, tpu.core_type = #tpu.core_type<tc>, window_params = [{transform_indices = @transform_0, window_bounds = array<i64: 1, 16, 3>}, {transform_indices = @transform_1, window_bounds = array<i64: 1, 3, 64>}, {pipeline_mode = #tpu.pipeline_mode<synchronous>, transform_indices = @transform_2, window_bounds = array<i64: 1, 64>}, {transform_indices = @transform_3, window_bounds = array<i64: 1, 16, 64>}]} {
    %c0 = arith.constant 0 : index
    %c0_0 = arith.constant 0 : index
    %c0_1 = arith.constant 0 : index
    %0 = vector.load %arg2[%c0, %c0_0, %c0_1] : memref<1x16x3xbf16, #tpu.memory_space<vmem>>, vector<1x16x3xbf16>
    %1 = vector.shape_cast %0 : vector<1x16x3xbf16> to vector<16x3xbf16>
    %c0_2 = arith.constant 0 : index
    %c0_3 = arith.constant 0 : index
    %c0_4 = arith.constant 0 : index
    %2 = vector.load %arg3[%c0_2, %c0_3, %c0_4] : memref<1x3x64xbf16, #tpu.memory_space<vmem>>, vector<1x3x64xbf16>
    %3 = vector.shape_cast %2 : vector<1x3x64xbf16> to vector<3x64xbf16>
    %cst = arith.constant dense<0.000000e+00> : vector<16x64xf32>
    %4 = tpu.matmul %1, %3, %cst {dimension_numbers = #tpu.dot_dimension_numbers<[1], [0], [0], [1], [0, 0, 1, 1], [], []>} : vector<16x3xbf16>, vector<3x64xbf16>, vector<16x64xf32> -> vector<16x64xf32>
    %c0_5 = arith.constant 0 : index
    %c0_6 = arith.constant 0 : index
    %5 = vector.load %arg4[%c0_5, %c0_6] : memref<1x64xf32, #tpu.memory_space<vmem>>, vector<1x64xf32>
    %6 = vector.broadcast %5 : vector<1x64xf32> to vector<16x64xf32>
    %7 = arith.addf %4, %6 : vector<16x64xf32>
    %cst_7 = arith.constant 0.000000e+00 : f32
    %8 = vector.broadcast %cst_7 : f32 to vector<16x64xf32>
    %9 = arith.maximumf %7, %8 : vector<16x64xf32>
    %10 = arith.truncf %9 : vector<16x64xf32> to vector<16x64xbf16>
    %c0_8 = arith.constant 0 : index
    %c0_9 = arith.constant 0 : index
    %c0_10 = arith.constant 0 : index
    %11 = vector.load %arg5[%c0_8, %c0_9, %c0_10] : memref<1x16x64xbf16, #tpu.memory_space<vmem>>, vector<1x16x64xbf16>
    %12 = vector.shape_cast %11 : vector<1x16x64xbf16> to vector<16x64xbf16>
    %13 = vector.shape_cast %10 : vector<16x64xbf16> to vector<1x16x64xbf16>
    tpu.vector_store %arg5[%c0_8, %c0_9, %c0_10], %13 {strides = array<i32>} : memref<1x16x64xbf16, #tpu.memory_space<vmem>>, vector<1x16x64xbf16>,
    return
  }
  func.func @transform_0(%arg0: i32, %arg1: i32) -> (i32, i32, i32) {
    %c0_i32 = arith.constant 0 : i32
    %c0_i32_0 = arith.constant 0 : i32
    return %arg0, %arg1, %c0_i32 : i32, i32, i32
  }
  func.func @transform_1(%arg0: i32, %arg1: i32) -> (i32, i32, i32) {
    %c0_i32 = arith.constant 0 : i32
    %c0_i32_0 = arith.constant 0 : i32
    %c0_i32_1 = arith.constant 0 : i32
    return %arg0, %c0_i32, %c0_i32_0 : i32, i32, i32
  }
  func.func @transform_2(%arg0: i32, %arg1: i32) -> (i32, i32) {
    %c0_i32 = arith.constant 0 : i32
    %c0_i32_0 = arith.constant 0 : i32
    %c0_i32_1 = arith.constant 0 : i32
    return %c0_i32, %c0_i32_0 : i32, i32
  }
  func.func @transform_3(%arg0: i32, %arg1: i32) -> (i32, i32, i32) {
    %c0_i32 = arith.constant 0 : i32
    %c0_i32_0 = arith.constant 0 : i32
    return %arg0, %arg1, %c0_i32 : i32, i32, i32
  }
}

module attributes {stable_mosaic.version = 11 : i64} {
  func.func @_dense_kernel(%arg0: i32, %arg1: i32, %arg2: memref<2x256xf32, #tpu.memory_space<vmem>>, %arg3: memref<256x256xf32, #tpu.memory_space<vmem>>, %arg4: memref<1x256xf32, #tpu.memory_space<vmem>>, %arg5: memref<2x256xf32, #tpu.memory_space<vmem>>) attributes {dimension_semantics = [#tpu.dimension_semantics<parallel>, #tpu.dimension_semantics<parallel>], iteration_bounds = array<i64: 1, 16>, scalar_prefetch = 0 : i64, scratch_operands = 0 : i64, tpu.core_type = #tpu.core_type<tc>, window_params = [{transform_indices = @transform_0, window_bounds = array<i64: 2, 256>}, {transform_indices = @transform_1, window_bounds = array<i64: 256, 256>}, {transform_indices = @transform_2, window_bounds = array<i64: 1, 256>}, {transform_indices = @transform_3, window_bounds = array<i64: 2, 256>}]} {
    %c0 = arith.constant 0 : index
    %c0_0 = arith.constant 0 : index
    %0 = vector.load %arg2[%c0, %c0_0] : memref<2x256xf32, #tpu.memory_space<vmem>>, vector<2x256xf32>
    %c0_1 = arith.constant 0 : index
    %c0_2 = arith.constant 0 : index
    %1 = vector.load %arg3[%c0_1, %c0_2] : memref<256x256xf32, #tpu.memory_space<vmem>>, vector<256x256xf32>
    %cst = arith.constant dense<0.000000e+00> : vector<2x256xf32>
    %2 = tpu.matmul %0, %1, %cst {dimension_numbers = #tpu.dot_dimension_numbers<[1], [0], [0], [1], [0, 0, 1, 1], [], []>} : vector<2x256xf32>, vector<256x256xf32>, vector<2x256xf32> -> vector<2x256xf32>
    %c0_3 = arith.constant 0 : index
    %c0_4 = arith.constant 0 : index
    %3 = vector.load %arg4[%c0_3, %c0_4] : memref<1x256xf32, #tpu.memory_space<vmem>>, vector<1x256xf32>
    %4 = vector.broadcast %3 : vector<1x256xf32> to vector<2x256xf32>
    %5 = arith.addf %2, %4 : vector<2x256xf32>
    %c0_5 = arith.constant 0 : index
    %c0_6 = arith.constant 0 : index
    %6 = vector.load %arg5[%c0_5, %c0_6] : memref<2x256xf32, #tpu.memory_space<vmem>>, vector<2x256xf32>
    tpu.vector_store %arg5[%c0_5, %c0_6], %5 {strides = array<i32>} : memref<2x256xf32, #tpu.memory_space<vmem>>, vector<2x256xf32>,
    return
  }
  func.func @transform_0(%arg0: i32, %arg1: i32) -> (i32, i32) {
    %c0_i32 = arith.constant 0 : i32
    %c0_i32_0 = arith.constant 0 : i32
    return %arg0, %c0_i32 : i32, i32
  }
  func.func @transform_1(%arg0: i32, %arg1: i32) -> (i32, i32) {
    %c0_i32 = arith.constant 0 : i32
    %c0_i32_0 = arith.constant 0 : i32
    return %c0_i32, %arg1 : i32, i32
  }
  func.func @transform_2(%arg0: i32, %arg1: i32) -> (i32, i32) {
    %c0_i32 = arith.constant 0 : i32
    %c0_i32_0 = arith.constant 0 : i32
    return %c0_i32, %arg1 : i32, i32
  }
  func.func @transform_3(%arg0: i32, %arg1: i32) -> (i32, i32) {
    %c0_i32 = arith.constant 0 : i32
    return %arg0, %arg1 : i32, i32
  }
}

module attributes {stable_mosaic.version = 11 : i64} {
  func.func @_conv_pool_kernel(%arg0: i32, %arg1: i32, %arg2: i32, %arg3: memref<1x16x128xbf16, #tpu.memory_space<vmem>>, %arg4: memref<128x256xbf16, #tpu.memory_space<vmem>>, %arg5: memref<1x256xf32, #tpu.memory_space<vmem>>, %arg6: memref<1x1x256xf32, #tpu.memory_space<vmem>>) attributes {dimension_semantics = [#tpu.dimension_semantics<parallel>, #tpu.dimension_semantics<parallel>, #tpu.dimension_semantics<arbitrary>], iteration_bounds = array<i64: 2, 4, 1>, scalar_prefetch = 0 : i64, scratch_operands = 0 : i64, tpu.core_type = #tpu.core_type<tc>, window_params = [{transform_indices = @transform_0, window_bounds = array<i64: 1, 16, 128>}, {transform_indices = @transform_1, window_bounds = array<i64: 128, 256>}, {transform_indices = @transform_2, window_bounds = array<i64: 1, 256>}, {transform_indices = @transform_3, window_bounds = array<i64: 1, 1, 256>}]} {
    %c0_i32 = arith.constant 0 : i32
    %0 = arith.cmpi eq, %arg2, %c0_i32 : i32
    %1 = arith.extui %0 : i1 to i32
    %c0_i32_0 = arith.constant 0 : i32
    %2 = arith.cmpi ne, %1, %c0_i32_0 : i32
    scf.if %2 {
      %cst_14 = arith.constant 0xFF800000 : f32
      %18 = vector.broadcast %cst_14 : f32 to vector<1x1x256xf32>
      %c0_15 = arith.constant 0 : index
      %c0_16 = arith.constant 0 : index
      %c0_17 = arith.constant 0 : index
      %19 = vector.load %arg6[%c0_15, %c0_16, %c0_17] : memref<1x1x256xf32, #tpu.memory_space<vmem>>, vector<1x1x256xf32>
      tpu.vector_store %arg6[%c0_15, %c0_16, %c0_17], %18 {strides = array<i32>} : memref<1x1x256xf32, #tpu.memory_space<vmem>>, vector<1x1x256xf32>,
    } else {
    }
    %c0 = arith.constant 0 : index
    %c0_1 = arith.constant 0 : index
    %c0_2 = arith.constant 0 : index
    %3 = vector.load %arg3[%c0, %c0_1, %c0_2] : memref<1x16x128xbf16, #tpu.memory_space<vmem>>, vector<1x16x128xbf16>
    %4 = vector.shape_cast %3 : vector<1x16x128xbf16> to vector<16x128xbf16>
    %c0_3 = arith.constant 0 : index
    %c0_4 = arith.constant 0 : index
    %5 = vector.load %arg4[%c0_3, %c0_4] : memref<128x256xbf16, #tpu.memory_space<vmem>>, vector<128x256xbf16>
    %cst = arith.constant dense<0.000000e+00> : vector<16x256xf32>
    %6 = tpu.matmul %4, %5, %cst {dimension_numbers = #tpu.dot_dimension_numbers<[1], [0], [0], [1], [0, 0, 1, 1], [], []>} : vector<16x128xbf16>, vector<128x256xbf16>, vector<16x256xf32> -> vector<16x256xf32>
    %c0_5 = arith.constant 0 : index
    %c0_6 = arith.constant 0 : index
    %7 = vector.load %arg5[%c0_5, %c0_6] : memref<1x256xf32, #tpu.memory_space<vmem>>, vector<1x256xf32>
    %8 = vector.broadcast %7 : vector<1x256xf32> to vector<16x256xf32>
    %9 = arith.addf %6, %8 : vector<16x256xf32>
    %cst_7 = arith.constant dense<0xFF800000> : vector<256xf32>
    %10 = vector.multi_reduction <maximumf>, %9, %cst_7 [0] : vector<16x256xf32> to vector<256xf32>
    %11 = vector.shape_cast %10 : vector<256xf32> to vector<1x256xf32>
    %c0_8 = arith.constant 0 : index
    %c0_9 = arith.constant 0 : index
    %c0_10 = arith.constant 0 : index
    %12 = vector.load %arg6[%c0_8, %c0_9, %c0_10] : memref<1x1x256xf32, #tpu.memory_space<vmem>>, vector<1x1x256xf32>
    %13 = vector.shape_cast %12 : vector<1x1x256xf32> to vector<1x256xf32>
    %14 = arith.maximumf %13, %11 : vector<1x256xf32>
    %c0_11 = arith.constant 0 : index
    %c0_12 = arith.constant 0 : index
    %c0_13 = arith.constant 0 : index
    %15 = vector.load %arg6[%c0_11, %c0_12, %c0_13] : memref<1x1x256xf32, #tpu.memory_space<vmem>>, vector<1x1x256xf32>
    %16 = vector.shape_cast %15 : vector<1x1x256xf32> to vector<1x256xf32>
    %17 = vector.shape_cast %14 : vector<1x256xf32> to vector<1x1x256xf32>
    tpu.vector_store %arg6[%c0_11, %c0_12, %c0_13], %17 {strides = array<i32>} : memref<1x1x256xf32, #tpu.memory_space<vmem>>, vector<1x1x256xf32>,
    return
  }
  func.func @transform_0(%arg0: i32, %arg1: i32, %arg2: i32) -> (i32, i32, i32) {
    %c0_i32 = arith.constant 0 : i32
    %c0_i32_0 = arith.constant 0 : i32
    return %arg0, %arg2, %c0_i32 : i32, i32, i32
  }
  func.func @transform_1(%arg0: i32, %arg1: i32, %arg2: i32) -> (i32, i32) {
    %c0_i32 = arith.constant 0 : i32
    %c0_i32_0 = arith.constant 0 : i32
    return %c0_i32, %arg1 : i32, i32
  }
  func.func @transform_2(%arg0: i32, %arg1: i32, %arg2: i32) -> (i32, i32) {
    %c0_i32 = arith.constant 0 : i32
    %c0_i32_0 = arith.constant 0 : i32
    return %c0_i32, %arg1 : i32, i32
  }
  func.func @transform_3(%arg0: i32, %arg1: i32, %arg2: i32) -> (i32, i32, i32) {
    %c0_i32 = arith.constant 0 : i32
    %c0_i32_0 = arith.constant 0 : i32
    return %arg0, %c0_i32, %arg1 : i32, i32, i32
  }
}

module attributes {stable_mosaic.version = 11 : i64} {
  func.func @_bmm_dense_kernel(%arg0: i32, %arg1: i32, %arg2: memref<1x16x64xbf16, #tpu.memory_space<vmem>>, %arg3: memref<1x64x128xbf16, #tpu.memory_space<vmem>>, %arg4: memref<1x128xf32, #tpu.memory_space<vmem>>, %arg5: memref<1x16x128xbf16, #tpu.memory_space<vmem>>) attributes {dimension_semantics = [#tpu.dimension_semantics<parallel>, #tpu.dimension_semantics<parallel>], iteration_bounds = array<i64: 2, 1>, scalar_prefetch = 0 : i64, scratch_operands = 0 : i64, tpu.core_type = #tpu.core_type<tc>, window_params = [{transform_indices = @transform_0, window_bounds = array<i64: 1, 16, 64>}, {transform_indices = @transform_1, window_bounds = array<i64: 1, 64, 128>}, {pipeline_mode = #tpu.pipeline_mode<synchronous>, transform_indices = @transform_2, window_bounds = array<i64: 1, 128>}, {transform_indices = @transform_3, window_bounds = array<i64: 1, 16, 128>}]} {
    %c0 = arith.constant 0 : index
    %c0_0 = arith.constant 0 : index
    %c0_1 = arith.constant 0 : index
    %0 = vector.load %arg2[%c0, %c0_0, %c0_1] : memref<1x16x64xbf16, #tpu.memory_space<vmem>>, vector<1x16x64xbf16>
    %1 = vector.shape_cast %0 : vector<1x16x64xbf16> to vector<16x64xbf16>
    %c0_2 = arith.constant 0 : index
    %c0_3 = arith.constant 0 : index
    %c0_4 = arith.constant 0 : index
    %2 = vector.load %arg3[%c0_2, %c0_3, %c0_4] : memref<1x64x128xbf16, #tpu.memory_space<vmem>>, vector<1x64x128xbf16>
    %3 = vector.shape_cast %2 : vector<1x64x128xbf16> to vector<64x128xbf16>
    %cst = arith.constant dense<0.000000e+00> : vector<16x128xf32>
    %4 = tpu.matmul %1, %3, %cst {dimension_numbers = #tpu.dot_dimension_numbers<[1], [0], [0], [1], [0, 0, 1, 1], [], []>} : vector<16x64xbf16>, vector<64x128xbf16>, vector<16x128xf32> -> vector<16x128xf32>
    %c0_5 = arith.constant 0 : index
    %c0_6 = arith.constant 0 : index
    %5 = vector.load %arg4[%c0_5, %c0_6] : memref<1x128xf32, #tpu.memory_space<vmem>>, vector<1x128xf32>
    %6 = vector.broadcast %5 : vector<1x128xf32> to vector<16x128xf32>
    %7 = arith.addf %4, %6 : vector<16x128xf32>
    %cst_7 = arith.constant 0.000000e+00 : f32
    %8 = vector.broadcast %cst_7 : f32 to vector<16x128xf32>
    %9 = arith.maximumf %7, %8 : vector<16x128xf32>
    %10 = arith.truncf %9 : vector<16x128xf32> to vector<16x128xbf16>
    %c0_8 = arith.constant 0 : index
    %c0_9 = arith.constant 0 : index
    %c0_10 = arith.constant 0 : index
    %11 = vector.load %arg5[%c0_8, %c0_9, %c0_10] : memref<1x16x128xbf16, #tpu.memory_space<vmem>>, vector<1x16x128xbf16>
    %12 = vector.shape_cast %11 : vector<1x16x128xbf16> to vector<16x128xbf16>
    %13 = vector.shape_cast %10 : vector<16x128xbf16> to vector<1x16x128xbf16>
    tpu.vector_store %arg5[%c0_8, %c0_9, %c0_10], %13 {strides = array<i32>} : memref<1x16x128xbf16, #tpu.memory_space<vmem>>, vector<1x16x128xbf16>,
    return
  }
  func.func @transform_0(%arg0: i32, %arg1: i32) -> (i32, i32, i32) {
    %c0_i32 = arith.constant 0 : i32
    %c0_i32_0 = arith.constant 0 : i32
    return %arg0, %arg1, %c0_i32 : i32, i32, i32
  }
  func.func @transform_1(%arg0: i32, %arg1: i32) -> (i32, i32, i32) {
    %c0_i32 = arith.constant 0 : i32
    %c0_i32_0 = arith.constant 0 : i32
    %c0_i32_1 = arith.constant 0 : i32
    return %arg0, %c0_i32, %c0_i32_0 : i32, i32, i32
  }
  func.func @transform_2(%arg0: i32, %arg1: i32) -> (i32, i32) {
    %c0_i32 = arith.constant 0 : i32
    %c0_i32_0 = arith.constant 0 : i32
    %c0_i32_1 = arith.constant 0 : i32
    return %c0_i32, %c0_i32_0 : i32, i32
  }
  func.func @transform_3(%arg0: i32, %arg1: i32) -> (i32, i32, i32) {
    %c0_i32 = arith.constant 0 : i32
    %c0_i32_0 = arith.constant 0 : i32
    return %arg0, %arg1, %c0_i32 : i32, i32, i32
  }
}

module attributes {stable_mosaic.version = 11 : i64} {
  func.func @_dense_logsoftmax_kernel(%arg0: memref<2x256xf32, #tpu.memory_space<vmem>>, %arg1: memref<256x10xf32, #tpu.memory_space<vmem>>, %arg2: memref<1x10xf32, #tpu.memory_space<vmem>>, %arg3: memref<2x10xf32, #tpu.memory_space<vmem>>) attributes {dimension_semantics = [], scalar_prefetch = 0 : i64, scratch_operands = 0 : i64, tpu.core_type = #tpu.core_type<tc>} {
    %c0 = arith.constant 0 : index
    %c0_0 = arith.constant 0 : index
    %0 = vector.load %arg0[%c0, %c0_0] : memref<2x256xf32, #tpu.memory_space<vmem>>, vector<2x256xf32>
    %c0_1 = arith.constant 0 : index
    %c0_2 = arith.constant 0 : index
    %1 = vector.load %arg1[%c0_1, %c0_2] : memref<256x10xf32, #tpu.memory_space<vmem>>, vector<256x10xf32>
    %cst = arith.constant dense<0.000000e+00> : vector<2x10xf32>
    %2 = tpu.matmul %0, %1, %cst {dimension_numbers = #tpu.dot_dimension_numbers<[1], [0], [0], [1], [0, 0, 1, 1], [], []>} : vector<2x256xf32>, vector<256x10xf32>, vector<2x10xf32> -> vector<2x10xf32>
    %c0_3 = arith.constant 0 : index
    %c0_4 = arith.constant 0 : index
    %3 = vector.load %arg2[%c0_3, %c0_4] : memref<1x10xf32, #tpu.memory_space<vmem>>, vector<1x10xf32>
    %4 = vector.broadcast %3 : vector<1x10xf32> to vector<2x10xf32>
    %5 = arith.addf %2, %4 : vector<2x10xf32>
    %cst_5 = arith.constant dense<0xFF800000> : vector<2xf32>
    %6 = vector.multi_reduction <maximumf>, %5, %cst_5 [1] : vector<2x10xf32> to vector<2xf32>
    %7 = vector.shape_cast %6 : vector<2xf32> to vector<2x1xf32>
    %8 = vector.broadcast %7 : vector<2x1xf32> to vector<2x10xf32>
    %9 = arith.subf %5, %8 : vector<2x10xf32>
    %10 = math.exp %9 : vector<2x10xf32>
    %cst_6 = arith.constant dense<0.000000e+00> : vector<2xf32>
    %11 = vector.multi_reduction <add>, %10, %cst_6 [1] : vector<2x10xf32> to vector<2xf32>
    %12 = vector.shape_cast %11 : vector<2xf32> to vector<2x1xf32>
    %13 = math.log %12 : vector<2x1xf32>
    %14 = vector.broadcast %13 : vector<2x1xf32> to vector<2x10xf32>
    %15 = arith.subf %9, %14 : vector<2x10xf32>
    %c0_7 = arith.constant 0 : index
    %c0_8 = arith.constant 0 : index
    %16 = vector.load %arg3[%c0_7, %c0_8] : memref<2x10xf32, #tpu.memory_space<vmem>>, vector<2x10xf32>
    tpu.vector_store %arg3[%c0_7, %c0_8], %15 {strides = array<i32>} : memref<2x10xf32, #tpu.memory_space<vmem>>, vector<2x10xf32>,
    return
  }
}

</mosaic_0001>

<llo_original>
// kernel: pointnet_forward.20
$region0: #{pointnet_forward.20}
  #allocation0 [shape = 'u32[]', space=smem, size = 0x4, offset = 0x4, fixed_abs, tag = 'smem constant byte address 0x4 - core index']
  #allocation1 [shape = 'u32[144,128]{1,0:T(1,128)}', space=vmem, size = 0x12000, scoped, tag = 'internal scratch']
  %s0 = inlined_call_operand.vmem [shape: bf16[2,16,128], index: 0, kind: input, shape index: {}]
  %s1 = inlined_call_operand.vmem [shape: bf16[128,1024], index: 1, kind: input, shape index: {}]
  %s2 = inlined_call_operand.vmem [shape: f32[1,1024], index: 2, kind: input, shape index: {}]
  %s3 = inlined_call_operand.vmem [shape: f32[2,1,1024], index: 3, kind: output, shape index: {}]
  %s4 = sld [smem:[#allocation0]]
  $region87: #{pointnet_forward.20} parent=0
    _
  %s6 = ssub.s32 1, %s4
  %s7 = scalar_select 0, %s6, %s4
  $region1: #{pointnet_forward.20} parent=0
    #allocation2 [shape = 'u8[131072]{0}', space=vmem, size = 0x20000, scoped, tag = 'input window, operand 1']
    loop: start=0, step=1, limit=10
    $region2: #{pointnet_forward.20} parent=1 // loop_pre_header
      _
    $region3: #{pointnet_forward.20} parent=1 // loop_header
      %s9 = sphi 0, %s13
      %p10 = scmp.ge.s32.totalorder %s9, 10
      %s16 = sphi 0, %s35
      %s17 = sphi 0, %s31
      %s18 = sphi 0, %s27
      %s19 = sphi 0, %s16
      %s20 = sphi 0, %s17
      %s21 = sphi 0, %s18
      %s22 = sphi 0, %s19
      %s23 = sphi 0, %s20
      %s24 = sphi 0, %s21
      %s40 = sphi 0, %s42
      %s43 = sphi 0, %s40
      %s44 = sphi 0, %s43
      %s60 = sphi 0, %s44
      %s66 = sphi 0, %s68
      %s69 = sphi 0, %s66
      %s70 = sphi 0, %s69
      %s86 = sphi 0, %s70
      %s92 = sphi 0, %s94
      %s95 = sphi 0, %s92
      %s96 = sphi 0, %s95
      %s112 = sphi 0, %s96
      %s120 = sphi 0, %s122
      %s123 = sphi 0, %s120
      %s124 = sphi 0, %s123
      %s140 = sphi 0, %s124
    $region4: #{pointnet_forward.20} parent=1 // loop_header_branch
      %12 = sbr.rel (%p10) target = $region8
    $region5: #{pointnet_forward.20} parent=1 // loop_body
      %s14 = ssub.s32 %s9, 1
      %s15 = ssub.s32 %s9, 2
      %s25 = sadd.s32 1, %s18
      %p26 = scmp.ge.s32.totalorder %s25, 1
      %s27 = scalar_select %p26, 0, %s25
      %s28 = sadd.s32 1, %s17
      %s29 = scalar_select %p26, %s28, %s17
      %p30 = scmp.ge.s32.totalorder %s29, 4
      %s31 = scalar_select %p30, 0, %s29
      %s32 = sadd.s32 1, %s16
      %s33 = scalar_select %p30, %s32, %s16
      %p34 = scmp.ge.s32.totalorder %s33, 2
      %s35 = scalar_select %p34, 0, %s33
      %s36 = ssub.s32 %s16, %s35
      %s37 = ssub.s32 %s18, %s27
      %s38 = sor.u32 %s36, %s37
      %p39 = scmp.eq.s32.totalorder %s38, 0
      %s41 = sadd.s32 %s40, 1
      %s42 = scalar_select %p39, %s40, %s41
      %p45 = pneg %p39
      %p46 = scmp.eq.s32.totalorder %s9, 7
      %p47 = por %p45, %p46
      %p48 = scmp.ne.s32.totalorder %s40, %s43
      %p49 = scmp.eq.s32.totalorder %s9, 0
      %p50 = por %p48, %p49
      %p51 = scmp.ne.s32.totalorder %s40, %s43
      %p52 = scmp.eq.s32.totalorder %s14, 7
      %p53 = por %p51, %p52
      %p54 = scmp.ne.s32.totalorder %s43, %s44
      %p55 = scmp.eq.s32.totalorder %s14, 0
      %p56 = por %p54, %p55
      %p57 = scmp.ne.s32.totalorder %s43, %s44
      %p58 = scmp.eq.s32.totalorder %s15, 7
      %p59 = por %p57, %p58
      %p61 = scmp.ne.s32.totalorder %s44, %s60
      %p62 = scmp.eq.s32.totalorder %s15, 0
      %p63 = por %p61, %p62
      %s64 = ssub.s32 %s17, %s31
      %p65 = scmp.eq.s32.totalorder %s64, 0
      %s67 = sadd.s32 %s66, 1
      %s68 = scalar_select %p65, %s66, %s67
      %p71 = pneg %p65
      %p72 = scmp.eq.s32.totalorder %s9, 7
      %p73 = por %p71, %p72
      %p74 = scmp.ne.s32.totalorder %s66, %s69
      %p75 = scmp.eq.s32.totalorder %s9, 0
      %p76 = por %p74, %p75
      %p77 = scmp.ne.s32.totalorder %s66, %s69
      %p78 = scmp.eq.s32.totalorder %s14, 7
      %p79 = por %p77, %p78
      %p80 = scmp.ne.s32.totalorder %s69, %s70
      %p81 = scmp.eq.s32.totalorder %s14, 0
      %p82 = por %p80, %p81
      %p83 = scmp.ne.s32.totalorder %s69, %s70
      %p84 = scmp.eq.s32.totalorder %s15, 7
      %p85 = por %p83, %p84
      %p87 = scmp.ne.s32.totalorder %s70, %s86
      %p88 = scmp.eq.s32.totalorder %s15, 0
      %p89 = por %p87, %p88
      %s90 = ssub.s32 %s17, %s31
      %p91 = scmp.eq.s32.totalorder %s90, 0
      %s93 = sadd.s32 %s92, 1
      %s94 = scalar_select %p91, %s92, %s93
      %p97 = pneg %p91
      %p98 = scmp.eq.s32.totalorder %s9, 7
      %p99 = por %p97, %p98
      %p100 = scmp.ne.s32.totalorder %s92, %s95
      %p101 = scmp.eq.s32.totalorder %s9, 0
      %p102 = por %p100, %p101
      %p103 = scmp.ne.s32.totalorder %s92, %s95
      %p104 = scmp.eq.s32.totalorder %s14, 7
      %p105 = por %p103, %p104
      %p106 = scmp.ne.s32.totalorder %s95, %s96
      %p107 = scmp.eq.s32.totalorder %s14, 0
      %p108 = por %p106, %p107
      %p109 = scmp.ne.s32.totalorder %s95, %s96
      %p110 = scmp.eq.s32.totalorder %s15, 7
      %p111 = por %p109, %p110
      %p113 = scmp.ne.s32.totalorder %s96, %s112
      %p114 = scmp.eq.s32.totalorder %s15, 0
      %p115 = por %p113, %p114
      %s116 = ssub.s32 %s16, %s35
      %s117 = ssub.s32 %s17, %s31
      %s118 = sor.u32 %s116, %s117
      %p119 = scmp.eq.s32.totalorder %s118, 0
      %s121 = sadd.s32 %s120, 1
      %s122 = scalar_select %p119, %s120, %s121
      %p125 = pneg %p119
      %p126 = scmp.eq.s32.totalorder %s9, 7
      %p127 = por %p125, %p126
      %p128 = scmp.ne.s32.totalorder %s120, %s123
      %p129 = scmp.eq.s32.totalorder %s9, 0
      %p130 = por %p128, %p129
      %p131 = scmp.ne.s32.totalorder %s120, %s123
      %p132 = scmp.eq.s32.totalorder %s14, 7
      %p133 = por %p131, %p132
      %p134 = scmp.ne.s32.totalorder %s123, %s124
      %p135 = scmp.eq.s32.totalorder %s14, 0
      %p136 = por %p134, %p135
      %p137 = scmp.ne.s32.totalorder %s123, %s124
      %p138 = scmp.eq.s32.totalorder %s15, 7
      %p139 = por %p137, %p138
      %p141 = scmp.ne.s32.totalorder %s124, %s140
      %p142 = scmp.eq.s32.totalorder %s15, 0
      %p143 = por %p141, %p142
      %p144 = scmp.le.s32.totalorder 1, %s9
      %p145 = scmp.lt.s32.totalorder %s9, 9
      %p146 = pnand %p144, %p145
      %p147 = pneg %p146
      // Predicated region
      $region9: #{pointnet_forward.20} parent=5 // pred_check
        _
      $region10: #{pointnet_forward.20} parent=5 // pred_check_branch
        %149 = sbr.rel (%p146) target = $region12
      $region11: #{pointnet_forward.20} parent=5 // pred_region
        %s150 = ssub.s32 %s9, 1
      $region12: #{pointnet_forward.20} parent=5 // pred_fallthru
        _
      %p151 = scmp.lt.s32.totalorder %s9, 8
      // Predicated region
      $region13: #{pointnet_forward.20} parent=5 // pred_check
        %p152 = pneg %p151
      $region14: #{pointnet_forward.20} parent=5 // pred_check_branch
        %154 = sbr.rel (%p152) target = $region16
      $region15: #{pointnet_forward.20} parent=5 // pred_region
        // Predicated region
        $region17: #{pointnet_forward.20} parent=15 // pred_check
          %p155 = pneg %p50
        $region18: #{pointnet_forward.20} parent=15 // pred_check_branch
          %157 = sbr.rel (%p155) target = $region20
        $region19: #{pointnet_forward.20} parent=15 // pred_region
          %s158 = smul.u32 2, %s18
          %p159 = scmp.lt.s32.totalorder %s16, 1
          %s160 = scalar_select %p159, %s16, 1
          %p161 = scmp.lt.s32.totalorder %s158, 1
          %s162 = scalar_select %p161, %s158, 1
          %s163 = smul.addr %s160, 2
          %s164 = sadd.s32 %s162, %s163
          %s165 = smul.addr %s164, 4
          %s166 = scalar_lea.vmem %s0, %s165
          %s167 = smul.u32 2, %s18
        $region20: #{pointnet_forward.20} parent=15 // pred_fallthru
          _
        // Predicated region
        $region21: #{pointnet_forward.20} parent=15 // pred_check
          %p168 = pneg %p76
        $region22: #{pointnet_forward.20} parent=15 // pred_check_branch
          %170 = sbr.rel (%p168) target = $region24
        $region23: #{pointnet_forward.20} parent=15 // pred_region
          %s171 = sand.u32 %s66, 1
          %s172 = sand.u32 %s66, 1
          %s173 = smul.addr %s172, 128
          %s174 = scalar_lea.vmem [#allocation2], %s173
          %s175 = smul.u32 2, %s17
          %s176 = smul.addr %s175, 4
          %s177 = scalar_lea.vmem %s1, %s176
          // Predicated region
          $region25: #{pointnet_forward.20} parent=23 // pred_check
            _
          $region26: #{pointnet_forward.20} parent=23 // pred_check_branch
            %179 = sbr.rel (0) target = $region28
          $region27: #{pointnet_forward.20} parent=23 // pred_region
            // Predicated region
            $region29: #{pointnet_forward.20} parent=27 // pred_check
              _
            $region30: #{pointnet_forward.20} parent=27 // pred_check_branch
              %181 = sbr.rel (0) target = $region32
            $region31: #{pointnet_forward.20} parent=27 // pred_region
              // Predicated region
              $region44: #{pointnet_forward.20} parent=31 // pred_check
                _
              $region45: #{pointnet_forward.20} parent=31 // pred_check_branch
                %226 = sbr.rel (0) target = $region47
              $region46: #{pointnet_forward.20} parent=31 // pred_region
                loop: start=0, step=1, limit=1
                $region48: #{pointnet_forward.20} parent=46 // loop_pre_header
                  _
                $region49: #{pointnet_forward.20} parent=46 // loop_header
                  %s228 = sphi 0, %s232
                  %p229 = scmp.ge.s32.totalorder %s228, 1
                  %s233 = sphi %s177, %s177
                  %s234 = sphi %s174, %s174
                $region50: #{pointnet_forward.20} parent=46 // loop_header_branch
                  %231 = sbr.rel (%p229) target = $region54
                $region51: #{pointnet_forward.20} parent=46 // loop_body
                  %v235 = vld [vmem:[%s233] sm:$0xff]
                  %236 = vst [vmem:[%s234] sm:$0xff] %v235
                  %v237 = vld [vmem:[%s233 + $0x20] sm:$0xff]
                  %238 = vst [vmem:[%s234 + $0x8] sm:$0xff] %v237
                  %v239 = vld [vmem:[%s233 + $0x40] sm:$0xff]
                  %240 = vst [vmem:[%s234 + $0x10] sm:$0xff] %v239
                  %v241 = vld [vmem:[%s233 + $0x60] sm:$0xff]
                  %242 = vst [vmem:[%s234 + $0x18] sm:$0xff] %v241
                  %v243 = vld [vmem:[%s233 + $0x80] sm:$0xff]
                  %244 = vst [vmem:[%s234 + $0x20] sm:$0xff] %v243
                  %v245 = vld [vmem:[%s233 + $0xa0] sm:$0xff]
                  %246 = vst [vmem:[%s234 + $0x28] sm:$0xff] %v245
                  %v247 = vld [vmem:[%s233 + $0xc0] sm:$0xff]
                  %248 = vst [vmem:[%s234 + $0x30] sm:$0xff] %v247
                  %v249 = vld [vmem:[%s233 + $0xe0] sm:$0xff]
                  %250 = vst [vmem:[%s234 + $0x38] sm:$0xff] %v249
                  %v251 = vld [vmem:[%s233 + $0x100] sm:$0xff]
                  %252 = vst [vmem:[%s234 + $0x40] sm:$0xff] %v251
                  %v253 = vld [vmem:[%s233 + $0x120] sm:$0xff]
                  %254 = vst [vmem:[%s234 + $0x48] sm:$0xff] %v253
                  %v255 = vld [vmem:[%s233 + $0x140] sm:$0xff]
                  %256 = vst [vmem:[%s234 + $0x50] sm:$0xff] %v255
                  %v257 = vld [vmem:[%s233 + $0x160] sm:$0xff]
                  %258 = vst [vmem:[%s234 + $0x58] sm:$0xff] %v257
                  %v259 = vld [vmem:[%s233 + $0x180] sm:$0xff]
                  %260 = vst [vmem:[%s234 + $0x60] sm:$0xff] %v259
                  %v261 = vld [vmem:[%s233 + $0x1a0] sm:$0xff]
                  %262 = vst [vmem:[%s234 + $0x68] sm:$0xff] %v261
                  %v263 = vld [vmem:[%s233 + $0x1c0] sm:$0xff]
                  %264 = vst [vmem:[%s234 + $0x70] sm:$0xff] %v263
                  %v265 = vld [vmem:[%s233 + $0x1e0] sm:$0xff]
                  %266 = vst [vmem:[%s234 + $0x78] sm:$0xff] %v265
                $region52: #{pointnet_forward.20} parent=46 // loop_footer
                  %s232 = sadd.s32 1, %s228
                $region53: #{pointnet_forward.20} parent=46 // loop_footer_branch
                  %227 = sbr.rel target = $region49
                $region54: #{pointnet_forward.20} parent=46 // loop_exit
                  _
              $region47: #{pointnet_forward.20} parent=31 // pred_fallthru
                _
              // Predicated region
              $region55: #{pointnet_forward.20} parent=31 // pred_check
                _
              $region56: #{pointnet_forward.20} parent=31 // pred_check_branch
                %268 = sbr.rel target = $region58
              $region57: #{pointnet_forward.20} parent=31 // pred_region
                _
              $region58: #{pointnet_forward.20} parent=31 // pred_fallthru
                _
            $region32: #{pointnet_forward.20} parent=27 // pred_fallthru
              _
            // Predicated region
            $region33: #{pointnet_forward.20} parent=27 // pred_check
              _
            $region34: #{pointnet_forward.20} parent=27 // pred_check_branch
              %183 = sbr.rel target = $region36
            $region35: #{pointnet_forward.20} parent=27 // pred_region
              loop: start=0, step=1, limit=1
              $region37: #{pointnet_forward.20} parent=35 // loop_pre_header
                _
              $region38: #{pointnet_forward.20} parent=35 // loop_header
                %s186 = sphi 0, %s190
                %p187 = scmp.ge.s32.totalorder %s186, 1
                %s191 = sphi %s177, %s177
                %s192 = sphi %s174, %s174
              $region39: #{pointnet_forward.20} parent=35 // loop_header_branch
                %189 = sbr.rel (%p187) target = $region43
              $region40: #{pointnet_forward.20} parent=35 // loop_body
                %v193 = vld [vmem:[%s191] sm:$0xff]
                %194 = vst [vmem:[%s192] sm:$0xff] %v193
                %v195 = vld [vmem:[%s191 + $0x20] sm:$0xff]
                %196 = vst [vmem:[%s192 + $0x8] sm:$0xff] %v195
                %v197 = vld [vmem:[%s191 + $0x40] sm:$0xff]
                %198 = vst [vmem:[%s192 + $0x10] sm:$0xff] %v197
                %v199 = vld [vmem:[%s191 + $0x60] sm:$0xff]
                %200 = vst [vmem:[%s192 + $0x18] sm:$0xff] %v199
                %v201 = vld [vmem:[%s191 + $0x80] sm:$0xff]
                %202 = vst [vmem:[%s192 + $0x20] sm:$0xff] %v201
                %v203 = vld [vmem:[%s191 + $0xa0] sm:$0xff]
                %204 = vst [vmem:[%s192 + $0x28] sm:$0xff] %v203
                %v205 = vld [vmem:[%s191 + $0xc0] sm:$0xff]
                %206 = vst [vmem:[%s192 + $0x30] sm:$0xff] %v205
                %v207 = vld [vmem:[%s191 + $0xe0] sm:$0xff]
                %208 = vst [vmem:[%s192 + $0x38] sm:$0xff] %v207
                %v209 = vld [vmem:[%s191 + $0x100] sm:$0xff]
                %210 = vst [vmem:[%s192 + $0x40] sm:$0xff] %v209
                %v211 = vld [vmem:[%s191 + $0x120] sm:$0xff]
                %212 = vst [vmem:[%s192 + $0x48] sm:$0xff] %v211
                %v213 = vld [vmem:[%s191 + $0x140] sm:$0xff]
                %214 = vst [vmem:[%s192 + $0x50] sm:$0xff] %v213
                %v215 = vld [vmem:[%s191 + $0x160] sm:$0xff]
                %216 = vst [vmem:[%s192 + $0x58] sm:$0xff] %v215
                %v217 = vld [vmem:[%s191 + $0x180] sm:$0xff]
                %218 = vst [vmem:[%s192 + $0x60] sm:$0xff] %v217
                %v219 = vld [vmem:[%s191 + $0x1a0] sm:$0xff]
                %220 = vst [vmem:[%s192 + $0x68] sm:$0xff] %v219
                %v221 = vld [vmem:[%s191 + $0x1c0] sm:$0xff]
                %222 = vst [vmem:[%s192 + $0x70] sm:$0xff] %v221
                %v223 = vld [vmem:[%s191 + $0x1e0] sm:$0xff]
                %224 = vst [vmem:[%s192 + $0x78] sm:$0xff] %v223
              $region41: #{pointnet_forward.20} parent=35 // loop_footer
                %s190 = sadd.s32 1, %s186
              $region42: #{pointnet_forward.20} parent=35 // loop_footer_branch
                %185 = sbr.rel target = $region38
              $region43: #{pointnet_forward.20} parent=35 // loop_exit
                _
            $region36: #{pointnet_forward.20} parent=27 // pred_fallthru
              _
          $region28: #{pointnet_forward.20} parent=23 // pred_fallthru
            _
          %269 = vnop
        $region24: #{pointnet_forward.20} parent=15 // pred_fallthru
          _
        // Predicated region
        $region59: #{pointnet_forward.20} parent=15 // pred_check
          %p270 = pneg %p102
        $region60: #{pointnet_forward.20} parent=15 // pred_check_branch
          %272 = sbr.rel (%p270) target = $region62
        $region61: #{pointnet_forward.20} parent=15 // pred_region
          %s273 = smul.u32 2, %s17
          %p274 = scmp.lt.s32.totalorder %s273, 7
          %s275 = scalar_select %p274, %s273, 7
          %s276 = scalar_lea.vmem %s2, %s275
          %s277 = smul.u32 2, %s17
        $region62: #{pointnet_forward.20} parent=15 // pred_fallthru
          _
      $region16: #{pointnet_forward.20} parent=5 // pred_fallthru
        _
      %p278 = scmp.le.s32.totalorder 1, %s9
      %p279 = scmp.lt.s32.totalorder %s9, 9
      %p280 = pnand %p278, %p279
      %p281 = pneg %p280
      // Predicated region
      $region63: #{pointnet_forward.20} parent=5 // pred_check
        _
      $region64: #{pointnet_forward.20} parent=5 // pred_check_branch
        %283 = sbr.rel (%p280) target = $region66
      $region65: #{pointnet_forward.20} parent=5 // pred_region
        %s284 = ssub.s32 %s9, 1
        %s285 = sand.u32 %s69, 1
        %s286 = sand.u32 %s69, 1
        %s287 = smul.addr %s286, 128
        %s288 = scalar_lea.vmem [#allocation2], %s287
        // Predicated region
        $region67: #{pointnet_forward.20} parent=65 // pred_check
          %p289 = pneg %p82
        $region68: #{pointnet_forward.20} parent=65 // pred_check_branch
          %291 = sbr.rel (%p289) target = $region70
        $region69: #{pointnet_forward.20} parent=65 // pred_region
          _
        $region70: #{pointnet_forward.20} parent=65 // pred_fallthru
          _
        %s292 = smul.u32 2, %s21
        %p293 = scmp.lt.s32.totalorder %s19, 1
        %s294 = scalar_select %p293, %s19, 1
        %p295 = scmp.lt.s32.totalorder %s292, 1
        %s296 = scalar_select %p295, %s292, 1
        %s297 = smul.addr %s294, 2
        %s298 = sadd.s32 %s296, %s297
        %s299 = smul.addr %s298, 4
        %s300 = scalar_lea.vmem %s0, %s299
        %p301 = pneg %p56
        %p302 = pneg %p53
        %s303 = sand.u32 %s69, 1
        %s304 = sand.u32 %s69, 1
        %s305 = smul.addr %s304, 128
        %s306 = scalar_lea.vmem [#allocation2], %s305
        %p307 = pneg %p82
        %p308 = pneg %p79
        %s309 = smul.u32 2, %s20
        %p310 = scmp.lt.s32.totalorder %s309, 7
        %s311 = scalar_select %p310, %s309, 7
        %s312 = scalar_lea.vmem %s2, %s311
        %p313 = pneg %p108
        %p314 = pneg %p105
        %p315 = pneg %p136
        %p316 = pneg %p133
        %s317 = smul.u32 2, %s20
        %p318 = scmp.lt.s32.totalorder %s19, 1
        %s319 = scalar_select %p318, %s19, 1
        %p320 = scmp.lt.s32.totalorder %s317, 7
        %s321 = scalar_select %p320, %s317, 7
        %s322 = smul.addr %s319, 8
        %s323 = sadd.s32 %s321, %s322
        %s324 = scalar_lea.vmem %s3, %s323
        %s325 = smul.u32 2, %s21
        %p326 = scmp.lt.s32.totalorder %s19, 1
        %s327 = scalar_select %p326, %s19, 1
        %p328 = scmp.lt.s32.totalorder %s325, 1
        %s329 = scalar_select %p328, %s325, 1
        %s330 = smul.addr %s327, 2
        %s331 = sadd.s32 %s329, %s330
        %s332 = smul.addr %s331, 4
        %s333 = scalar_lea.vmem %s0, %s332
        %s334 = smul.u32 2, %s21
        %s335 = smul.u32 2, %s20
        %s336 = smul.u32 2, %s20
        %p337 = scmp.lt.s32.totalorder %s336, 7
        %s338 = scalar_select %p337, %s336, 7
        %s339 = scalar_lea.vmem %s2, %s338
        %s340 = smul.u32 2, %s20
        %s341 = smul.u32 2, %s20
        %p342 = scmp.lt.s32.totalorder %s19, 1
        %s343 = scalar_select %p342, %s19, 1
        %p344 = scmp.lt.s32.totalorder %s341, 7
        %s345 = scalar_select %p344, %s341, 7
        %s346 = smul.addr %s343, 8
        %s347 = sadd.s32 %s345, %s346
        %s348 = scalar_lea.vmem %s3, %s347
        %s349 = smul.u32 2, %s20
        %p351 = scmp.eq.s32.totalorder %s21, 0
        // Predicated region
        $region71: #{pointnet_forward.20} parent=65 // pred_check
          %p352 = pneg %p351
        $region72: #{pointnet_forward.20} parent=65 // pred_check_branch
          %354 = sbr.rel (%p352) target = $region74
        $region73: #{pointnet_forward.20} parent=65 // pred_region
          %v355 = vlaneseq
          %vm356 = vcmp.ge.s32.totalorder %v355, 0
          %vm357 = vcmp.lt.s32.totalorder %v355, 256
          %vm358 = vmand %vm356, %vm357
          %359 = vst.msk [vmem:[%s348] sm:$0x3] %vm358, -inf
        $region74: #{pointnet_forward.20} parent=65 // pred_fallthru
          _
        %v360 = vld [vmem:[%s333] sm:$0xf]
        %v361 = vld [vmem:[%s333 + $0x4] sm:$0xf]
        %v362 = vld [vmem:[%s288] sm:$0xff]
        %v363 = vld [vmem:[%s288 + $0x8] sm:$0xff]
        %v364 = vld [vmem:[%s288 + $0x10] sm:$0xff]
        %v365 = vld [vmem:[%s288 + $0x18] sm:$0xff]
        %v366 = vld [vmem:[%s288 + $0x20] sm:$0xff]
        %v367 = vld [vmem:[%s288 + $0x28] sm:$0xff]
        %v368 = vld [vmem:[%s288 + $0x30] sm:$0xff]
        %v369 = vld [vmem:[%s288 + $0x38] sm:$0xff]
        %v370 = vld [vmem:[%s288 + $0x40] sm:$0xff]
        %v371 = vld [vmem:[%s288 + $0x48] sm:$0xff]
        %v372 = vld [vmem:[%s288 + $0x50] sm:$0xff]
        %v373 = vld [vmem:[%s288 + $0x58] sm:$0xff]
        %v374 = vld [vmem:[%s288 + $0x60] sm:$0xff]
        %v375 = vld [vmem:[%s288 + $0x68] sm:$0xff]
        %v376 = vld [vmem:[%s288 + $0x70] sm:$0xff]
        %v377 = vld [vmem:[%s288 + $0x78] sm:$0xff]
        %v378 = vld [vmem:[%s339] sm:$0x3]
        %v380 = vlaneseq
        %v381 = vshrl.u32 %v380, 7
        %v382 = vsub.s32 0, %v381
        %v383 = vrot.slane %v378, %v382
        %v384 = vlaneseq
        %v385 = vshrl.u32 %v384, 7
        %v386 = vsub.s32 1, %v385
        %v387 = vrot.slane %v378, %v386
        %v392 = vunpack.c.l.b16 %v360
        %v393 = vunpack.c.l.b16 %v361
        %v394 = vpack.c.b16 %v393, %v392
        %v412 = vunpack.c.l.b16 %v362
        %v413 = vunpack.c.h.b16 %v362
        %v414 = vunpack.c.l.b16 %v363
        %v415 = vunpack.c.h.b16 %v363
        %v416 = vunpack.c.l.b16 %v364
        %v417 = vunpack.c.h.b16 %v364
        %v418 = vunpack.c.l.b16 %v365
        %v419 = vunpack.c.h.b16 %v365
        %v420 = vunpack.c.l.b16 %v366
        %v421 = vunpack.c.h.b16 %v366
        %v422 = vunpack.c.l.b16 %v367
        %v423 = vunpack.c.h.b16 %v367
        %v424 = vunpack.c.l.b16 %v368
        %v425 = vunpack.c.h.b16 %v368
        %v426 = vunpack.c.l.b16 %v369
        %v427 = vunpack.c.h.b16 %v369
        %v428 = vunpack.c.l.b16 %v370
        %v429 = vunpack.c.h.b16 %v370
        %v430 = vunpack.c.l.b16 %v371
        %v431 = vunpack.c.h.b16 %v371
        %v432 = vunpack.c.l.b16 %v372
        %v433 = vunpack.c.h.b16 %v372
        %v434 = vunpack.c.l.b16 %v373
        %v435 = vunpack.c.h.b16 %v373
        %v436 = vunpack.c.l.b16 %v374
        %v437 = vunpack.c.h.b16 %v374
        %v438 = vunpack.c.l.b16 %v375
        %v439 = vunpack.c.h.b16 %v375
        %v440 = vunpack.c.l.b16 %v376
        %v441 = vunpack.c.h.b16 %v376
        %v442 = vunpack.c.l.b16 %v377
        %v443 = vunpack.c.h.b16 %v377
        %v444 = vpack.c.b16 %v414, %v412
        %v445 = vpack.c.b16 %v415, %v413
        %v446 = vpack.c.b16 %v418, %v416
        %v447 = vpack.c.b16 %v419, %v417
        %v448 = vpack.c.b16 %v422, %v420
        %v449 = vpack.c.b16 %v423, %v421
        %v450 = vpack.c.b16 %v426, %v424
        %v451 = vpack.c.b16 %v427, %v425
        %v452 = vpack.c.b16 %v430, %v428
        %v453 = vpack.c.b16 %v431, %v429
        %v454 = vpack.c.b16 %v434, %v432
        %v455 = vpack.c.b16 %v435, %v433
        %v456 = vpack.c.b16 %v438, %v436
        %v457 = vpack.c.b16 %v439, %v437
        %v458 = vpack.c.b16 %v442, %v440
        %v459 = vpack.c.b16 %v443, %v441
        %476 = vmatprep.subr.bf16.mxu0 %v445
        %477 = vmatpush1.bf16.msra.mxu0 %v444
        %478 = vmatprep.subr.bf16.mxu0 %v447
        %479 = vmatpush1.bf16.msra.mxu0 %v446
        %480 = vmatprep.subr.bf16.mxu0 %v449
        %481 = vmatpush1.bf16.msra.mxu0 %v448
        %482 = vmatprep.subr.bf16.mxu0 %v451
        %483 = vmatpush1.bf16.msra.mxu0 %v450
        %484 = vmatprep.subr.bf16.mxu0 %v453
        %485 = vmatpush1.bf16.msra.mxu0 %v452
        %486 = vmatprep.subr.bf16.mxu0 %v455
        %487 = vmatpush1.bf16.msra.mxu0 %v454
        %488 = vmatprep.subr.bf16.mxu0 %v457
        %489 = vmatpush1.bf16.msra.mxu0 %v456
        %490 = vmatprep.subr.bf16.mxu0 %v459
        %491 = vmatpush1.bf16.msra.mxu0 %v458
        %492 = vmatprep.subr.bf16.mxu0 0
        %493 = vmatpush1.bf16.msra.mxu0 0
        %494 = vmatprep.subr.bf16.mxu0 0
        %495 = vmatpush1.bf16.msra.mxu0 0
        %496 = vmatprep.subr.bf16.mxu0 0
        %497 = vmatpush1.bf16.msra.mxu0 0
        %498 = vmatprep.subr.bf16.mxu0 0
        %499 = vmatpush1.bf16.msra.mxu0 0
        %500 = vmatprep.subr.bf16.mxu0 0
        %501 = vmatpush1.bf16.msra.mxu0 0
        %502 = vmatprep.subr.bf16.mxu0 0
        %503 = vmatpush1.bf16.msra.mxu0 0
        %504 = vmatprep.subr.bf16.mxu0 0
        %505 = vmatpush1.bf16.msra.mxu0 0
        %506 = vmatprep.subr.bf16.mxu0 0
        %507 = vmatpush1.bf16.msra.mxu0 0
        %508 = vmatprep.mubr.bf16.mxu0 0
        %509 = vmatmul.mubr.bf16.gmra.mrb[0].mxu0 %v394
        %v510 = vpop.f32.mrb[0].mxu0
        %v511 = vadd.f32 %v383, %v510
        %v512 = vpop.f32.mrb[0].mxu0
        %v513 = vadd.f32 %v387, %v512
        %v514 = vpop.f32.mrb[0].mxu0
        %v515 = vadd.f32 %v383, %v514
        %v516 = vpop.f32.mrb[0].mxu0
        %v517 = vadd.f32 %v387, %v516
        %518 = vdwg.mxu0
        %v519 = vmax.f32 %v511, 0.0
        %v520 = vmax.f32 %v513, 0.0
        %v521 = vmax.f32 %v515, 0.0
        %v522 = vmax.f32 %v517, 0.0
        %v523 = vmax.f32 %v519, %v521
        %v524 = vrot.slane %v523, 4
        %v525 = vmax.f32 %v523, %v524
        %v526 = vrot.slane %v525, 2
        %v527 = vmax.f32 %v525, %v526
        %v528 = vrot.slane %v527, 1
        %v529 = vmax.f32 %v527, %v528
        %v530 = vmax.f32 %v520, %v522
        %v531 = vrot.slane %v530, 4
        %v532 = vmax.f32 %v530, %v531
        %v533 = vrot.slane %v532, 2
        %v534 = vmax.f32 %v532, %v533
        %v535 = vrot.slane %v534, 1
        %v536 = vmax.f32 %v534, %v535
        %v537 = vld [vmem:[%s348] sm:$0x3]
        %v540 = vcombine.low %v529, %v536
        %v542 = vunpack.c.l.s4 1966171168
        %v543 = vunpack.c.0.s8 %v542
        %v544 = vlaneseq
        %v545 = vshrl.u32 %v544, 7
        %v546 = vsub.s32 %v543, %v545
        %v547 = vrot.slane %v540, %v546
        %v549 = vunpack.c.l.s4 1966171168
        %v550 = vunpack.c.0.s8 %v549
        %v551 = vlaneseq
        %v552 = vshrl.u32 %v551, 7
        %v553 = vsub.s32 %v550, %v552
        %v554 = vrot.slane %v547, %v553
        %v556 = vmax.f32 %v537, %v554
        %v557 = vlaneseq
        %vm558 = vcmp.ge.s32.totalorder %v557, 0
        %vm559 = vcmp.lt.s32.totalorder %v557, 256
        %vm560 = vmand %vm558, %vm559
        %561 = vst.msk [vmem:[%s348] sm:$0x3] %vm560, %v556
        %s562 = smul.u32 2, %s20
        %p563 = scmp.lt.s32.totalorder %s19, 1
        %s564 = scalar_select %p563, %s19, 1
        %p565 = scmp.lt.s32.totalorder %s562, 7
        %s566 = scalar_select %p565, %s562, 7
        %s567 = smul.addr %s564, 8
        %s568 = sadd.s32 %s566, %s567
        %s569 = scalar_lea.vmem %s3, %s568
        // Predicated region
        $region75: #{pointnet_forward.20} parent=65 // pred_check
          %p570 = pneg %p133
        $region76: #{pointnet_forward.20} parent=65 // pred_check_branch
          %572 = sbr.rel (%p570) target = $region78
        $region77: #{pointnet_forward.20} parent=65 // pred_region
          %s573 = smul.u32 2, %s20
        $region78: #{pointnet_forward.20} parent=65 // pred_fallthru
          _
      $region66: #{pointnet_forward.20} parent=5 // pred_fallthru
        _
      %p574 = scmp.le.s32.totalorder 2, %s9
      // Predicated region
      $region79: #{pointnet_forward.20} parent=5 // pred_check
        %p575 = pneg %p574
      $region80: #{pointnet_forward.20} parent=5 // pred_check_branch
        %577 = sbr.rel (%p575) target = $region82
      $region81: #{pointnet_forward.20} parent=5 // pred_region
        %s578 = ssub.s32 %s9, 2
        // Predicated region
        $region83: #{pointnet_forward.20} parent=81 // pred_check
          %p579 = pneg %p139
        $region84: #{pointnet_forward.20} parent=81 // pred_check_branch
          %581 = sbr.rel (%p579) target = $region86
        $region85: #{pointnet_forward.20} parent=81 // pred_region
          %s582 = smul.u32 2, %s23
          %p583 = scmp.lt.s32.totalorder %s22, 1
          %s584 = scalar_select %p583, %s22, 1
          %p585 = scmp.lt.s32.totalorder %s582, 7
          %s586 = scalar_select %p585, %s582, 7
          %s587 = smul.addr %s584, 8
          %s588 = sadd.s32 %s586, %s587
          %s589 = scalar_lea.vmem %s3, %s588
        $region86: #{pointnet_forward.20} parent=81 // pred_fallthru
          _
      $region82: #{pointnet_forward.20} parent=5 // pred_fallthru
        _
    $region6: #{pointnet_forward.20} parent=1 // loop_footer
      %s13 = sadd.s32 1, %s9
    $region7: #{pointnet_forward.20} parent=1 // loop_footer_branch
      %8 = sbr.rel target = $region3
    $region8: #{pointnet_forward.20} parent=1 // loop_exit
      _

// kernel: pointnet_forward.18
$region0: #{pointnet_forward.18}
  #allocation0 [shape = 'u32[]', space=smem, size = 0x4, offset = 0x4, fixed_abs, tag = 'smem constant byte address 0x4 - core index']
  #allocation1 [shape = 'u32[144,128]{1,0:T(1,128)}', space=vmem, size = 0x12000, scoped, tag = 'internal scratch']
  %s0 = inlined_call_operand.vmem [shape: bf16[32,3], index: 0, kind: input, shape index: {}]
  %s1 = inlined_call_operand.vmem [shape: bf16[3,64], index: 1, kind: input, shape index: {}]
  %s2 = inlined_call_operand.vmem [shape: f32[1,64], index: 2, kind: input, shape index: {}]
  %s3 = inlined_call_operand.vmem [shape: bf16[32,64], index: 3, kind: output, shape index: {}]
  %s4 = sld [smem:[#allocation0]]
  $region22: #{pointnet_forward.18} parent=0
    _
  %s6 = ssub.s32 1, %s4
  %s7 = scalar_select 0, %s6, %s4
  // Predicated region
  $region2: #{pointnet_forward.18} parent=0 // pred_check
    _
  $region3: #{pointnet_forward.18} parent=0 // pred_check_branch
    %9 = sbr.rel (0) target = $region5
  $region4: #{pointnet_forward.18} parent=0 // pred_region
    _
  $region5: #{pointnet_forward.18} parent=0 // pred_fallthru
    _
  // Predicated region
  $region6: #{pointnet_forward.18} parent=0 // pred_check
    _
  $region7: #{pointnet_forward.18} parent=0 // pred_check_branch
    %11 = sbr.rel (0) target = $region9
  $region8: #{pointnet_forward.18} parent=0 // pred_region
    _
  $region9: #{pointnet_forward.18} parent=0 // pred_fallthru
    _
  // Predicated region
  $region10: #{pointnet_forward.18} parent=0 // pred_check
    _
  $region11: #{pointnet_forward.18} parent=0 // pred_check_branch
    %13 = sbr.rel (0) target = $region13
  $region12: #{pointnet_forward.18} parent=0 // pred_region
    _
  $region13: #{pointnet_forward.18} parent=0 // pred_fallthru
    _
  %v15 = vld [vmem:[%s0] sm:$0xf]
  %v16 = vld [vmem:[%s0 + $0x4] sm:$0xf]
  %v17 = vld [vmem:[%s0 + $0x8] sm:$0xf]
  %v18 = vld [vmem:[%s0 + $0xc] sm:$0xf]
  %v19 = vld [vmem:[%s1] sm:$0x3]
  %v20 = vld [vmem:[%s2] sm:$0x1]
  %v22 = vlaneseq
  %v23 = vshrl.u32 %v22, 7
  %v24 = vsub.s32 0, %v23
  %v25 = vrot.slane %v20, %v24
  %v31 = vunpack.c.l.b16 %v15
  %v32 = vunpack.c.l.b16 %v16
  %v33 = vunpack.c.l.b16 %v17
  %v34 = vunpack.c.l.b16 %v18
  %v35 = vpack.c.b16 %v32, %v31
  %v36 = vpack.c.b16 %v34, %v33
  %vm37 = vcmask 23552
  %v39 = vsel %vm37, %v35, 0
  %v42 = vsel %vm37, %v36, 0
  %vm44 = vcmask 1040384
  %vm45 = vcmask 1041408
  %v46 = vsel %vm44, 4294967295, 65535
  %v47 = vsel %vm45, %v46, 0
  %v49 = vand.u32 %v19, %v47
  %51 = vmatprep.subr.bf16.mxu0 0
  %52 = vmatpush1.bf16.msra.mxu0 %v49
  %53 = vmatprep.subr.bf16.mxu0 0
  %54 = vmatpush1.bf16.msra.mxu0 0
  %55 = vmatprep.subr.bf16.mxu0 0
  %56 = vmatpush1.bf16.msra.mxu0 0
  %57 = vmatprep.subr.bf16.mxu0 0
  %58 = vmatpush1.bf16.msra.mxu0 0
  %59 = vmatprep.subr.bf16.mxu0 0
  %60 = vmatpush1.bf16.msra.mxu0 0
  %61 = vmatprep.subr.bf16.mxu0 0
  %62 = vmatpush1.bf16.msra.mxu0 0
  %63 = vmatprep.subr.bf16.mxu0 0
  %64 = vmatpush1.bf16.msra.mxu0 0
  %65 = vmatprep.subr.bf16.mxu0 0
  %66 = vmatpush1.bf16.msra.mxu0 0
  %67 = vmatprep.subr.bf16.mxu0 0
  %68 = vmatpush1.bf16.msra.mxu0 0
  %69 = vmatprep.subr.bf16.mxu0 0
  %70 = vmatpush1.bf16.msra.mxu0 0
  %71 = vmatprep.subr.bf16.mxu0 0
  %72 = vmatpush1.bf16.msra.mxu0 0
  %73 = vmatprep.subr.bf16.mxu0 0
  %74 = vmatpush1.bf16.msra.mxu0 0
  %75 = vmatprep.subr.bf16.mxu0 0
  %76 = vmatpush1.bf16.msra.mxu0 0
  %77 = vmatprep.subr.bf16.mxu0 0
  %78 = vmatpush1.bf16.msra.mxu0 0
  %79 = vmatprep.subr.bf16.mxu0 0
  %80 = vmatpush1.bf16.msra.mxu0 0
  %81 = vmatprep.subr.bf16.mxu0 0
  %82 = vmatpush1.bf16.msra.mxu0 0
  %83 = vmatprep.mubr.bf16.mxu0 0
  %84 = vmatmul.mubr.bf16.gmra.mrb[0].mxu0 %v39
  %v85 = vpop.f32.mrb[0].mxu0
  %v86 = vadd.f32 %v25, %v85
  %v87 = vpop.f32.mrb[0].mxu0
  %v88 = vpop.f32.mrb[0].mxu0
  %v89 = vadd.f32 %v25, %v88
  %v90 = vpop.f32.mrb[0].mxu0
  %91 = vmatprep.mubr.bf16.mxu0 0
  %92 = vmatmul.mubr.bf16.gmra.mrb[0].mxu0 %v42
  %v93 = vpop.f32.mrb[0].mxu0
  %v94 = vadd.f32 %v25, %v93
  %v95 = vpop.f32.mrb[0].mxu0
  %v96 = vpop.f32.mrb[0].mxu0
  %v97 = vadd.f32 %v25, %v96
  %v98 = vpop.f32.mrb[0].mxu0
  %99 = vdwg.mxu0
  %v100 = vmax.f32 %v86, 0.0
  %v101 = vmax.f32 %v89, 0.0
  %v102 = vmax.f32 %v94, 0.0
  %v103 = vmax.f32 %v97, 0.0
  %v104 = vpack.c.bf16 %v101, %v100
  %v105 = vpack.c.bf16 %v103, %v102
  %v108 = vunpack.c.l.b16 %v104
  %v109 = vunpack.c.h.b16 %v104
  %v110 = vunpack.c.l.b16 %v105
  %v111 = vunpack.c.h.b16 %v105
  %v112 = vpack.c.b16 %v108, %v108
  %v113 = vpack.c.b16 %v109, %v109
  %v114 = vpack.c.b16 %v110, %v110
  %v115 = vpack.c.b16 %v111, %v111
  %vm120 = vcmask 519168
  %121 = vst.msk [vmem:[%s3] sm:$0xf] %vm120, %v112
  %122 = vst.msk [vmem:[%s3 + $0x4] sm:$0xf] %vm120, %v113
  %123 = vst.msk [vmem:[%s3 + $0x8] sm:$0xf] %vm120, %v114
  %124 = vst.msk [vmem:[%s3 + $0xc] sm:$0xf] %vm120, %v115
  // Predicated region
  $region14: #{pointnet_forward.18} parent=0 // pred_check
    _
  $region15: #{pointnet_forward.18} parent=0 // pred_check_branch
    %126 = sbr.rel (0) target = $region17
  $region16: #{pointnet_forward.18} parent=0 // pred_region
    _
  $region17: #{pointnet_forward.18} parent=0 // pred_fallthru
    _
  // Predicated region
  $region18: #{pointnet_forward.18} parent=0 // pred_check
    _
  $region19: #{pointnet_forward.18} parent=0 // pred_check_branch
    %128 = sbr.rel (0) target = $region21
  $region20: #{pointnet_forward.18} parent=0 // pred_region
    _
  $region21: #{pointnet_forward.18} parent=0 // pred_fallthru
    _

// kernel: pointnet_forward.19
$region0: #{pointnet_forward.19}
  #allocation0 [shape = 'u32[]', space=smem, size = 0x4, offset = 0x4, fixed_abs, tag = 'smem constant byte address 0x4 - core index']
  #allocation1 [shape = 'u32[144,128]{1,0:T(1,128)}', space=vmem, size = 0x12000, scoped, tag = 'internal scratch']
  %s0 = inlined_call_operand.vmem [shape: bf16[32,64], index: 0, kind: input, shape index: {}]
  %s1 = inlined_call_operand.vmem [shape: bf16[64,128], index: 1, kind: input, shape index: {}]
  %s2 = inlined_call_operand.vmem [shape: f32[1,128], index: 2, kind: input, shape index: {}]
  %s3 = inlined_call_operand.vmem [shape: bf16[32,128], index: 3, kind: output, shape index: {}]
  %s4 = sld [smem:[#allocation0]]
  $region22: #{pointnet_forward.19} parent=0
    _
  %s6 = ssub.s32 1, %s4
  %s7 = scalar_select 0, %s6, %s4
  // Predicated region
  $region2: #{pointnet_forward.19} parent=0 // pred_check
    _
  $region3: #{pointnet_forward.19} parent=0 // pred_check_branch
    %9 = sbr.rel (0) target = $region5
  $region4: #{pointnet_forward.19} parent=0 // pred_region
    _
  $region5: #{pointnet_forward.19} parent=0 // pred_fallthru
    _
  // Predicated region
  $region6: #{pointnet_forward.19} parent=0 // pred_check
    _
  $region7: #{pointnet_forward.19} parent=0 // pred_check_branch
    %11 = sbr.rel (0) target = $region9
  $region8: #{pointnet_forward.19} parent=0 // pred_region
    _
  $region9: #{pointnet_forward.19} parent=0 // pred_fallthru
    _
  // Predicated region
  $region10: #{pointnet_forward.19} parent=0 // pred_check
    _
  $region11: #{pointnet_forward.19} parent=0 // pred_check_branch
    %13 = sbr.rel (0) target = $region13
  $region12: #{pointnet_forward.19} parent=0 // pred_region
    _
  $region13: #{pointnet_forward.19} parent=0 // pred_fallthru
    _
  %v15 = vld [vmem:[%s0] sm:$0xf]
  %v16 = vld [vmem:[%s0 + $0x4] sm:$0xf]
  %v17 = vld [vmem:[%s0 + $0x8] sm:$0xf]
  %v18 = vld [vmem:[%s0 + $0xc] sm:$0xf]
  %v19 = vld [vmem:[%s1] sm:$0xf]
  %v20 = vld [vmem:[%s1 + $0x4] sm:$0xf]
  %v21 = vld [vmem:[%s1 + $0x8] sm:$0xf]
  %v22 = vld [vmem:[%s1 + $0xc] sm:$0xf]
  %v23 = vld [vmem:[%s1 + $0x10] sm:$0xf]
  %v24 = vld [vmem:[%s1 + $0x14] sm:$0xf]
  %v25 = vld [vmem:[%s1 + $0x18] sm:$0xf]
  %v26 = vld [vmem:[%s1 + $0x1c] sm:$0xf]
  %v27 = vld [vmem:[%s2] sm:$0x1]
  %v29 = vlaneseq
  %v30 = vshrl.u32 %v29, 7
  %v31 = vsub.s32 0, %v30
  %v32 = vrot.slane %v27, %v31
  %v38 = vunpack.c.l.b16 %v15
  %v39 = vunpack.c.l.b16 %v16
  %v40 = vunpack.c.l.b16 %v17
  %v41 = vunpack.c.l.b16 %v18
  %v42 = vpack.c.b16 %v39, %v38
  %v43 = vpack.c.b16 %v41, %v40
  %v52 = vunpack.c.l.b16 %v19
  %v53 = vunpack.c.l.b16 %v20
  %v54 = vunpack.c.l.b16 %v21
  %v55 = vunpack.c.l.b16 %v22
  %v56 = vunpack.c.l.b16 %v23
  %v57 = vunpack.c.l.b16 %v24
  %v58 = vunpack.c.l.b16 %v25
  %v59 = vunpack.c.l.b16 %v26
  %v60 = vpack.c.b16 %v53, %v52
  %v61 = vpack.c.b16 %v55, %v54
  %v62 = vpack.c.b16 %v57, %v56
  %v63 = vpack.c.b16 %v59, %v58
  %vm68 = vcmask 523264
  %v70 = vsel %vm68, %v42, 0
  %v73 = vsel %vm68, %v43, 0
  %75 = vmatprep.subr.bf16.mxu0 0
  %76 = vmatpush1.bf16.msra.mxu0 %v60
  %77 = vmatprep.subr.bf16.mxu0 0
  %78 = vmatpush1.bf16.msra.mxu0 %v61
  %79 = vmatprep.subr.bf16.mxu0 0
  %80 = vmatpush1.bf16.msra.mxu0 %v62
  %81 = vmatprep.subr.bf16.mxu0 0
  %82 = vmatpush1.bf16.msra.mxu0 %v63
  %83 = vmatprep.subr.bf16.mxu0 0
  %84 = vmatpush1.bf16.msra.mxu0 0
  %85 = vmatprep.subr.bf16.mxu0 0
  %86 = vmatpush1.bf16.msra.mxu0 0
  %87 = vmatprep.subr.bf16.mxu0 0
  %88 = vmatpush1.bf16.msra.mxu0 0
  %89 = vmatprep.subr.bf16.mxu0 0
  %90 = vmatpush1.bf16.msra.mxu0 0
  %91 = vmatprep.subr.bf16.mxu0 0
  %92 = vmatpush1.bf16.msra.mxu0 0
  %93 = vmatprep.subr.bf16.mxu0 0
  %94 = vmatpush1.bf16.msra.mxu0 0
  %95 = vmatprep.subr.bf16.mxu0 0
  %96 = vmatpush1.bf16.msra.mxu0 0
  %97 = vmatprep.subr.bf16.mxu0 0
  %98 = vmatpush1.bf16.msra.mxu0 0
  %99 = vmatprep.subr.bf16.mxu0 0
  %100 = vmatpush1.bf16.msra.mxu0 0
  %101 = vmatprep.subr.bf16.mxu0 0
  %102 = vmatpush1.bf16.msra.mxu0 0
  %103 = vmatprep.subr.bf16.mxu0 0
  %104 = vmatpush1.bf16.msra.mxu0 0
  %105 = vmatprep.subr.bf16.mxu0 0
  %106 = vmatpush1.bf16.msra.mxu0 0
  %107 = vmatprep.mubr.bf16.mxu0 0
  %108 = vmatmul.mubr.bf16.gmra.mrb[0].mxu0 %v70
  %v109 = vpop.f32.mrb[0].mxu0
  %v110 = vadd.f32 %v32, %v109
  %v111 = vpop.f32.mrb[0].mxu0
  %v112 = vpop.f32.mrb[0].mxu0
  %v113 = vadd.f32 %v32, %v112
  %v114 = vpop.f32.mrb[0].mxu0
  %115 = vmatprep.mubr.bf16.mxu0 0
  %116 = vmatmul.mubr.bf16.gmra.mrb[0].mxu0 %v73
  %v117 = vpop.f32.mrb[0].mxu0
  %v118 = vadd.f32 %v32, %v117
  %v119 = vpop.f32.mrb[0].mxu0
  %v120 = vpop.f32.mrb[0].mxu0
  %v121 = vadd.f32 %v32, %v120
  %v122 = vpop.f32.mrb[0].mxu0
  %123 = vdwg.mxu0
  %v124 = vmax.f32 %v110, 0.0
  %v125 = vmax.f32 %v113, 0.0
  %v126 = vmax.f32 %v118, 0.0
  %v127 = vmax.f32 %v121, 0.0
  %v128 = vpack.c.bf16 %v125, %v124
  %v129 = vpack.c.bf16 %v127, %v126
  %v132 = vunpack.c.l.b16 %v128
  %v133 = vunpack.c.h.b16 %v128
  %v134 = vunpack.c.l.b16 %v129
  %v135 = vunpack.c.h.b16 %v129
  %v136 = vpack.c.b16 %v132, %v132
  %v137 = vpack.c.b16 %v133, %v133
  %v138 = vpack.c.b16 %v134, %v134
  %v139 = vpack.c.b16 %v135, %v135
  %144 = vst [vmem:[%s3] sm:$0xf] %v136
  %145 = vst [vmem:[%s3 + $0x4] sm:$0xf] %v137
  %146 = vst [vmem:[%s3 + $0x8] sm:$0xf] %v138
  %147 = vst [vmem:[%s3 + $0xc] sm:$0xf] %v139
  // Predicated region
  $region14: #{pointnet_forward.19} parent=0 // pred_check
    _
  $region15: #{pointnet_forward.19} parent=0 // pred_check_branch
    %149 = sbr.rel (0) target = $region17
  $region16: #{pointnet_forward.19} parent=0 // pred_region
    _
  $region17: #{pointnet_forward.19} parent=0 // pred_fallthru
    _
  // Predicated region
  $region18: #{pointnet_forward.19} parent=0 // pred_check
    _
  $region19: #{pointnet_forward.19} parent=0 // pred_check_branch
    %151 = sbr.rel (0) target = $region21
  $region20: #{pointnet_forward.19} parent=0 // pred_region
    _
  $region21: #{pointnet_forward.19} parent=0 // pred_fallthru
    _

// kernel: pointnet_forward.22
$region0: #{pointnet_forward.22}
  #allocation0 [shape = 'u32[]', space=smem, size = 0x4, offset = 0x4, fixed_abs, tag = 'smem constant byte address 0x4 - core index']
  #allocation1 [shape = 'u32[144,128]{1,0:T(1,128)}', space=vmem, size = 0x12000, scoped, tag = 'internal scratch']
  %s0 = inlined_call_operand.vmem [shape: f32[2,512], index: 0, kind: input, shape index: {}]
  %s1 = inlined_call_operand.vmem [shape: f32[512,256], index: 1, kind: input, shape index: {}]
  %s2 = inlined_call_operand.vmem [shape: f32[1,256], index: 2, kind: input, shape index: {}]
  %s3 = inlined_call_operand.vmem [shape: f32[2,256], index: 3, kind: output, shape index: {}]
  %s4 = sld [smem:[#allocation0]]
  $region22: #{pointnet_forward.22} parent=0
    _
  %s6 = ssub.s32 1, %s4
  %s7 = scalar_select 0, %s6, %s4
  // Predicated region
  $region2: #{pointnet_forward.22} parent=0 // pred_check
    _
  $region3: #{pointnet_forward.22} parent=0 // pred_check_branch
    %9 = sbr.rel (0) target = $region5
  $region4: #{pointnet_forward.22} parent=0 // pred_region
    _
  $region5: #{pointnet_forward.22} parent=0 // pred_fallthru
    _
  // Predicated region
  $region6: #{pointnet_forward.22} parent=0 // pred_check
    _
  $region7: #{pointnet_forward.22} parent=0 // pred_check_branch
    %11 = sbr.rel (0) target = $region9
  $region8: #{pointnet_forward.22} parent=0 // pred_region
    _
  $region9: #{pointnet_forward.22} parent=0 // pred_fallthru
    _
  // Predicated region
  $region10: #{pointnet_forward.22} parent=0 // pred_check
    _
  $region11: #{pointnet_forward.22} parent=0 // pred_check_branch
    %13 = sbr.rel (0) target = $region13
  $region12: #{pointnet_forward.22} parent=0 // pred_region
    _
  $region13: #{pointnet_forward.22} parent=0 // pred_fallthru
    _
  %v14 = vld [vmem:[%s0] sm:$0xff]
  %v15 = vld [vmem:[%s1] sm:$0xff]
  %v16 = vld [vmem:[%s1 + $0x8] sm:$0xff]
  %v17 = vld [vmem:[%s1 + $0x10] sm:$0xff]
  %v18 = vld [vmem:[%s1 + $0x18] sm:$0xff]
  %v19 = vld [vmem:[%s1 + $0x20] sm:$0xff]
  %v20 = vld [vmem:[%s1 + $0x28] sm:$0xff]
  %v21 = vld [vmem:[%s1 + $0x30] sm:$0xff]
  %v22 = vld [vmem:[%s1 + $0x38] sm:$0xff]
  %v23 = vld [vmem:[%s1 + $0x40] sm:$0xff]
  %v24 = vld [vmem:[%s1 + $0x48] sm:$0xff]
  %v25 = vld [vmem:[%s1 + $0x50] sm:$0xff]
  %v26 = vld [vmem:[%s1 + $0x58] sm:$0xff]
  %v27 = vld [vmem:[%s1 + $0x60] sm:$0xff]
  %v28 = vld [vmem:[%s1 + $0x68] sm:$0xff]
  %v29 = vld [vmem:[%s1 + $0x70] sm:$0xff]
  %v30 = vld [vmem:[%s1 + $0x78] sm:$0xff]
  %v31 = vld [vmem:[%s1 + $0x80] sm:$0xff]
  %v32 = vld [vmem:[%s1 + $0x88] sm:$0xff]
  %v33 = vld [vmem:[%s1 + $0x90] sm:$0xff]
  %v34 = vld [vmem:[%s1 + $0x98] sm:$0xff]
  %v35 = vld [vmem:[%s1 + $0xa0] sm:$0xff]
  %v36 = vld [vmem:[%s1 + $0xa8] sm:$0xff]
  %v37 = vld [vmem:[%s1 + $0xb0] sm:$0xff]
  %v38 = vld [vmem:[%s1 + $0xb8] sm:$0xff]
  %v39 = vld [vmem:[%s1 + $0xc0] sm:$0xff]
  %v40 = vld [vmem:[%s1 + $0xc8] sm:$0xff]
  %v41 = vld [vmem:[%s1 + $0xd0] sm:$0xff]
  %v42 = vld [vmem:[%s1 + $0xd8] sm:$0xff]
  %v43 = vld [vmem:[%s1 + $0xe0] sm:$0xff]
  %v44 = vld [vmem:[%s1 + $0xe8] sm:$0xff]
  %v45 = vld [vmem:[%s1 + $0xf0] sm:$0xff]
  %v46 = vld [vmem:[%s1 + $0xf8] sm:$0xff]
  %v47 = vld [vmem:[%s1 + $0x100] sm:$0xff]
  %v48 = vld [vmem:[%s1 + $0x108] sm:$0xff]
  %v49 = vld [vmem:[%s1 + $0x110] sm:$0xff]
  %v50 = vld [vmem:[%s1 + $0x118] sm:$0xff]
  %v51 = vld [vmem:[%s1 + $0x120] sm:$0xff]
  %v52 = vld [vmem:[%s1 + $0x128] sm:$0xff]
  %v53 = vld [vmem:[%s1 + $0x130] sm:$0xff]
  %v54 = vld [vmem:[%s1 + $0x138] sm:$0xff]
  %v55 = vld [vmem:[%s1 + $0x140] sm:$0xff]
  %v56 = vld [vmem:[%s1 + $0x148] sm:$0xff]
  %v57 = vld [vmem:[%s1 + $0x150] sm:$0xff]
  %v58 = vld [vmem:[%s1 + $0x158] sm:$0xff]
  %v59 = vld [vmem:[%s1 + $0x160] sm:$0xff]
  %v60 = vld [vmem:[%s1 + $0x168] sm:$0xff]
  %v61 = vld [vmem:[%s1 + $0x170] sm:$0xff]
  %v62 = vld [vmem:[%s1 + $0x178] sm:$0xff]
  %v63 = vld [vmem:[%s1 + $0x180] sm:$0xff]
  %v64 = vld [vmem:[%s1 + $0x188] sm:$0xff]
  %v65 = vld [vmem:[%s1 + $0x190] sm:$0xff]
  %v66 = vld [vmem:[%s1 + $0x198] sm:$0xff]
  %v67 = vld [vmem:[%s1 + $0x1a0] sm:$0xff]
  %v68 = vld [vmem:[%s1 + $0x1a8] sm:$0xff]
  %v69 = vld [vmem:[%s1 + $0x1b0] sm:$0xff]
  %v70 = vld [vmem:[%s1 + $0x1b8] sm:$0xff]
  %v71 = vld [vmem:[%s1 + $0x1c0] sm:$0xff]
  %v72 = vld [vmem:[%s1 + $0x1c8] sm:$0xff]
  %v73 = vld [vmem:[%s1 + $0x1d0] sm:$0xff]
  %v74 = vld [vmem:[%s1 + $0x1d8] sm:$0xff]
  %v75 = vld [vmem:[%s1 + $0x1e0] sm:$0xff]
  %v76 = vld [vmem:[%s1 + $0x1e8] sm:$0xff]
  %v77 = vld [vmem:[%s1 + $0x1f0] sm:$0xff]
  %v78 = vld [vmem:[%s1 + $0x1f8] sm:$0xff]
  %v79 = vld [vmem:[%s1 + $0x200] sm:$0xff]
  %v80 = vld [vmem:[%s1 + $0x208] sm:$0xff]
  %v81 = vld [vmem:[%s1 + $0x210] sm:$0xff]
  %v82 = vld [vmem:[%s1 + $0x218] sm:$0xff]
  %v83 = vld [vmem:[%s1 + $0x220] sm:$0xff]
  %v84 = vld [vmem:[%s1 + $0x228] sm:$0xff]
  %v85 = vld [vmem:[%s1 + $0x230] sm:$0xff]
  %v86 = vld [vmem:[%s1 + $0x238] sm:$0xff]
  %v87 = vld [vmem:[%s1 + $0x240] sm:$0xff]
  %v88 = vld [vmem:[%s1 + $0x248] sm:$0xff]
  %v89 = vld [vmem:[%s1 + $0x250] sm:$0xff]
  %v90 = vld [vmem:[%s1 + $0x258] sm:$0xff]
  %v91 = vld [vmem:[%s1 + $0x260] sm:$0xff]
  %v92 = vld [vmem:[%s1 + $0x268] sm:$0xff]
  %v93 = vld [vmem:[%s1 + $0x270] sm:$0xff]
  %v94 = vld [vmem:[%s1 + $0x278] sm:$0xff]
  %v95 = vld [vmem:[%s1 + $0x280] sm:$0xff]
  %v96 = vld [vmem:[%s1 + $0x288] sm:$0xff]
  %v97 = vld [vmem:[%s1 + $0x290] sm:$0xff]
  %v98 = vld [vmem:[%s1 + $0x298] sm:$0xff]
  %v99 = vld [vmem:[%s1 + $0x2a0] sm:$0xff]
  %v100 = vld [vmem:[%s1 + $0x2a8] sm:$0xff]
  %v101 = vld [vmem:[%s1 + $0x2b0] sm:$0xff]
  %v102 = vld [vmem:[%s1 + $0x2b8] sm:$0xff]
  %v103 = vld [vmem:[%s1 + $0x2c0] sm:$0xff]
  %v104 = vld [vmem:[%s1 + $0x2c8] sm:$0xff]
  %v105 = vld [vmem:[%s1 + $0x2d0] sm:$0xff]
  %v106 = vld [vmem:[%s1 + $0x2d8] sm:$0xff]
  %v107 = vld [vmem:[%s1 + $0x2e0] sm:$0xff]
  %v108 = vld [vmem:[%s1 + $0x2e8] sm:$0xff]
  %v109 = vld [vmem:[%s1 + $0x2f0] sm:$0xff]
  %v110 = vld [vmem:[%s1 + $0x2f8] sm:$0xff]
  %v111 = vld [vmem:[%s1 + $0x300] sm:$0xff]
  %v112 = vld [vmem:[%s1 + $0x308] sm:$0xff]
  %v113 = vld [vmem:[%s1 + $0x310] sm:$0xff]
  %v114 = vld [vmem:[%s1 + $0x318] sm:$0xff]
  %v115 = vld [vmem:[%s1 + $0x320] sm:$0xff]
  %v116 = vld [vmem:[%s1 + $0x328] sm:$0xff]
  %v117 = vld [vmem:[%s1 + $0x330] sm:$0xff]
  %v118 = vld [vmem:[%s1 + $0x338] sm:$0xff]
  %v119 = vld [vmem:[%s1 + $0x340] sm:$0xff]
  %v120 = vld [vmem:[%s1 + $0x348] sm:$0xff]
  %v121 = vld [vmem:[%s1 + $0x350] sm:$0xff]
  %v122 = vld [vmem:[%s1 + $0x358] sm:$0xff]
  %v123 = vld [vmem:[%s1 + $0x360] sm:$0xff]
  %v124 = vld [vmem:[%s1 + $0x368] sm:$0xff]
  %v125 = vld [vmem:[%s1 + $0x370] sm:$0xff]
  %v126 = vld [vmem:[%s1 + $0x378] sm:$0xff]
  %v127 = vld [vmem:[%s1 + $0x380] sm:$0xff]
  %v128 = vld [vmem:[%s1 + $0x388] sm:$0xff]
  %v129 = vld [vmem:[%s1 + $0x390] sm:$0xff]
  %v130 = vld [vmem:[%s1 + $0x398] sm:$0xff]
  %v131 = vld [vmem:[%s1 + $0x3a0] sm:$0xff]
  %v132 = vld [vmem:[%s1 + $0x3a8] sm:$0xff]
  %v133 = vld [vmem:[%s1 + $0x3b0] sm:$0xff]
  %v134 = vld [vmem:[%s1 + $0x3b8] sm:$0xff]
  %v135 = vld [vmem:[%s1 + $0x3c0] sm:$0xff]
  %v136 = vld [vmem:[%s1 + $0x3c8] sm:$0xff]
  %v137 = vld [vmem:[%s1 + $0x3d0] sm:$0xff]
  %v138 = vld [vmem:[%s1 + $0x3d8] sm:$0xff]
  %v139 = vld [vmem:[%s1 + $0x3e0] sm:$0xff]
  %v140 = vld [vmem:[%s1 + $0x3e8] sm:$0xff]
  %v141 = vld [vmem:[%s1 + $0x3f0] sm:$0xff]
  %v142 = vld [vmem:[%s1 + $0x3f8] sm:$0xff]
  %v143 = vld [vmem:[%s2] sm:$0x3]
  %v145 = vlaneseq
  %v146 = vshrl.u32 %v145, 7
  %v147 = vsub.s32 0, %v146
  %v148 = vrot.slane %v143, %v147
  %v149 = vlaneseq
  %v150 = vshrl.u32 %v149, 7
  %v151 = vsub.s32 1, %v150
  %v152 = vrot.slane %v143, %v151
  %v156 = vcombine.high %v14, %v14
  %v158 = vunpack.c.l.s4 1983009808
  %v159 = vunpack.c.0.s8 %v158
  %v160 = vlaneseq
  %v161 = vshrl.u32 %v160, 7
  %v162 = vsub.s32 %v159, %v161
  %v163 = vrot.slane %v14, %v162
  %v165 = vunpack.c.l.s4 1983009808
  %v166 = vunpack.c.0.s8 %v165
  %v167 = vlaneseq
  %v168 = vshrl.u32 %v167, 7
  %v169 = vsub.s32 %v166, %v168
  %v170 = vrot.slane %v156, %v169
  %v171 = vcombine.high %v163, %v163
  %v172 = vcombine.high %v170, %v170
  %177 = vmatprep.subr.mxu0 %v16
  %178 = vmatpush1.msra.mxu0 %v15
  %179 = vmatprep.subr.mxu0 %v18
  %180 = vmatpush1.msra.mxu0 %v17
  %181 = vmatprep.subr.mxu0 %v20
  %182 = vmatpush1.msra.mxu0 %v19
  %183 = vmatprep.subr.mxu0 %v22
  %184 = vmatpush1.msra.mxu0 %v21
  %185 = vmatprep.subr.mxu0 %v24
  %186 = vmatpush1.msra.mxu0 %v23
  %187 = vmatprep.subr.mxu0 %v26
  %188 = vmatpush1.msra.mxu0 %v25
  %189 = vmatprep.subr.mxu0 %v28
  %190 = vmatpush1.msra.mxu0 %v27
  %191 = vmatprep.subr.mxu0 %v30
  %192 = vmatpush1.msra.mxu0 %v29
  %193 = vmatprep.subr.mxu0 %v32
  %194 = vmatpush1.msra.mxu0 %v31
  %195 = vmatprep.subr.mxu0 %v34
  %196 = vmatpush1.msra.mxu0 %v33
  %197 = vmatprep.subr.mxu0 %v36
  %198 = vmatpush1.msra.mxu0 %v35
  %199 = vmatprep.subr.mxu0 %v38
  %200 = vmatpush1.msra.mxu0 %v37
  %201 = vmatprep.subr.mxu0 %v40
  %202 = vmatpush1.msra.mxu0 %v39
  %203 = vmatprep.subr.mxu0 %v42
  %204 = vmatpush1.msra.mxu0 %v41
  %205 = vmatprep.subr.mxu0 %v44
  %206 = vmatpush1.msra.mxu0 %v43
  %207 = vmatprep.subr.mxu0 %v46
  %208 = vmatpush1.msra.mxu0 %v45
  %209 = vmatprep.subr.mxu0 %v48
  %210 = vmatpush1.msra.mxu0 %v47
  %211 = vmatprep.subr.mxu0 %v50
  %212 = vmatpush1.msra.mxu0 %v49
  %213 = vmatprep.subr.mxu0 %v52
  %214 = vmatpush1.msra.mxu0 %v51
  %215 = vmatprep.subr.mxu0 %v54
  %216 = vmatpush1.msra.mxu0 %v53
  %217 = vmatprep.subr.mxu0 %v56
  %218 = vmatpush1.msra.mxu0 %v55
  %219 = vmatprep.subr.mxu0 %v58
  %220 = vmatpush1.msra.mxu0 %v57
  %221 = vmatprep.subr.mxu0 %v60
  %222 = vmatpush1.msra.mxu0 %v59
  %223 = vmatprep.subr.mxu0 %v62
  %224 = vmatpush1.msra.mxu0 %v61
  %225 = vmatprep.subr.mxu0 %v64
  %226 = vmatpush1.msra.mxu0 %v63
  %227 = vmatprep.subr.mxu0 %v66
  %228 = vmatpush1.msra.mxu0 %v65
  %229 = vmatprep.subr.mxu0 %v68
  %230 = vmatpush1.msra.mxu0 %v67
  %231 = vmatprep.subr.mxu0 %v70
  %232 = vmatpush1.msra.mxu0 %v69
  %233 = vmatprep.subr.mxu0 %v72
  %234 = vmatpush1.msra.mxu0 %v71
  %235 = vmatprep.subr.mxu0 %v74
  %236 = vmatpush1.msra.mxu0 %v73
  %237 = vmatprep.subr.mxu0 %v76
  %238 = vmatpush1.msra.mxu0 %v75
  %239 = vmatprep.subr.mxu0 %v78
  %240 = vmatpush1.msra.mxu0 %v77
  %241 = vmatprep.mubr.f32.mxu0 %v171
  %242 = vmatmul.mubr.f32.gmra.mrb[0].mxu0 %v163
  %v243 = vpop.f32.mrb[0].mxu0
  %v244 = vadd.f32 %v148, %v243
  %v245 = vpop.f32.mrb[0].mxu0
  %v246 = vadd.f32 %v152, %v245
  %247 = vdwg.mxu0
  %248 = vmatprep.subr.mxu0 %v80
  %249 = vmatpush1.msra.mxu0 %v79
  %250 = vmatprep.subr.mxu0 %v82
  %251 = vmatpush1.msra.mxu0 %v81
  %252 = vmatprep.subr.mxu0 %v84
  %253 = vmatpush1.msra.mxu0 %v83
  %254 = vmatprep.subr.mxu0 %v86
  %255 = vmatpush1.msra.mxu0 %v85
  %256 = vmatprep.subr.mxu0 %v88
  %257 = vmatpush1.msra.mxu0 %v87
  %258 = vmatprep.subr.mxu0 %v90
  %259 = vmatpush1.msra.mxu0 %v89
  %260 = vmatprep.subr.mxu0 %v92
  %261 = vmatpush1.msra.mxu0 %v91
  %262 = vmatprep.subr.mxu0 %v94
  %263 = vmatpush1.msra.mxu0 %v93
  %264 = vmatprep.subr.mxu0 %v96
  %265 = vmatpush1.msra.mxu0 %v95
  %266 = vmatprep.subr.mxu0 %v98
  %267 = vmatpush1.msra.mxu0 %v97
  %268 = vmatprep.subr.mxu0 %v100
  %269 = vmatpush1.msra.mxu0 %v99
  %270 = vmatprep.subr.mxu0 %v102
  %271 = vmatpush1.msra.mxu0 %v101
  %272 = vmatprep.subr.mxu0 %v104
  %273 = vmatpush1.msra.mxu0 %v103
  %274 = vmatprep.subr.mxu0 %v106
  %275 = vmatpush1.msra.mxu0 %v105
  %276 = vmatprep.subr.mxu0 %v108
  %277 = vmatpush1.msra.mxu0 %v107
  %278 = vmatprep.subr.mxu0 %v110
  %279 = vmatpush1.msra.mxu0 %v109
  %280 = vmatprep.subr.mxu0 %v112
  %281 = vmatpush1.msra.mxu0 %v111
  %282 = vmatprep.subr.mxu0 %v114
  %283 = vmatpush1.msra.mxu0 %v113
  %284 = vmatprep.subr.mxu0 %v116
  %285 = vmatpush1.msra.mxu0 %v115
  %286 = vmatprep.subr.mxu0 %v118
  %287 = vmatpush1.msra.mxu0 %v117
  %288 = vmatprep.subr.mxu0 %v120
  %289 = vmatpush1.msra.mxu0 %v119
  %290 = vmatprep.subr.mxu0 %v122
  %291 = vmatpush1.msra.mxu0 %v121
  %292 = vmatprep.subr.mxu0 %v124
  %293 = vmatpush1.msra.mxu0 %v123
  %294 = vmatprep.subr.mxu0 %v126
  %295 = vmatpush1.msra.mxu0 %v125
  %296 = vmatprep.subr.mxu0 %v128
  %297 = vmatpush1.msra.mxu0 %v127
  %298 = vmatprep.subr.mxu0 %v130
  %299 = vmatpush1.msra.mxu0 %v129
  %300 = vmatprep.subr.mxu0 %v132
  %301 = vmatpush1.msra.mxu0 %v131
  %302 = vmatprep.subr.mxu0 %v134
  %303 = vmatpush1.msra.mxu0 %v133
  %304 = vmatprep.subr.mxu0 %v136
  %305 = vmatpush1.msra.mxu0 %v135
  %306 = vmatprep.subr.mxu0 %v138
  %307 = vmatpush1.msra.mxu0 %v137
  %308 = vmatprep.subr.mxu0 %v140
  %309 = vmatpush1.msra.mxu0 %v139
  %310 = vmatprep.subr.mxu0 %v142
  %311 = vmatpush1.msra.mxu0 %v141
  %312 = vmatprep.mubr.f32.mxu0 %v172
  %313 = vmatmul.mubr.f32.gmra.mrb[0].mxu0 %v170
  %v314 = vpop.f32.mrb[0].mxu0
  %v315 = vadd.f32 %v244, %v314
  %v316 = vpop.f32.mrb[0].mxu0
  %v317 = vadd.f32 %v246, %v316
  %318 = vdwg.mxu0
  %v319 = vmax.f32 %v315, 0.0
  %v320 = vmax.f32 %v317, 0.0
  %v323 = vcombine.low %v319, %v320
  %v325 = vunpack.c.l.s4 1983009808
  %v326 = vunpack.c.0.s8 %v325
  %v327 = vlaneseq
  %v328 = vshrl.u32 %v327, 7
  %v329 = vsub.s32 %v326, %v328
  %v330 = vrot.slane %v323, %v329
  %332 = vst [vmem:[%s3] sm:$0xf] %v330
  // Predicated region
  $region14: #{pointnet_forward.22} parent=0 // pred_check
    _
  $region15: #{pointnet_forward.22} parent=0 // pred_check_branch
    %334 = sbr.rel (0) target = $region17
  $region16: #{pointnet_forward.22} parent=0 // pred_region
    _
  $region17: #{pointnet_forward.22} parent=0 // pred_fallthru
    _
  // Predicated region
  $region18: #{pointnet_forward.22} parent=0 // pred_check
    _
  $region19: #{pointnet_forward.22} parent=0 // pred_check_branch
    %336 = sbr.rel (0) target = $region21
  $region20: #{pointnet_forward.22} parent=0 // pred_region
    _
  $region21: #{pointnet_forward.22} parent=0 // pred_fallthru
    _

// kernel: pointnet_forward.23
$region0: #{pointnet_forward.23}
  #allocation0 [shape = 'u32[]', space=smem, size = 0x4, offset = 0x4, fixed_abs, tag = 'smem constant byte address 0x4 - core index']
  #allocation1 [shape = 'u32[144,128]{1,0:T(1,128)}', space=vmem, size = 0x12000, scoped, tag = 'internal scratch']
  %s0 = inlined_call_operand.vmem [shape: f32[2,256], index: 0, kind: input, shape index: {}]
  %s1 = inlined_call_operand.vmem [shape: f32[256,9], index: 1, kind: input, shape index: {}]
  %s2 = inlined_call_operand.vmem [shape: f32[1,9], index: 2, kind: input, shape index: {}]
  %s3 = inlined_call_operand.vmem [shape: f32[2,9], index: 3, kind: output, shape index: {}]
  %s4 = sld [smem:[#allocation0]]
  $region22: #{pointnet_forward.23} parent=0
    _
  %s6 = ssub.s32 1, %s4
  %s7 = scalar_select 0, %s6, %s4
  // Predicated region
  $region2: #{pointnet_forward.23} parent=0 // pred_check
    _
  $region3: #{pointnet_forward.23} parent=0 // pred_check_branch
    %9 = sbr.rel (0) target = $region5
  $region4: #{pointnet_forward.23} parent=0 // pred_region
    _
  $region5: #{pointnet_forward.23} parent=0 // pred_fallthru
    _
  // Predicated region
  $region6: #{pointnet_forward.23} parent=0 // pred_check
    _
  $region7: #{pointnet_forward.23} parent=0 // pred_check_branch
    %11 = sbr.rel (0) target = $region9
  $region8: #{pointnet_forward.23} parent=0 // pred_region
    _
  $region9: #{pointnet_forward.23} parent=0 // pred_fallthru
    _
  // Predicated region
  $region10: #{pointnet_forward.23} parent=0 // pred_check
    _
  $region11: #{pointnet_forward.23} parent=0 // pred_check_branch
    %13 = sbr.rel (0) target = $region13
  $region12: #{pointnet_forward.23} parent=0 // pred_region
    _
  $region13: #{pointnet_forward.23} parent=0 // pred_fallthru
    _
  %v14 = vld [vmem:[%s0] sm:$0xf]
  %v15 = vld [vmem:[%s1] sm:$0xff]
  %v16 = vld [vmem:[%s1 + $0x8] sm:$0xff]
  %v17 = vld [vmem:[%s1 + $0x10] sm:$0xff]
  %v18 = vld [vmem:[%s1 + $0x18] sm:$0xff]
  %v19 = vld [vmem:[%s1 + $0x20] sm:$0xff]
  %v20 = vld [vmem:[%s1 + $0x28] sm:$0xff]
  %v21 = vld [vmem:[%s1 + $0x30] sm:$0xff]
  %v22 = vld [vmem:[%s1 + $0x38] sm:$0xff]
  %v23 = vld [vmem:[%s1 + $0x40] sm:$0xff]
  %v24 = vld [vmem:[%s1 + $0x48] sm:$0xff]
  %v25 = vld [vmem:[%s1 + $0x50] sm:$0xff]
  %v26 = vld [vmem:[%s1 + $0x58] sm:$0xff]
  %v27 = vld [vmem:[%s1 + $0x60] sm:$0xff]
  %v28 = vld [vmem:[%s1 + $0x68] sm:$0xff]
  %v29 = vld [vmem:[%s1 + $0x70] sm:$0xff]
  %v30 = vld [vmem:[%s1 + $0x78] sm:$0xff]
  %v31 = vld [vmem:[%s1 + $0x80] sm:$0xff]
  %v32 = vld [vmem:[%s1 + $0x88] sm:$0xff]
  %v33 = vld [vmem:[%s1 + $0x90] sm:$0xff]
  %v34 = vld [vmem:[%s1 + $0x98] sm:$0xff]
  %v35 = vld [vmem:[%s1 + $0xa0] sm:$0xff]
  %v36 = vld [vmem:[%s1 + $0xa8] sm:$0xff]
  %v37 = vld [vmem:[%s1 + $0xb0] sm:$0xff]
  %v38 = vld [vmem:[%s1 + $0xb8] sm:$0xff]
  %v39 = vld [vmem:[%s1 + $0xc0] sm:$0xff]
  %v40 = vld [vmem:[%s1 + $0xc8] sm:$0xff]
  %v41 = vld [vmem:[%s1 + $0xd0] sm:$0xff]
  %v42 = vld [vmem:[%s1 + $0xd8] sm:$0xff]
  %v43 = vld [vmem:[%s1 + $0xe0] sm:$0xff]
  %v44 = vld [vmem:[%s1 + $0xe8] sm:$0xff]
  %v45 = vld [vmem:[%s1 + $0xf0] sm:$0xff]
  %v46 = vld [vmem:[%s1 + $0xf8] sm:$0xff]
  %v47 = vld [vmem:[%s2] sm:$0x1]
  %v49 = vlaneseq
  %v50 = vshrl.u32 %v49, 7
  %v51 = vsub.s32 0, %v50
  %v52 = vrot.slane %v47, %v51
  %v56 = vunpack.c.l.s4 1983009808
  %v57 = vunpack.c.0.s8 %v56
  %v58 = vlaneseq
  %v59 = vshrl.u32 %v58, 7
  %v60 = vsub.s32 %v57, %v59
  %v61 = vrot.slane %v14, %v60
  %v62 = vcombine.high %v61, %v61
  %65 = vmatprep.subr.mxu0 0.0
  %66 = vmatpush1.msra.mxu0 %v15
  %67 = vmatprep.subr.mxu0 0.0
  %68 = vmatpush1.msra.mxu0 %v16
  %69 = vmatprep.subr.mxu0 0.0
  %70 = vmatpush1.msra.mxu0 %v17
  %71 = vmatprep.subr.mxu0 0.0
  %72 = vmatpush1.msra.mxu0 %v18
  %73 = vmatprep.subr.mxu0 0.0
  %74 = vmatpush1.msra.mxu0 %v19
  %75 = vmatprep.subr.mxu0 0.0
  %76 = vmatpush1.msra.mxu0 %v20
  %77 = vmatprep.subr.mxu0 0.0
  %78 = vmatpush1.msra.mxu0 %v21
  %79 = vmatprep.subr.mxu0 0.0
  %80 = vmatpush1.msra.mxu0 %v22
  %81 = vmatprep.subr.mxu0 0.0
  %82 = vmatpush1.msra.mxu0 %v23
  %83 = vmatprep.subr.mxu0 0.0
  %84 = vmatpush1.msra.mxu0 %v24
  %85 = vmatprep.subr.mxu0 0.0
  %86 = vmatpush1.msra.mxu0 %v25
  %87 = vmatprep.subr.mxu0 0.0
  %88 = vmatpush1.msra.mxu0 %v26
  %89 = vmatprep.subr.mxu0 0.0
  %90 = vmatpush1.msra.mxu0 %v27
  %91 = vmatprep.subr.mxu0 0.0
  %92 = vmatpush1.msra.mxu0 %v28
  %93 = vmatprep.subr.mxu0 0.0
  %94 = vmatpush1.msra.mxu0 %v29
  %95 = vmatprep.subr.mxu0 0.0
  %96 = vmatpush1.msra.mxu0 %v30
  %97 = vmatprep.subr.mxu0 0.0
  %98 = vmatpush1.msra.mxu0 %v31
  %99 = vmatprep.subr.mxu0 0.0
  %100 = vmatpush1.msra.mxu0 %v32
  %101 = vmatprep.subr.mxu0 0.0
  %102 = vmatpush1.msra.mxu0 %v33
  %103 = vmatprep.subr.mxu0 0.0
  %104 = vmatpush1.msra.mxu0 %v34
  %105 = vmatprep.subr.mxu0 0.0
  %106 = vmatpush1.msra.mxu0 %v35
  %107 = vmatprep.subr.mxu0 0.0
  %108 = vmatpush1.msra.mxu0 %v36
  %109 = vmatprep.subr.mxu0 0.0
  %110 = vmatpush1.msra.mxu0 %v37
  %111 = vmatprep.subr.mxu0 0.0
  %112 = vmatpush1.msra.mxu0 %v38
  %113 = vmatprep.subr.mxu0 0.0
  %114 = vmatpush1.msra.mxu0 %v39
  %115 = vmatprep.subr.mxu0 0.0
  %116 = vmatpush1.msra.mxu0 %v40
  %117 = vmatprep.subr.mxu0 0.0
  %118 = vmatpush1.msra.mxu0 %v41
  %119 = vmatprep.subr.mxu0 0.0
  %120 = vmatpush1.msra.mxu0 %v42
  %121 = vmatprep.subr.mxu0 0.0
  %122 = vmatpush1.msra.mxu0 %v43
  %123 = vmatprep.subr.mxu0 0.0
  %124 = vmatpush1.msra.mxu0 %v44
  %125 = vmatprep.subr.mxu0 0.0
  %126 = vmatpush1.msra.mxu0 %v45
  %127 = vmatprep.subr.mxu0 0.0
  %128 = vmatpush1.msra.mxu0 %v46
  %129 = vmatprep.mubr.f32.mxu0 %v62
  %130 = vmatmul.mubr.f32.gmra.mrb[0].mxu0 %v61
  %v131 = vpop.f32.mrb[0].mxu0
  %v132 = vadd.f32 %v52, %v131
  %v133 = vpop.f32.mrb[0].mxu0
  %134 = vdwg.mxu0
  %vm135 = vcmask 66560
  %136 = vst.msk [vmem:[%s3] sm:$0x3] %vm135, %v132
  // Predicated region
  $region14: #{pointnet_forward.23} parent=0 // pred_check
    _
  $region15: #{pointnet_forward.23} parent=0 // pred_check_branch
    %138 = sbr.rel (0) target = $region17
  $region16: #{pointnet_forward.23} parent=0 // pred_region
    _
  $region17: #{pointnet_forward.23} parent=0 // pred_fallthru
    _
  // Predicated region
  $region18: #{pointnet_forward.23} parent=0 // pred_check
    _
  $region19: #{pointnet_forward.23} parent=0 // pred_check_branch
    %140 = sbr.rel (0) target = $region21
  $region20: #{pointnet_forward.23} parent=0 // pred_region
    _
  $region21: #{pointnet_forward.23} parent=0 // pred_fallthru
    _

// kernel: pointnet_forward.21
$region0: #{pointnet_forward.21}
  #allocation0 [shape = 'u32[]', space=smem, size = 0x4, offset = 0x4, fixed_abs, tag = 'smem constant byte address 0x4 - core index']
  #allocation1 [shape = 'u32[144,128]{1,0:T(1,128)}', space=vmem, size = 0x12000, scoped, tag = 'internal scratch']
  %s0 = inlined_call_operand.vmem [shape: f32[2,1024], index: 0, kind: input, shape index: {}]
  %s1 = inlined_call_operand.vmem [shape: f32[1024,512], index: 1, kind: input, shape index: {}]
  %s2 = inlined_call_operand.vmem [shape: f32[1,512], index: 2, kind: input, shape index: {}]
  %s3 = inlined_call_operand.vmem [shape: f32[2,512], index: 3, kind: output, shape index: {}]
  %s4 = sld [smem:[#allocation0]]
  $region68: #{pointnet_forward.21} parent=0
    _
  %s6 = ssub.s32 1, %s4
  %s7 = scalar_select 0, %s6, %s4
  $region1: #{pointnet_forward.21} parent=0
    #allocation2 [shape = 'u8[2097152]{0}', space=vmem, size = 0x200000, scoped, tag = 'input window, operand 1']
    loop: start=0, step=1, limit=4
    $region2: #{pointnet_forward.21} parent=1 // loop_pre_header
      _
    $region3: #{pointnet_forward.21} parent=1 // loop_header
      %s9 = sphi 0, %s13
      %p10 = scmp.ge.s32.totalorder %s9, 4
      %s16 = sphi 0, %s28
      %s17 = sphi 0, %s24
      %s18 = sphi 0, %s16
      %s19 = sphi 0, %s17
      %s20 = sphi 0, %s18
      %s21 = sphi 0, %s19
      %s31 = sphi 0, %s33
      %s34 = sphi 0, %s31
      %s35 = sphi 0, %s34
      %s51 = sphi 0, %s35
      %s57 = sphi 0, %s59
      %s60 = sphi 0, %s57
      %s61 = sphi 0, %s60
      %s77 = sphi 0, %s61
      %s83 = sphi 0, %s85
      %s86 = sphi 0, %s83
      %s87 = sphi 0, %s86
      %s103 = sphi 0, %s87
      %s111 = sphi 0, %s113
      %s114 = sphi 0, %s111
      %s115 = sphi 0, %s114
      %s131 = sphi 0, %s115
    $region4: #{pointnet_forward.21} parent=1 // loop_header_branch
      %12 = sbr.rel (%p10) target = $region8
    $region5: #{pointnet_forward.21} parent=1 // loop_body
      %s14 = ssub.s32 %s9, 1
      %s15 = ssub.s32 %s9, 2
      %s22 = sadd.s32 1, %s17
      %p23 = scmp.ge.s32.totalorder %s22, 2
      %s24 = scalar_select %p23, 0, %s22
      %s25 = sadd.s32 1, %s16
      %s26 = scalar_select %p23, %s25, %s16
      %p27 = scmp.ge.s32.totalorder %s26, 1
      %s28 = scalar_select %p27, 0, %s26
      %s29 = ssub.s32 %s16, %s28
      %p30 = scmp.eq.s32.totalorder %s29, 0
      %s32 = sadd.s32 %s31, 1
      %s33 = scalar_select %p30, %s31, %s32
      %p36 = pneg %p30
      %p37 = scmp.eq.s32.totalorder %s9, 1
      %p38 = por %p36, %p37
      %p39 = scmp.ne.s32.totalorder %s31, %s34
      %p40 = scmp.eq.s32.totalorder %s9, 0
      %p41 = por %p39, %p40
      %p42 = scmp.ne.s32.totalorder %s31, %s34
      %p43 = scmp.eq.s32.totalorder %s14, 1
      %p44 = por %p42, %p43
      %p45 = scmp.ne.s32.totalorder %s34, %s35
      %p46 = scmp.eq.s32.totalorder %s14, 0
      %p47 = por %p45, %p46
      %p48 = scmp.ne.s32.totalorder %s34, %s35
      %p49 = scmp.eq.s32.totalorder %s15, 1
      %p50 = por %p48, %p49
      %p52 = scmp.ne.s32.totalorder %s35, %s51
      %p53 = scmp.eq.s32.totalorder %s15, 0
      %p54 = por %p52, %p53
      %s55 = ssub.s32 %s17, %s24
      %p56 = scmp.eq.s32.totalorder %s55, 0
      %s58 = sadd.s32 %s57, 1
      %s59 = scalar_select %p56, %s57, %s58
      %p62 = pneg %p56
      %p63 = scmp.eq.s32.totalorder %s9, 1
      %p64 = por %p62, %p63
      %p65 = scmp.ne.s32.totalorder %s57, %s60
      %p66 = scmp.eq.s32.totalorder %s9, 0
      %p67 = por %p65, %p66
      %p68 = scmp.ne.s32.totalorder %s57, %s60
      %p69 = scmp.eq.s32.totalorder %s14, 1
      %p70 = por %p68, %p69
      %p71 = scmp.ne.s32.totalorder %s60, %s61
      %p72 = scmp.eq.s32.totalorder %s14, 0
      %p73 = por %p71, %p72
      %p74 = scmp.ne.s32.totalorder %s60, %s61
      %p75 = scmp.eq.s32.totalorder %s15, 1
      %p76 = por %p74, %p75
      %p78 = scmp.ne.s32.totalorder %s61, %s77
      %p79 = scmp.eq.s32.totalorder %s15, 0
      %p80 = por %p78, %p79
      %s81 = ssub.s32 %s17, %s24
      %p82 = scmp.eq.s32.totalorder %s81, 0
      %s84 = sadd.s32 %s83, 1
      %s85 = scalar_select %p82, %s83, %s84
      %p88 = pneg %p82
      %p89 = scmp.eq.s32.totalorder %s9, 1
      %p90 = por %p88, %p89
      %p91 = scmp.ne.s32.totalorder %s83, %s86
      %p92 = scmp.eq.s32.totalorder %s9, 0
      %p93 = por %p91, %p92
      %p94 = scmp.ne.s32.totalorder %s83, %s86
      %p95 = scmp.eq.s32.totalorder %s14, 1
      %p96 = por %p94, %p95
      %p97 = scmp.ne.s32.totalorder %s86, %s87
      %p98 = scmp.eq.s32.totalorder %s14, 0
      %p99 = por %p97, %p98
      %p100 = scmp.ne.s32.totalorder %s86, %s87
      %p101 = scmp.eq.s32.totalorder %s15, 1
      %p102 = por %p100, %p101
      %p104 = scmp.ne.s32.totalorder %s87, %s103
      %p105 = scmp.eq.s32.totalorder %s15, 0
      %p106 = por %p104, %p105
      %s107 = ssub.s32 %s16, %s28
      %s108 = ssub.s32 %s17, %s24
      %s109 = sor.u32 %s107, %s108
      %p110 = scmp.eq.s32.totalorder %s109, 0
      %s112 = sadd.s32 %s111, 1
      %s113 = scalar_select %p110, %s111, %s112
      %p116 = pneg %p110
      %p117 = scmp.eq.s32.totalorder %s9, 1
      %p118 = por %p116, %p117
      %p119 = scmp.ne.s32.totalorder %s111, %s114
      %p120 = scmp.eq.s32.totalorder %s9, 0
      %p121 = por %p119, %p120
      %p122 = scmp.ne.s32.totalorder %s111, %s114
      %p123 = scmp.eq.s32.totalorder %s14, 1
      %p124 = por %p122, %p123
      %p125 = scmp.ne.s32.totalorder %s114, %s115
      %p126 = scmp.eq.s32.totalorder %s14, 0
      %p127 = por %p125, %p126
      %p128 = scmp.ne.s32.totalorder %s114, %s115
      %p129 = scmp.eq.s32.totalorder %s15, 1
      %p130 = por %p128, %p129
      %p132 = scmp.ne.s32.totalorder %s115, %s131
      %p133 = scmp.eq.s32.totalorder %s15, 0
      %p134 = por %p132, %p133
      %p135 = scmp.le.s32.totalorder 1, %s9
      %p136 = scmp.lt.s32.totalorder %s9, 3
      %p137 = pnand %p135, %p136
      %p138 = pneg %p137
      // Predicated region
      $region9: #{pointnet_forward.21} parent=5 // pred_check
        _
      $region10: #{pointnet_forward.21} parent=5 // pred_check_branch
        %140 = sbr.rel (%p137) target = $region12
      $region11: #{pointnet_forward.21} parent=5 // pred_region
        %s141 = ssub.s32 %s9, 1
        // Predicated region
        $region13: #{pointnet_forward.21} parent=11 // pred_check
          %p142 = pneg %p47
        $region14: #{pointnet_forward.21} parent=11 // pred_check_branch
          %144 = sbr.rel (%p142) target = $region16
        $region15: #{pointnet_forward.21} parent=11 // pred_region
          %p145 = scmp.lt.s32.totalorder %s18, 0
          %s146 = scalar_select %p145, %s18, 0
          %s147 = smul.addr %s146, 8
          %s148 = smul.addr %s147, 2
          %s149 = scalar_lea.vmem %s0, %s148
        $region16: #{pointnet_forward.21} parent=11 // pred_fallthru
          _
      $region12: #{pointnet_forward.21} parent=5 // pred_fallthru
        _
      %p150 = scmp.lt.s32.totalorder %s9, 2
      // Predicated region
      $region17: #{pointnet_forward.21} parent=5 // pred_check
        %p151 = pneg %p150
      $region18: #{pointnet_forward.21} parent=5 // pred_check_branch
        %153 = sbr.rel (%p151) target = $region20
      $region19: #{pointnet_forward.21} parent=5 // pred_region
        // Predicated region
        $region21: #{pointnet_forward.21} parent=19 // pred_check
          %p154 = pneg %p67
        $region22: #{pointnet_forward.21} parent=19 // pred_check_branch
          %156 = sbr.rel (%p154) target = $region24
        $region23: #{pointnet_forward.21} parent=19 // pred_region
          %s157 = sand.u32 %s57, 1
          %s158 = sand.u32 %s57, 1
          %s159 = smul.addr %s158, 2048
          %s160 = scalar_lea.vmem [#allocation2], %s159
          %s161 = smul.u32 2, %s17
          %s162 = smul.addr %s161, 8
          %s163 = scalar_lea.vmem %s1, %s162
          // Predicated region
          $region25: #{pointnet_forward.21} parent=23 // pred_check
            _
          $region26: #{pointnet_forward.21} parent=23 // pred_check_branch
            %165 = sbr.rel (0) target = $region28
          $region27: #{pointnet_forward.21} parent=23 // pred_region
            // Predicated region
            $region29: #{pointnet_forward.21} parent=27 // pred_check
              _
            $region30: #{pointnet_forward.21} parent=27 // pred_check_branch
              %167 = sbr.rel (0) target = $region32
            $region31: #{pointnet_forward.21} parent=27 // pred_region
              loop: start=0, step=1, limit=1
              $region33: #{pointnet_forward.21} parent=31 // loop_pre_header
                _
              $region34: #{pointnet_forward.21} parent=31 // loop_header
                %s169 = sphi 0, %s173
                %p170 = scmp.ge.s32.totalorder %s169, 1
                %s174 = sphi %s163, %s163
                %s175 = sphi %s160, %s160
              $region35: #{pointnet_forward.21} parent=31 // loop_header_branch
                %172 = sbr.rel (%p170) target = $region39
              $region36: #{pointnet_forward.21} parent=31 // loop_body
                %v176 = vld [vmem:[%s174] sm:$0xff]
                %177 = vst [vmem:[%s175] sm:$0xff] %v176
                %v178 = vld [vmem:[%s174 + $0x8] sm:$0xff]
                %179 = vst [vmem:[%s175 + $0x8] sm:$0xff] %v178
                %v180 = vld [vmem:[%s174 + $0x20] sm:$0xff]
                %181 = vst [vmem:[%s175 + $0x10] sm:$0xff] %v180
                %v182 = vld [vmem:[%s174 + $0x28] sm:$0xff]
                %183 = vst [vmem:[%s175 + $0x18] sm:$0xff] %v182
                %v184 = vld [vmem:[%s174 + $0x40] sm:$0xff]
                %185 = vst [vmem:[%s175 + $0x20] sm:$0xff] %v184
                %v186 = vld [vmem:[%s174 + $0x48] sm:$0xff]
                %187 = vst [vmem:[%s175 + $0x28] sm:$0xff] %v186
                %v188 = vld [vmem:[%s174 + $0x60] sm:$0xff]
                %189 = vst [vmem:[%s175 + $0x30] sm:$0xff] %v188
                %v190 = vld [vmem:[%s174 + $0x68] sm:$0xff]
                %191 = vst [vmem:[%s175 + $0x38] sm:$0xff] %v190
                %v192 = vld [vmem:[%s174 + $0x80] sm:$0xff]
                %193 = vst [vmem:[%s175 + $0x40] sm:$0xff] %v192
                %v194 = vld [vmem:[%s174 + $0x88] sm:$0xff]
                %195 = vst [vmem:[%s175 + $0x48] sm:$0xff] %v194
                %v196 = vld [vmem:[%s174 + $0xa0] sm:$0xff]
                %197 = vst [vmem:[%s175 + $0x50] sm:$0xff] %v196
                %v198 = vld [vmem:[%s174 + $0xa8] sm:$0xff]
                %199 = vst [vmem:[%s175 + $0x58] sm:$0xff] %v198
                %v200 = vld [vmem:[%s174 + $0xc0] sm:$0xff]
                %201 = vst [vmem:[%s175 + $0x60] sm:$0xff] %v200
                %v202 = vld [vmem:[%s174 + $0xc8] sm:$0xff]
                %203 = vst [vmem:[%s175 + $0x68] sm:$0xff] %v202
                %v204 = vld [vmem:[%s174 + $0xe0] sm:$0xff]
                %205 = vst [vmem:[%s175 + $0x70] sm:$0xff] %v204
                %v206 = vld [vmem:[%s174 + $0xe8] sm:$0xff]
                %207 = vst [vmem:[%s175 + $0x78] sm:$0xff] %v206
                %v208 = vld [vmem:[%s174 + $0x100] sm:$0xff]
                %209 = vst [vmem:[%s175 + $0x80] sm:$0xff] %v208
                %v210 = vld [vmem:[%s174 + $0x108] sm:$0xff]
                %211 = vst [vmem:[%s175 + $0x88] sm:$0xff] %v210
                %v212 = vld [vmem:[%s174 + $0x120] sm:$0xff]
                %213 = vst [vmem:[%s175 + $0x90] sm:$0xff] %v212
                %v214 = vld [vmem:[%s174 + $0x128] sm:$0xff]
                %215 = vst [vmem:[%s175 + $0x98] sm:$0xff] %v214
                %v216 = vld [vmem:[%s174 + $0x140] sm:$0xff]
                %217 = vst [vmem:[%s175 + $0xa0] sm:$0xff] %v216
                %v218 = vld [vmem:[%s174 + $0x148] sm:$0xff]
                %219 = vst [vmem:[%s175 + $0xa8] sm:$0xff] %v218
                %v220 = vld [vmem:[%s174 + $0x160] sm:$0xff]
                %221 = vst [vmem:[%s175 + $0xb0] sm:$0xff] %v220
                %v222 = vld [vmem:[%s174 + $0x168] sm:$0xff]
                %223 = vst [vmem:[%s175 + $0xb8] sm:$0xff] %v222
                %v224 = vld [vmem:[%s174 + $0x180] sm:$0xff]
                %225 = vst [vmem:[%s175 + $0xc0] sm:$0xff] %v224
                %v226 = vld [vmem:[%s174 + $0x188] sm:$0xff]
                %227 = vst [vmem:[%s175 + $0xc8] sm:$0xff] %v226
                %v228 = vld [vmem:[%s174 + $0x1a0] sm:$0xff]
                %229 = vst [vmem:[%s175 + $0xd0] sm:$0xff] %v228
                %v230 = vld [vmem:[%s174 + $0x1a8] sm:$0xff]
                %231 = vst [vmem:[%s175 + $0xd8] sm:$0xff] %v230
                %v232 = vld [vmem:[%s174 + $0x1c0] sm:$0xff]
                %233 = vst [vmem:[%s175 + $0xe0] sm:$0xff] %v232
                %v234 = vld [vmem:[%s174 + $0x1c8] sm:$0xff]
                %235 = vst [vmem:[%s175 + $0xe8] sm:$0xff] %v234
                %v236 = vld [vmem:[%s174 + $0x1e0] sm:$0xff]
                %237 = vst [vmem:[%s175 + $0xf0] sm:$0xff] %v236
                %v238 = vld [vmem:[%s174 + $0x1e8] sm:$0xff]
                %239 = vst [vmem:[%s175 + $0xf8] sm:$0xff] %v238
                %v240 = vld [vmem:[%s174 + $0x200] sm:$0xff]
                %241 = vst [vmem:[%s175 + $0x100] sm:$0xff] %v240
                %v242 = vld [vmem:[%s174 + $0x208] sm:$0xff]
                %243 = vst [vmem:[%s175 + $0x108] sm:$0xff] %v242
                %v244 = vld [vmem:[%s174 + $0x220] sm:$0xff]
                %245 = vst [vmem:[%s175 + $0x110] sm:$0xff] %v244
                %v246 = vld [vmem:[%s174 + $0x228] sm:$0xff]
                %247 = vst [vmem:[%s175 + $0x118] sm:$0xff] %v246
                %v248 = vld [vmem:[%s174 + $0x240] sm:$0xff]
                %249 = vst [vmem:[%s175 + $0x120] sm:$0xff] %v248
                %v250 = vld [vmem:[%s174 + $0x248] sm:$0xff]
                %251 = vst [vmem:[%s175 + $0x128] sm:$0xff] %v250
                %v252 = vld [vmem:[%s174 + $0x260] sm:$0xff]
                %253 = vst [vmem:[%s175 + $0x130] sm:$0xff] %v252
                %v254 = vld [vmem:[%s174 + $0x268] sm:$0xff]
                %255 = vst [vmem:[%s175 + $0x138] sm:$0xff] %v254
                %v256 = vld [vmem:[%s174 + $0x280] sm:$0xff]
                %257 = vst [vmem:[%s175 + $0x140] sm:$0xff] %v256
                %v258 = vld [vmem:[%s174 + $0x288] sm:$0xff]
                %259 = vst [vmem:[%s175 + $0x148] sm:$0xff] %v258
                %v260 = vld [vmem:[%s174 + $0x2a0] sm:$0xff]
                %261 = vst [vmem:[%s175 + $0x150] sm:$0xff] %v260
                %v262 = vld [vmem:[%s174 + $0x2a8] sm:$0xff]
                %263 = vst [vmem:[%s175 + $0x158] sm:$0xff] %v262
                %v264 = vld [vmem:[%s174 + $0x2c0] sm:$0xff]
                %265 = vst [vmem:[%s175 + $0x160] sm:$0xff] %v264
                %v266 = vld [vmem:[%s174 + $0x2c8] sm:$0xff]
                %267 = vst [vmem:[%s175 + $0x168] sm:$0xff] %v266
                %v268 = vld [vmem:[%s174 + $0x2e0] sm:$0xff]
                %269 = vst [vmem:[%s175 + $0x170] sm:$0xff] %v268
                %v270 = vld [vmem:[%s174 + $0x2e8] sm:$0xff]
                %271 = vst [vmem:[%s175 + $0x178] sm:$0xff] %v270
                %v272 = vld [vmem:[%s174 + $0x300] sm:$0xff]
                %273 = vst [vmem:[%s175 + $0x180] sm:$0xff] %v272
                %v274 = vld [vmem:[%s174 + $0x308] sm:$0xff]
                %275 = vst [vmem:[%s175 + $0x188] sm:$0xff] %v274
                %v276 = vld [vmem:[%s174 + $0x320] sm:$0xff]
                %277 = vst [vmem:[%s175 + $0x190] sm:$0xff] %v276
                %v278 = vld [vmem:[%s174 + $0x328] sm:$0xff]
                %279 = vst [vmem:[%s175 + $0x198] sm:$0xff] %v278
                %v280 = vld [vmem:[%s174 + $0x340] sm:$0xff]
                %281 = vst [vmem:[%s175 + $0x1a0] sm:$0xff] %v280
                %v282 = vld [vmem:[%s174 + $0x348] sm:$0xff]
                %283 = vst [vmem:[%s175 + $0x1a8] sm:$0xff] %v282
                %v284 = vld [vmem:[%s174 + $0x360] sm:$0xff]
                %285 = vst [vmem:[%s175 + $0x1b0] sm:$0xff] %v284
                %v286 = vld [vmem:[%s174 + $0x368] sm:$0xff]
                %287 = vst [vmem:[%s175 + $0x1b8] sm:$0xff] %v286
                %v288 = vld [vmem:[%s174 + $0x380] sm:$0xff]
                %289 = vst [vmem:[%s175 + $0x1c0] sm:$0xff] %v288
                %v290 = vld [vmem:[%s174 + $0x388] sm:$0xff]
                %291 = vst [vmem:[%s175 + $0x1c8] sm:$0xff] %v290
                %v292 = vld [vmem:[%s174 + $0x3a0] sm:$0xff]
                %293 = vst [vmem:[%s175 + $0x1d0] sm:$0xff] %v292
                %v294 = vld [vmem:[%s174 + $0x3a8] sm:$0xff]
                %295 = vst [vmem:[%s175 + $0x1d8] sm:$0xff] %v294
                %v296 = vld [vmem:[%s174 + $0x3c0] sm:$0xff]
                %297 = vst [vmem:[%s175 + $0x1e0] sm:$0xff] %v296
                %v298 = vld [vmem:[%s174 + $0x3c8] sm:$0xff]
                %299 = vst [vmem:[%s175 + $0x1e8] sm:$0xff] %v298
                %v300 = vld [vmem:[%s174 + $0x3e0] sm:$0xff]
                %301 = vst [vmem:[%s175 + $0x1f0] sm:$0xff] %v300
                %v302 = vld [vmem:[%s174 + $0x3e8] sm:$0xff]
                %303 = vst [vmem:[%s175 + $0x1f8] sm:$0xff] %v302
                %v304 = vld [vmem:[%s174 + $0x400] sm:$0xff]
                %305 = vst [vmem:[%s175 + $0x200] sm:$0xff] %v304
                %v306 = vld [vmem:[%s174 + $0x408] sm:$0xff]
                %307 = vst [vmem:[%s175 + $0x208] sm:$0xff] %v306
                %v308 = vld [vmem:[%s174 + $0x420] sm:$0xff]
                %309 = vst [vmem:[%s175 + $0x210] sm:$0xff] %v308
                %v310 = vld [vmem:[%s174 + $0x428] sm:$0xff]
                %311 = vst [vmem:[%s175 + $0x218] sm:$0xff] %v310
                %v312 = vld [vmem:[%s174 + $0x440] sm:$0xff]
                %313 = vst [vmem:[%s175 + $0x220] sm:$0xff] %v312
                %v314 = vld [vmem:[%s174 + $0x448] sm:$0xff]
                %315 = vst [vmem:[%s175 + $0x228] sm:$0xff] %v314
                %v316 = vld [vmem:[%s174 + $0x460] sm:$0xff]
                %317 = vst [vmem:[%s175 + $0x230] sm:$0xff] %v316
                %v318 = vld [vmem:[%s174 + $0x468] sm:$0xff]
                %319 = vst [vmem:[%s175 + $0x238] sm:$0xff] %v318
                %v320 = vld [vmem:[%s174 + $0x480] sm:$0xff]
                %321 = vst [vmem:[%s175 + $0x240] sm:$0xff] %v320
                %v322 = vld [vmem:[%s174 + $0x488] sm:$0xff]
                %323 = vst [vmem:[%s175 + $0x248] sm:$0xff] %v322
                %v324 = vld [vmem:[%s174 + $0x4a0] sm:$0xff]
                %325 = vst [vmem:[%s175 + $0x250] sm:$0xff] %v324
                %v326 = vld [vmem:[%s174 + $0x4a8] sm:$0xff]
                %327 = vst [vmem:[%s175 + $0x258] sm:$0xff] %v326
                %v328 = vld [vmem:[%s174 + $0x4c0] sm:$0xff]
                %329 = vst [vmem:[%s175 + $0x260] sm:$0xff] %v328
                %v330 = vld [vmem:[%s174 + $0x4c8] sm:$0xff]
                %331 = vst [vmem:[%s175 + $0x268] sm:$0xff] %v330
                %v332 = vld [vmem:[%s174 + $0x4e0] sm:$0xff]
                %333 = vst [vmem:[%s175 + $0x270] sm:$0xff] %v332
                %v334 = vld [vmem:[%s174 + $0x4e8] sm:$0xff]
                %335 = vst [vmem:[%s175 + $0x278] sm:$0xff] %v334
                %v336 = vld [vmem:[%s174 + $0x500] sm:$0xff]
                %337 = vst [vmem:[%s175 + $0x280] sm:$0xff] %v336
                %v338 = vld [vmem:[%s174 + $0x508] sm:$0xff]
                %339 = vst [vmem:[%s175 + $0x288] sm:$0xff] %v338
                %v340 = vld [vmem:[%s174 + $0x520] sm:$0xff]
                %341 = vst [vmem:[%s175 + $0x290] sm:$0xff] %v340
                %v342 = vld [vmem:[%s174 + $0x528] sm:$0xff]
                %343 = vst [vmem:[%s175 + $0x298] sm:$0xff] %v342
                %v344 = vld [vmem:[%s174 + $0x540] sm:$0xff]
                %345 = vst [vmem:[%s175 + $0x2a0] sm:$0xff] %v344
                %v346 = vld [vmem:[%s174 + $0x548] sm:$0xff]
                %347 = vst [vmem:[%s175 + $0x2a8] sm:$0xff] %v346
                %v348 = vld [vmem:[%s174 + $0x560] sm:$0xff]
                %349 = vst [vmem:[%s175 + $0x2b0] sm:$0xff] %v348
                %v350 = vld [vmem:[%s174 + $0x568] sm:$0xff]
                %351 = vst [vmem:[%s175 + $0x2b8] sm:$0xff] %v350
                %v352 = vld [vmem:[%s174 + $0x580] sm:$0xff]
                %353 = vst [vmem:[%s175 + $0x2c0] sm:$0xff] %v352
                %v354 = vld [vmem:[%s174 + $0x588] sm:$0xff]
                %355 = vst [vmem:[%s175 + $0x2c8] sm:$0xff] %v354
                %v356 = vld [vmem:[%s174 + $0x5a0] sm:$0xff]
                %357 = vst [vmem:[%s175 + $0x2d0] sm:$0xff] %v356
                %v358 = vld [vmem:[%s174 + $0x5a8] sm:$0xff]
                %359 = vst [vmem:[%s175 + $0x2d8] sm:$0xff] %v358
                %v360 = vld [vmem:[%s174 + $0x5c0] sm:$0xff]
                %361 = vst [vmem:[%s175 + $0x2e0] sm:$0xff] %v360
                %v362 = vld [vmem:[%s174 + $0x5c8] sm:$0xff]
                %363 = vst [vmem:[%s175 + $0x2e8] sm:$0xff] %v362
                %v364 = vld [vmem:[%s174 + $0x5e0] sm:$0xff]
                %365 = vst [vmem:[%s175 + $0x2f0] sm:$0xff] %v364
                %v366 = vld [vmem:[%s174 + $0x5e8] sm:$0xff]
                %367 = vst [vmem:[%s175 + $0x2f8] sm:$0xff] %v366
                %v368 = vld [vmem:[%s174 + $0x600] sm:$0xff]
                %369 = vst [vmem:[%s175 + $0x300] sm:$0xff] %v368
                %v370 = vld [vmem:[%s174 + $0x608] sm:$0xff]
                %371 = vst [vmem:[%s175 + $0x308] sm:$0xff] %v370
                %v372 = vld [vmem:[%s174 + $0x620] sm:$0xff]
                %373 = vst [vmem:[%s175 + $0x310] sm:$0xff] %v372
                %v374 = vld [vmem:[%s174 + $0x628] sm:$0xff]
                %375 = vst [vmem:[%s175 + $0x318] sm:$0xff] %v374
                %v376 = vld [vmem:[%s174 + $0x640] sm:$0xff]
                %377 = vst [vmem:[%s175 + $0x320] sm:$0xff] %v376
                %v378 = vld [vmem:[%s174 + $0x648] sm:$0xff]
                %379 = vst [vmem:[%s175 + $0x328] sm:$0xff] %v378
                %v380 = vld [vmem:[%s174 + $0x660] sm:$0xff]
                %381 = vst [vmem:[%s175 + $0x330] sm:$0xff] %v380
                %v382 = vld [vmem:[%s174 + $0x668] sm:$0xff]
                %383 = vst [vmem:[%s175 + $0x338] sm:$0xff] %v382
                %v384 = vld [vmem:[%s174 + $0x680] sm:$0xff]
                %385 = vst [vmem:[%s175 + $0x340] sm:$0xff] %v384
                %v386 = vld [vmem:[%s174 + $0x688] sm:$0xff]
                %387 = vst [vmem:[%s175 + $0x348] sm:$0xff] %v386
                %v388 = vld [vmem:[%s174 + $0x6a0] sm:$0xff]
                %389 = vst [vmem:[%s175 + $0x350] sm:$0xff] %v388
                %v390 = vld [vmem:[%s174 + $0x6a8] sm:$0xff]
                %391 = vst [vmem:[%s175 + $0x358] sm:$0xff] %v390
                %v392 = vld [vmem:[%s174 + $0x6c0] sm:$0xff]
                %393 = vst [vmem:[%s175 + $0x360] sm:$0xff] %v392
                %v394 = vld [vmem:[%s174 + $0x6c8] sm:$0xff]
                %395 = vst [vmem:[%s175 + $0x368] sm:$0xff] %v394
                %v396 = vld [vmem:[%s174 + $0x6e0] sm:$0xff]
                %397 = vst [vmem:[%s175 + $0x370] sm:$0xff] %v396
                %v398 = vld [vmem:[%s174 + $0x6e8] sm:$0xff]
                %399 = vst [vmem:[%s175 + $0x378] sm:$0xff] %v398
                %v400 = vld [vmem:[%s174 + $0x700] sm:$0xff]
                %401 = vst [vmem:[%s175 + $0x380] sm:$0xff] %v400
                %v402 = vld [vmem:[%s174 + $0x708] sm:$0xff]
                %403 = vst [vmem:[%s175 + $0x388] sm:$0xff] %v402
                %v404 = vld [vmem:[%s174 + $0x720] sm:$0xff]
                %405 = vst [vmem:[%s175 + $0x390] sm:$0xff] %v404
                %v406 = vld [vmem:[%s174 + $0x728] sm:$0xff]
                %407 = vst [vmem:[%s175 + $0x398] sm:$0xff] %v406
                %v408 = vld [vmem:[%s174 + $0x740] sm:$0xff]
                %409 = vst [vmem:[%s175 + $0x3a0] sm:$0xff] %v408
                %v410 = vld [vmem:[%s174 + $0x748] sm:$0xff]
                %411 = vst [vmem:[%s175 + $0x3a8] sm:$0xff] %v410
                %v412 = vld [vmem:[%s174 + $0x760] sm:$0xff]
                %413 = vst [vmem:[%s175 + $0x3b0] sm:$0xff] %v412
                %v414 = vld [vmem:[%s174 + $0x768] sm:$0xff]
                %415 = vst [vmem:[%s175 + $0x3b8] sm:$0xff] %v414
                %v416 = vld [vmem:[%s174 + $0x780] sm:$0xff]
                %417 = vst [vmem:[%s175 + $0x3c0] sm:$0xff] %v416
                %v418 = vld [vmem:[%s174 + $0x788] sm:$0xff]
                %419 = vst [vmem:[%s175 + $0x3c8] sm:$0xff] %v418
                %v420 = vld [vmem:[%s174 + $0x7a0] sm:$0xff]
                %421 = vst [vmem:[%s175 + $0x3d0] sm:$0xff] %v420
                %v422 = vld [vmem:[%s174 + $0x7a8] sm:$0xff]
                %423 = vst [vmem:[%s175 + $0x3d8] sm:$0xff] %v422
                %v424 = vld [vmem:[%s174 + $0x7c0] sm:$0xff]
                %425 = vst [vmem:[%s175 + $0x3e0] sm:$0xff] %v424
                %v426 = vld [vmem:[%s174 + $0x7c8] sm:$0xff]
                %427 = vst [vmem:[%s175 + $0x3e8] sm:$0xff] %v426
                %v428 = vld [vmem:[%s174 + $0x7e0] sm:$0xff]
                %429 = vst [vmem:[%s175 + $0x3f0] sm:$0xff] %v428
                %v430 = vld [vmem:[%s174 + $0x7e8] sm:$0xff]
                %431 = vst [vmem:[%s175 + $0x3f8] sm:$0xff] %v430
                %v432 = vld [vmem:[%s174 + $0x800] sm:$0xff]
                %433 = vst [vmem:[%s175 + $0x400] sm:$0xff] %v432
                %v434 = vld [vmem:[%s174 + $0x808] sm:$0xff]
                %435 = vst [vmem:[%s175 + $0x408] sm:$0xff] %v434
                %v436 = vld [vmem:[%s174 + $0x820] sm:$0xff]
                %437 = vst [vmem:[%s175 + $0x410] sm:$0xff] %v436
                %v438 = vld [vmem:[%s174 + $0x828] sm:$0xff]
                %439 = vst [vmem:[%s175 + $0x418] sm:$0xff] %v438
                %v440 = vld [vmem:[%s174 + $0x840] sm:$0xff]
                %441 = vst [vmem:[%s175 + $0x420] sm:$0xff] %v440
                %v442 = vld [vmem:[%s174 + $0x848] sm:$0xff]
                %443 = vst [vmem:[%s175 + $0x428] sm:$0xff] %v442
                %v444 = vld [vmem:[%s174 + $0x860] sm:$0xff]
                %445 = vst [vmem:[%s175 + $0x430] sm:$0xff] %v444
                %v446 = vld [vmem:[%s174 + $0x868] sm:$0xff]
                %447 = vst [vmem:[%s175 + $0x438] sm:$0xff] %v446
                %v448 = vld [vmem:[%s174 + $0x880] sm:$0xff]
                %449 = vst [vmem:[%s175 + $0x440] sm:$0xff] %v448
                %v450 = vld [vmem:[%s174 + $0x888] sm:$0xff]
                %451 = vst [vmem:[%s175 + $0x448] sm:$0xff] %v450
                %v452 = vld [vmem:[%s174 + $0x8a0] sm:$0xff]
                %453 = vst [vmem:[%s175 + $0x450] sm:$0xff] %v452
                %v454 = vld [vmem:[%s174 + $0x8a8] sm:$0xff]
                %455 = vst [vmem:[%s175 + $0x458] sm:$0xff] %v454
                %v456 = vld [vmem:[%s174 + $0x8c0] sm:$0xff]
                %457 = vst [vmem:[%s175 + $0x460] sm:$0xff] %v456
                %v458 = vld [vmem:[%s174 + $0x8c8] sm:$0xff]
                %459 = vst [vmem:[%s175 + $0x468] sm:$0xff] %v458
                %v460 = vld [vmem:[%s174 + $0x8e0] sm:$0xff]
                %461 = vst [vmem:[%s175 + $0x470] sm:$0xff] %v460
                %v462 = vld [vmem:[%s174 + $0x8e8] sm:$0xff]
                %463 = vst [vmem:[%s175 + $0x478] sm:$0xff] %v462
                %v464 = vld [vmem:[%s174 + $0x900] sm:$0xff]
                %465 = vst [vmem:[%s175 + $0x480] sm:$0xff] %v464
                %v466 = vld [vmem:[%s174 + $0x908] sm:$0xff]
                %467 = vst [vmem:[%s175 + $0x488] sm:$0xff] %v466
                %v468 = vld [vmem:[%s174 + $0x920] sm:$0xff]
                %469 = vst [vmem:[%s175 + $0x490] sm:$0xff] %v468
                %v470 = vld [vmem:[%s174 + $0x928] sm:$0xff]
                %471 = vst [vmem:[%s175 + $0x498] sm:$0xff] %v470
                %v472 = vld [vmem:[%s174 + $0x940] sm:$0xff]
                %473 = vst [vmem:[%s175 + $0x4a0] sm:$0xff] %v472
                %v474 = vld [vmem:[%s174 + $0x948] sm:$0xff]
                %475 = vst [vmem:[%s175 + $0x4a8] sm:$0xff] %v474
                %v476 = vld [vmem:[%s174 + $0x960] sm:$0xff]
                %477 = vst [vmem:[%s175 + $0x4b0] sm:$0xff] %v476
                %v478 = vld [vmem:[%s174 + $0x968] sm:$0xff]
                %479 = vst [vmem:[%s175 + $0x4b8] sm:$0xff] %v478
                %v480 = vld [vmem:[%s174 + $0x980] sm:$0xff]
                %481 = vst [vmem:[%s175 + $0x4c0] sm:$0xff] %v480
                %v482 = vld [vmem:[%s174 + $0x988] sm:$0xff]
                %483 = vst [vmem:[%s175 + $0x4c8] sm:$0xff] %v482
                %v484 = vld [vmem:[%s174 + $0x9a0] sm:$0xff]
                %485 = vst [vmem:[%s175 + $0x4d0] sm:$0xff] %v484
                %v486 = vld [vmem:[%s174 + $0x9a8] sm:$0xff]
                %487 = vst [vmem:[%s175 + $0x4d8] sm:$0xff] %v486
                %v488 = vld [vmem:[%s174 + $0x9c0] sm:$0xff]
                %489 = vst [vmem:[%s175 + $0x4e0] sm:$0xff] %v488
                %v490 = vld [vmem:[%s174 + $0x9c8] sm:$0xff]
                %491 = vst [vmem:[%s175 + $0x4e8] sm:$0xff] %v490
                %v492 = vld [vmem:[%s174 + $0x9e0] sm:$0xff]
                %493 = vst [vmem:[%s175 + $0x4f0] sm:$0xff] %v492
                %v494 = vld [vmem:[%s174 + $0x9e8] sm:$0xff]
                %495 = vst [vmem:[%s175 + $0x4f8] sm:$0xff] %v494
                %v496 = vld [vmem:[%s174 + $0xa00] sm:$0xff]
                %497 = vst [vmem:[%s175 + $0x500] sm:$0xff] %v496
                %v498 = vld [vmem:[%s174 + $0xa08] sm:$0xff]
                %499 = vst [vmem:[%s175 + $0x508] sm:$0xff] %v498
                %v500 = vld [vmem:[%s174 + $0xa20] sm:$0xff]
                %501 = vst [vmem:[%s175 + $0x510] sm:$0xff] %v500
                %v502 = vld [vmem:[%s174 + $0xa28] sm:$0xff]
                %503 = vst [vmem:[%s175 + $0x518] sm:$0xff] %v502
                %v504 = vld [vmem:[%s174 + $0xa40] sm:$0xff]
                %505 = vst [vmem:[%s175 + $0x520] sm:$0xff] %v504
                %v506 = vld [vmem:[%s174 + $0xa48] sm:$0xff]
                %507 = vst [vmem:[%s175 + $0x528] sm:$0xff] %v506
                %v508 = vld [vmem:[%s174 + $0xa60] sm:$0xff]
                %509 = vst [vmem:[%s175 + $0x530] sm:$0xff] %v508
                %v510 = vld [vmem:[%s174 + $0xa68] sm:$0xff]
                %511 = vst [vmem:[%s175 + $0x538] sm:$0xff] %v510
                %v512 = vld [vmem:[%s174 + $0xa80] sm:$0xff]
                %513 = vst [vmem:[%s175 + $0x540] sm:$0xff] %v512
                %v514 = vld [vmem:[%s174 + $0xa88] sm:$0xff]
                %515 = vst [vmem:[%s175 + $0x548] sm:$0xff] %v514
                %v516 = vld [vmem:[%s174 + $0xaa0] sm:$0xff]
                %517 = vst [vmem:[%s175 + $0x550] sm:$0xff] %v516
                %v518 = vld [vmem:[%s174 + $0xaa8] sm:$0xff]
                %519 = vst [vmem:[%s175 + $0x558] sm:$0xff] %v518
                %v520 = vld [vmem:[%s174 + $0xac0] sm:$0xff]
                %521 = vst [vmem:[%s175 + $0x560] sm:$0xff] %v520
                %v522 = vld [vmem:[%s174 + $0xac8] sm:$0xff]
                %523 = vst [vmem:[%s175 + $0x568] sm:$0xff] %v522
                %v524 = vld [vmem:[%s174 + $0xae0] sm:$0xff]
                %525 = vst [vmem:[%s175 + $0x570] sm:$0xff] %v524
                %v526 = vld [vmem:[%s174 + $0xae8] sm:$0xff]
                %527 = vst [vmem:[%s175 + $0x578] sm:$0xff] %v526
                %v528 = vld [vmem:[%s174 + $0xb00] sm:$0xff]
                %529 = vst [vmem:[%s175 + $0x580] sm:$0xff] %v528
                %v530 = vld [vmem:[%s174 + $0xb08] sm:$0xff]
                %531 = vst [vmem:[%s175 + $0x588] sm:$0xff] %v530
                %v532 = vld [vmem:[%s174 + $0xb20] sm:$0xff]
                %533 = vst [vmem:[%s175 + $0x590] sm:$0xff] %v532
                %v534 = vld [vmem:[%s174 + $0xb28] sm:$0xff]
                %535 = vst [vmem:[%s175 + $0x598] sm:$0xff] %v534
                %v536 = vld [vmem:[%s174 + $0xb40] sm:$0xff]
                %537 = vst [vmem:[%s175 + $0x5a0] sm:$0xff] %v536
                %v538 = vld [vmem:[%s174 + $0xb48] sm:$0xff]
                %539 = vst [vmem:[%s175 + $0x5a8] sm:$0xff] %v538
                %v540 = vld [vmem:[%s174 + $0xb60] sm:$0xff]
                %541 = vst [vmem:[%s175 + $0x5b0] sm:$0xff] %v540
                %v542 = vld [vmem:[%s174 + $0xb68] sm:$0xff]
                %543 = vst [vmem:[%s175 + $0x5b8] sm:$0xff] %v542
                %v544 = vld [vmem:[%s174 + $0xb80] sm:$0xff]
                %545 = vst [vmem:[%s175 + $0x5c0] sm:$0xff] %v544
                %v546 = vld [vmem:[%s174 + $0xb88] sm:$0xff]
                %547 = vst [vmem:[%s175 + $0x5c8] sm:$0xff] %v546
                %v548 = vld [vmem:[%s174 + $0xba0] sm:$0xff]
                %549 = vst [vmem:[%s175 + $0x5d0] sm:$0xff] %v548
                %v550 = vld [vmem:[%s174 + $0xba8] sm:$0xff]
                %551 = vst [vmem:[%s175 + $0x5d8] sm:$0xff] %v550
                %v552 = vld [vmem:[%s174 + $0xbc0] sm:$0xff]
                %553 = vst [vmem:[%s175 + $0x5e0] sm:$0xff] %v552
                %v554 = vld [vmem:[%s174 + $0xbc8] sm:$0xff]
                %555 = vst [vmem:[%s175 + $0x5e8] sm:$0xff] %v554
                %v556 = vld [vmem:[%s174 + $0xbe0] sm:$0xff]
                %557 = vst [vmem:[%s175 + $0x5f0] sm:$0xff] %v556
                %v558 = vld [vmem:[%s174 + $0xbe8] sm:$0xff]
                %559 = vst [vmem:[%s175 + $0x5f8] sm:$0xff] %v558
                %v560 = vld [vmem:[%s174 + $0xc00] sm:$0xff]
                %561 = vst [vmem:[%s175 + $0x600] sm:$0xff] %v560
                %v562 = vld [vmem:[%s174 + $0xc08] sm:$0xff]
                %563 = vst [vmem:[%s175 + $0x608] sm:$0xff] %v562
                %v564 = vld [vmem:[%s174 + $0xc20] sm:$0xff]
                %565 = vst [vmem:[%s175 + $0x610] sm:$0xff] %v564
                %v566 = vld [vmem:[%s174 + $0xc28] sm:$0xff]
                %567 = vst [vmem:[%s175 + $0x618] sm:$0xff] %v566
                %v568 = vld [vmem:[%s174 + $0xc40] sm:$0xff]
                %569 = vst [vmem:[%s175 + $0x620] sm:$0xff] %v568
                %v570 = vld [vmem:[%s174 + $0xc48] sm:$0xff]
                %571 = vst [vmem:[%s175 + $0x628] sm:$0xff] %v570
                %v572 = vld [vmem:[%s174 + $0xc60] sm:$0xff]
                %573 = vst [vmem:[%s175 + $0x630] sm:$0xff] %v572
                %v574 = vld [vmem:[%s174 + $0xc68] sm:$0xff]
                %575 = vst [vmem:[%s175 + $0x638] sm:$0xff] %v574
                %v576 = vld [vmem:[%s174 + $0xc80] sm:$0xff]
                %577 = vst [vmem:[%s175 + $0x640] sm:$0xff] %v576
                %v578 = vld [vmem:[%s174 + $0xc88] sm:$0xff]
                %579 = vst [vmem:[%s175 + $0x648] sm:$0xff] %v578
                %v580 = vld [vmem:[%s174 + $0xca0] sm:$0xff]
                %581 = vst [vmem:[%s175 + $0x650] sm:$0xff] %v580
                %v582 = vld [vmem:[%s174 + $0xca8] sm:$0xff]
                %583 = vst [vmem:[%s175 + $0x658] sm:$0xff] %v582
                %v584 = vld [vmem:[%s174 + $0xcc0] sm:$0xff]
                %585 = vst [vmem:[%s175 + $0x660] sm:$0xff] %v584
                %v586 = vld [vmem:[%s174 + $0xcc8] sm:$0xff]
                %587 = vst [vmem:[%s175 + $0x668] sm:$0xff] %v586
                %v588 = vld [vmem:[%s174 + $0xce0] sm:$0xff]
                %589 = vst [vmem:[%s175 + $0x670] sm:$0xff] %v588
                %v590 = vld [vmem:[%s174 + $0xce8] sm:$0xff]
                %591 = vst [vmem:[%s175 + $0x678] sm:$0xff] %v590
                %v592 = vld [vmem:[%s174 + $0xd00] sm:$0xff]
                %593 = vst [vmem:[%s175 + $0x680] sm:$0xff] %v592
                %v594 = vld [vmem:[%s174 + $0xd08] sm:$0xff]
                %595 = vst [vmem:[%s175 + $0x688] sm:$0xff] %v594
                %v596 = vld [vmem:[%s174 + $0xd20] sm:$0xff]
                %597 = vst [vmem:[%s175 + $0x690] sm:$0xff] %v596
                %v598 = vld [vmem:[%s174 + $0xd28] sm:$0xff]
                %599 = vst [vmem:[%s175 + $0x698] sm:$0xff] %v598
                %v600 = vld [vmem:[%s174 + $0xd40] sm:$0xff]
                %601 = vst [vmem:[%s175 + $0x6a0] sm:$0xff] %v600
                %v602 = vld [vmem:[%s174 + $0xd48] sm:$0xff]
                %603 = vst [vmem:[%s175 + $0x6a8] sm:$0xff] %v602
                %v604 = vld [vmem:[%s174 + $0xd60] sm:$0xff]
                %605 = vst [vmem:[%s175 + $0x6b0] sm:$0xff] %v604
                %v606 = vld [vmem:[%s174 + $0xd68] sm:$0xff]
                %607 = vst [vmem:[%s175 + $0x6b8] sm:$0xff] %v606
                %v608 = vld [vmem:[%s174 + $0xd80] sm:$0xff]
                %609 = vst [vmem:[%s175 + $0x6c0] sm:$0xff] %v608
                %v610 = vld [vmem:[%s174 + $0xd88] sm:$0xff]
                %611 = vst [vmem:[%s175 + $0x6c8] sm:$0xff] %v610
                %v612 = vld [vmem:[%s174 + $0xda0] sm:$0xff]
                %613 = vst [vmem:[%s175 + $0x6d0] sm:$0xff] %v612
                %v614 = vld [vmem:[%s174 + $0xda8] sm:$0xff]
                %615 = vst [vmem:[%s175 + $0x6d8] sm:$0xff] %v614
                %v616 = vld [vmem:[%s174 + $0xdc0] sm:$0xff]
                %617 = vst [vmem:[%s175 + $0x6e0] sm:$0xff] %v616
                %v618 = vld [vmem:[%s174 + $0xdc8] sm:$0xff]
                %619 = vst [vmem:[%s175 + $0x6e8] sm:$0xff] %v618
                %v620 = vld [vmem:[%s174 + $0xde0] sm:$0xff]
                %621 = vst [vmem:[%s175 + $0x6f0] sm:$0xff] %v620
                %v622 = vld [vmem:[%s174 + $0xde8] sm:$0xff]
                %623 = vst [vmem:[%s175 + $0x6f8] sm:$0xff] %v622
                %v624 = vld [vmem:[%s174 + $0xe00] sm:$0xff]
                %625 = vst [vmem:[%s175 + $0x700] sm:$0xff] %v624
                %v626 = vld [vmem:[%s174 + $0xe08] sm:$0xff]
                %627 = vst [vmem:[%s175 + $0x708] sm:$0xff] %v626
                %v628 = vld [vmem:[%s174 + $0xe20] sm:$0xff]
                %629 = vst [vmem:[%s175 + $0x710] sm:$0xff] %v628
                %v630 = vld [vmem:[%s174 + $0xe28] sm:$0xff]
                %631 = vst [vmem:[%s175 + $0x718] sm:$0xff] %v630
                %v632 = vld [vmem:[%s174 + $0xe40] sm:$0xff]
                %633 = vst [vmem:[%s175 + $0x720] sm:$0xff] %v632
                %v634 = vld [vmem:[%s174 + $0xe48] sm:$0xff]
                %635 = vst [vmem:[%s175 + $0x728] sm:$0xff] %v634
                %v636 = vld [vmem:[%s174 + $0xe60] sm:$0xff]
                %637 = vst [vmem:[%s175 + $0x730] sm:$0xff] %v636
                %v638 = vld [vmem:[%s174 + $0xe68] sm:$0xff]
                %639 = vst [vmem:[%s175 + $0x738] sm:$0xff] %v638
                %v640 = vld [vmem:[%s174 + $0xe80] sm:$0xff]
                %641 = vst [vmem:[%s175 + $0x740] sm:$0xff] %v640
                %v642 = vld [vmem:[%s174 + $0xe88] sm:$0xff]
                %643 = vst [vmem:[%s175 + $0x748] sm:$0xff] %v642
                %v644 = vld [vmem:[%s174 + $0xea0] sm:$0xff]
                %645 = vst [vmem:[%s175 + $0x750] sm:$0xff] %v644
                %v646 = vld [vmem:[%s174 + $0xea8] sm:$0xff]
                %647 = vst [vmem:[%s175 + $0x758] sm:$0xff] %v646
                %v648 = vld [vmem:[%s174 + $0xec0] sm:$0xff]
                %649 = vst [vmem:[%s175 + $0x760] sm:$0xff] %v648
                %v650 = vld [vmem:[%s174 + $0xec8] sm:$0xff]
                %651 = vst [vmem:[%s175 + $0x768] sm:$0xff] %v650
                %v652 = vld [vmem:[%s174 + $0xee0] sm:$0xff]
                %653 = vst [vmem:[%s175 + $0x770] sm:$0xff] %v652
                %v654 = vld [vmem:[%s174 + $0xee8] sm:$0xff]
                %655 = vst [vmem:[%s175 + $0x778] sm:$0xff] %v654
                %v656 = vld [vmem:[%s174 + $0xf00] sm:$0xff]
                %657 = vst [vmem:[%s175 + $0x780] sm:$0xff] %v656
                %v658 = vld [vmem:[%s174 + $0xf08] sm:$0xff]
                %659 = vst [vmem:[%s175 + $0x788] sm:$0xff] %v658
                %v660 = vld [vmem:[%s174 + $0xf20] sm:$0xff]
                %661 = vst [vmem:[%s175 + $0x790] sm:$0xff] %v660
                %v662 = vld [vmem:[%s174 + $0xf28] sm:$0xff]
                %663 = vst [vmem:[%s175 + $0x798] sm:$0xff] %v662
                %v664 = vld [vmem:[%s174 + $0xf40] sm:$0xff]
                %665 = vst [vmem:[%s175 + $0x7a0] sm:$0xff] %v664
                %v666 = vld [vmem:[%s174 + $0xf48] sm:$0xff]
                %667 = vst [vmem:[%s175 + $0x7a8] sm:$0xff] %v666
                %v668 = vld [vmem:[%s174 + $0xf60] sm:$0xff]
                %669 = vst [vmem:[%s175 + $0x7b0] sm:$0xff] %v668
                %v670 = vld [vmem:[%s174 + $0xf68] sm:$0xff]
                %671 = vst [vmem:[%s175 + $0x7b8] sm:$0xff] %v670
                %v672 = vld [vmem:[%s174 + $0xf80] sm:$0xff]
                %673 = vst [vmem:[%s175 + $0x7c0] sm:$0xff] %v672
                %v674 = vld [vmem:[%s174 + $0xf88] sm:$0xff]
                %675 = vst [vmem:[%s175 + $0x7c8] sm:$0xff] %v674
                %v676 = vld [vmem:[%s174 + $0xfa0] sm:$0xff]
                %677 = vst [vmem:[%s175 + $0x7d0] sm:$0xff] %v676
                %v678 = vld [vmem:[%s174 + $0xfa8] sm:$0xff]
                %679 = vst [vmem:[%s175 + $0x7d8] sm:$0xff] %v678
                %v680 = vld [vmem:[%s174 + $0xfc0] sm:$0xff]
                %681 = vst [vmem:[%s175 + $0x7e0] sm:$0xff] %v680
                %v682 = vld [vmem:[%s174 + $0xfc8] sm:$0xff]
                %683 = vst [vmem:[%s175 + $0x7e8] sm:$0xff] %v682
                %v684 = vld [vmem:[%s174 + $0xfe0] sm:$0xff]
                %685 = vst [vmem:[%s175 + $0x7f0] sm:$0xff] %v684
                %v686 = vld [vmem:[%s174 + $0xfe8] sm:$0xff]
                %687 = vst [vmem:[%s175 + $0x7f8] sm:$0xff] %v686
              $region37: #{pointnet_forward.21} parent=31 // loop_footer
                %s173 = sadd.s32 1, %s169
              $region38: #{pointnet_forward.21} parent=31 // loop_footer_branch
                %168 = sbr.rel target = $region34
              $region39: #{pointnet_forward.21} parent=31 // loop_exit
                _
            $region32: #{pointnet_forward.21} parent=27 // pred_fallthru
              _
            // Predicated region
            $region40: #{pointnet_forward.21} parent=27 // pred_check
              _
            $region41: #{pointnet_forward.21} parent=27 // pred_check_branch
              %689 = sbr.rel target = $region43
            $region42: #{pointnet_forward.21} parent=27 // pred_region
              _
            $region43: #{pointnet_forward.21} parent=27 // pred_fallthru
              _
          $region28: #{pointnet_forward.21} parent=23 // pred_fallthru
            _
          %690 = vnop
        $region24: #{pointnet_forward.21} parent=19 // pred_fallthru
          _
        // Predicated region
        $region44: #{pointnet_forward.21} parent=19 // pred_check
          %p691 = pneg %p93
        $region45: #{pointnet_forward.21} parent=19 // pred_check_branch
          %693 = sbr.rel (%p691) target = $region47
        $region46: #{pointnet_forward.21} parent=19 // pred_region
          %s694 = smul.u32 2, %s17
          %p695 = scmp.lt.s32.totalorder %s694, 3
          %s696 = scalar_select %p695, %s694, 3
          %s697 = scalar_lea.vmem %s2, %s696
          %s698 = smul.u32 2, %s17
        $region47: #{pointnet_forward.21} parent=19 // pred_fallthru
          _
      $region20: #{pointnet_forward.21} parent=5 // pred_fallthru
        _
      %p699 = scmp.le.s32.totalorder 1, %s9
      %p700 = scmp.lt.s32.totalorder %s9, 3
      %p701 = pnand %p699, %p700
      %p702 = pneg %p701
      // Predicated region
      $region48: #{pointnet_forward.21} parent=5 // pred_check
        _
      $region49: #{pointnet_forward.21} parent=5 // pred_check_branch
        %704 = sbr.rel (%p701) target = $region51
      $region50: #{pointnet_forward.21} parent=5 // pred_region
        %s705 = ssub.s32 %s9, 1
        %s706 = sand.u32 %s60, 1
        %s707 = sand.u32 %s60, 1
        %s708 = smul.addr %s707, 2048
        %s709 = scalar_lea.vmem [#allocation2], %s708
        // Predicated region
        $region52: #{pointnet_forward.21} parent=50 // pred_check
          %p710 = pneg %p73
        $region53: #{pointnet_forward.21} parent=50 // pred_check_branch
          %712 = sbr.rel (%p710) target = $region55
        $region54: #{pointnet_forward.21} parent=50 // pred_region
          _
        $region55: #{pointnet_forward.21} parent=50 // pred_fallthru
          _
        %p713 = scmp.lt.s32.totalorder %s18, 0
        %s714 = scalar_select %p713, %s18, 0
        %s715 = smul.addr %s714, 8
        %s716 = smul.addr %s715, 2
        %s717 = scalar_lea.vmem %s0, %s716
        %p718 = pneg %p47
        %p719 = pneg %p44
        %s720 = sand.u32 %s60, 1
        %s721 = sand.u32 %s60, 1
        %s722 = smul.addr %s721, 2048
        %s723 = scalar_lea.vmem [#allocation2], %s722
        %p724 = pneg %p73
        %p725 = pneg %p70
        %s726 = smul.u32 2, %s19
        %p727 = scmp.lt.s32.totalorder %s726, 3
        %s728 = scalar_select %p727, %s726, 3
        %s729 = scalar_lea.vmem %s2, %s728
        %p730 = pneg %p99
        %p731 = pneg %p96
        %p732 = pneg %p127
        %p733 = pneg %p124
        %s734 = smul.u32 2, %s19
        %p735 = scmp.lt.s32.totalorder %s18, 0
        %s736 = scalar_select %p735, %s18, 0
        %p737 = scmp.lt.s32.totalorder %s734, 3
        %s738 = scalar_select %p737, %s734, 3
        %s739 = smul.addr %s736, 4
        %s740 = sadd.s32 %s738, %s739
        %s741 = smul.addr %s740, 2
        %s742 = scalar_lea.vmem %s3, %s741
        %p743 = scmp.lt.s32.totalorder %s18, 0
        %s744 = scalar_select %p743, %s18, 0
        %s745 = smul.addr %s744, 8
        %s746 = smul.addr %s745, 2
        %s747 = scalar_lea.vmem %s0, %s746
        %s748 = smul.u32 2, %s19
        %s749 = smul.u32 2, %s19
        %p750 = scmp.lt.s32.totalorder %s749, 3
        %s751 = scalar_select %p750, %s749, 3
        %s752 = scalar_lea.vmem %s2, %s751
        %s753 = smul.u32 2, %s19
        %s754 = smul.u32 2, %s19
        %p755 = scmp.lt.s32.totalorder %s18, 0
        %s756 = scalar_select %p755, %s18, 0
        %p757 = scmp.lt.s32.totalorder %s754, 3
        %s758 = scalar_select %p757, %s754, 3
        %s759 = smul.addr %s756, 4
        %s760 = sadd.s32 %s758, %s759
        %s761 = smul.addr %s760, 2
        %s762 = scalar_lea.vmem %s3, %s761
        %s763 = smul.u32 2, %s19
        %v764 = vld [vmem:[%s747] sm:$0xff]
        %v765 = vld [vmem:[%s747 + $0x8] sm:$0xff]
        %v766 = vld [vmem:[%s709] sm:$0xff]
        %v767 = vld [vmem:[%s709 + $0x8] sm:$0xff]
        %v768 = vld [vmem:[%s709 + $0x10] sm:$0xff]
        %v769 = vld [vmem:[%s709 + $0x18] sm:$0xff]
        %v770 = vld [vmem:[%s709 + $0x20] sm:$0xff]
        %v771 = vld [vmem:[%s709 + $0x28] sm:$0xff]
        %v772 = vld [vmem:[%s709 + $0x30] sm:$0xff]
        %v773 = vld [vmem:[%s709 + $0x38] sm:$0xff]
        %v774 = vld [vmem:[%s709 + $0x40] sm:$0xff]
        %v775 = vld [vmem:[%s709 + $0x48] sm:$0xff]
        %v776 = vld [vmem:[%s709 + $0x50] sm:$0xff]
        %v777 = vld [vmem:[%s709 + $0x58] sm:$0xff]
        %v778 = vld [vmem:[%s709 + $0x60] sm:$0xff]
        %v779 = vld [vmem:[%s709 + $0x68] sm:$0xff]
        %v780 = vld [vmem:[%s709 + $0x70] sm:$0xff]
        %v781 = vld [vmem:[%s709 + $0x78] sm:$0xff]
        %v782 = vld [vmem:[%s709 + $0x80] sm:$0xff]
        %v783 = vld [vmem:[%s709 + $0x88] sm:$0xff]
        %v784 = vld [vmem:[%s709 + $0x90] sm:$0xff]
        %v785 = vld [vmem:[%s709 + $0x98] sm:$0xff]
        %v786 = vld [vmem:[%s709 + $0xa0] sm:$0xff]
        %v787 = vld [vmem:[%s709 + $0xa8] sm:$0xff]
        %v788 = vld [vmem:[%s709 + $0xb0] sm:$0xff]
        %v789 = vld [vmem:[%s709 + $0xb8] sm:$0xff]
        %v790 = vld [vmem:[%s709 + $0xc0] sm:$0xff]
        %v791 = vld [vmem:[%s709 + $0xc8] sm:$0xff]
        %v792 = vld [vmem:[%s709 + $0xd0] sm:$0xff]
        %v793 = vld [vmem:[%s709 + $0xd8] sm:$0xff]
        %v794 = vld [vmem:[%s709 + $0xe0] sm:$0xff]
        %v795 = vld [vmem:[%s709 + $0xe8] sm:$0xff]
        %v796 = vld [vmem:[%s709 + $0xf0] sm:$0xff]
        %v797 = vld [vmem:[%s709 + $0xf8] sm:$0xff]
        %v798 = vld [vmem:[%s709 + $0x100] sm:$0xff]
        %v799 = vld [vmem:[%s709 + $0x108] sm:$0xff]
        %v800 = vld [vmem:[%s709 + $0x110] sm:$0xff]
        %v801 = vld [vmem:[%s709 + $0x118] sm:$0xff]
        %v802 = vld [vmem:[%s709 + $0x120] sm:$0xff]
        %v803 = vld [vmem:[%s709 + $0x128] sm:$0xff]
        %v804 = vld [vmem:[%s709 + $0x130] sm:$0xff]
        %v805 = vld [vmem:[%s709 + $0x138] sm:$0xff]
        %v806 = vld [vmem:[%s709 + $0x140] sm:$0xff]
        %v807 = vld [vmem:[%s709 + $0x148] sm:$0xff]
        %v808 = vld [vmem:[%s709 + $0x150] sm:$0xff]
        %v809 = vld [vmem:[%s709 + $0x158] sm:$0xff]
        %v810 = vld [vmem:[%s709 + $0x160] sm:$0xff]
        %v811 = vld [vmem:[%s709 + $0x168] sm:$0xff]
        %v812 = vld [vmem:[%s709 + $0x170] sm:$0xff]
        %v813 = vld [vmem:[%s709 + $0x178] sm:$0xff]
        %v814 = vld [vmem:[%s709 + $0x180] sm:$0xff]
        %v815 = vld [vmem:[%s709 + $0x188] sm:$0xff]
        %v816 = vld [vmem:[%s709 + $0x190] sm:$0xff]
        %v817 = vld [vmem:[%s709 + $0x198] sm:$0xff]
        %v818 = vld [vmem:[%s709 + $0x1a0] sm:$0xff]
        %v819 = vld [vmem:[%s709 + $0x1a8] sm:$0xff]
        %v820 = vld [vmem:[%s709 + $0x1b0] sm:$0xff]
        %v821 = vld [vmem:[%s709 + $0x1b8] sm:$0xff]
        %v822 = vld [vmem:[%s709 + $0x1c0] sm:$0xff]
        %v823 = vld [vmem:[%s709 + $0x1c8] sm:$0xff]
        %v824 = vld [vmem:[%s709 + $0x1d0] sm:$0xff]
        %v825 = vld [vmem:[%s709 + $0x1d8] sm:$0xff]
        %v826 = vld [vmem:[%s709 + $0x1e0] sm:$0xff]
        %v827 = vld [vmem:[%s709 + $0x1e8] sm:$0xff]
        %v828 = vld [vmem:[%s709 + $0x1f0] sm:$0xff]
        %v829 = vld [vmem:[%s709 + $0x1f8] sm:$0xff]
        %v830 = vld [vmem:[%s709 + $0x200] sm:$0xff]
        %v831 = vld [vmem:[%s709 + $0x208] sm:$0xff]
        %v832 = vld [vmem:[%s709 + $0x210] sm:$0xff]
        %v833 = vld [vmem:[%s709 + $0x218] sm:$0xff]
        %v834 = vld [vmem:[%s709 + $0x220] sm:$0xff]
        %v835 = vld [vmem:[%s709 + $0x228] sm:$0xff]
        %v836 = vld [vmem:[%s709 + $0x230] sm:$0xff]
        %v837 = vld [vmem:[%s709 + $0x238] sm:$0xff]
        %v838 = vld [vmem:[%s709 + $0x240] sm:$0xff]
        %v839 = vld [vmem:[%s709 + $0x248] sm:$0xff]
        %v840 = vld [vmem:[%s709 + $0x250] sm:$0xff]
        %v841 = vld [vmem:[%s709 + $0x258] sm:$0xff]
        %v842 = vld [vmem:[%s709 + $0x260] sm:$0xff]
        %v843 = vld [vmem:[%s709 + $0x268] sm:$0xff]
        %v844 = vld [vmem:[%s709 + $0x270] sm:$0xff]
        %v845 = vld [vmem:[%s709 + $0x278] sm:$0xff]
        %v846 = vld [vmem:[%s709 + $0x280] sm:$0xff]
        %v847 = vld [vmem:[%s709 + $0x288] sm:$0xff]
        %v848 = vld [vmem:[%s709 + $0x290] sm:$0xff]
        %v849 = vld [vmem:[%s709 + $0x298] sm:$0xff]
        %v850 = vld [vmem:[%s709 + $0x2a0] sm:$0xff]
        %v851 = vld [vmem:[%s709 + $0x2a8] sm:$0xff]
        %v852 = vld [vmem:[%s709 + $0x2b0] sm:$0xff]
        %v853 = vld [vmem:[%s709 + $0x2b8] sm:$0xff]
        %v854 = vld [vmem:[%s709 + $0x2c0] sm:$0xff]
        %v855 = vld [vmem:[%s709 + $0x2c8] sm:$0xff]
        %v856 = vld [vmem:[%s709 + $0x2d0] sm:$0xff]
        %v857 = vld [vmem:[%s709 + $0x2d8] sm:$0xff]
        %v858 = vld [vmem:[%s709 + $0x2e0] sm:$0xff]
        %v859 = vld [vmem:[%s709 + $0x2e8] sm:$0xff]
        %v860 = vld [vmem:[%s709 + $0x2f0] sm:$0xff]
        %v861 = vld [vmem:[%s709 + $0x2f8] sm:$0xff]
        %v862 = vld [vmem:[%s709 + $0x300] sm:$0xff]
        %v863 = vld [vmem:[%s709 + $0x308] sm:$0xff]
        %v864 = vld [vmem:[%s709 + $0x310] sm:$0xff]
        %v865 = vld [vmem:[%s709 + $0x318] sm:$0xff]
        %v866 = vld [vmem:[%s709 + $0x320] sm:$0xff]
        %v867 = vld [vmem:[%s709 + $0x328] sm:$0xff]
        %v868 = vld [vmem:[%s709 + $0x330] sm:$0xff]
        %v869 = vld [vmem:[%s709 + $0x338] sm:$0xff]
        %v870 = vld [vmem:[%s709 + $0x340] sm:$0xff]
        %v871 = vld [vmem:[%s709 + $0x348] sm:$0xff]
        %v872 = vld [vmem:[%s709 + $0x350] sm:$0xff]
        %v873 = vld [vmem:[%s709 + $0x358] sm:$0xff]
        %v874 = vld [vmem:[%s709 + $0x360] sm:$0xff]
        %v875 = vld [vmem:[%s709 + $0x368] sm:$0xff]
        %v876 = vld [vmem:[%s709 + $0x370] sm:$0xff]
        %v877 = vld [vmem:[%s709 + $0x378] sm:$0xff]
        %v878 = vld [vmem:[%s709 + $0x380] sm:$0xff]
        %v879 = vld [vmem:[%s709 + $0x388] sm:$0xff]
        %v880 = vld [vmem:[%s709 + $0x390] sm:$0xff]
        %v881 = vld [vmem:[%s709 + $0x398] sm:$0xff]
        %v882 = vld [vmem:[%s709 + $0x3a0] sm:$0xff]
        %v883 = vld [vmem:[%s709 + $0x3a8] sm:$0xff]
        %v884 = vld [vmem:[%s709 + $0x3b0] sm:$0xff]
        %v885 = vld [vmem:[%s709 + $0x3b8] sm:$0xff]
        %v886 = vld [vmem:[%s709 + $0x3c0] sm:$0xff]
        %v887 = vld [vmem:[%s709 + $0x3c8] sm:$0xff]
        %v888 = vld [vmem:[%s709 + $0x3d0] sm:$0xff]
        %v889 = vld [vmem:[%s709 + $0x3d8] sm:$0xff]
        %v890 = vld [vmem:[%s709 + $0x3e0] sm:$0xff]
        %v891 = vld [vmem:[%s709 + $0x3e8] sm:$0xff]
        %v892 = vld [vmem:[%s709 + $0x3f0] sm:$0xff]
        %v893 = vld [vmem:[%s709 + $0x3f8] sm:$0xff]
        %v894 = vld [vmem:[%s709 + $0x400] sm:$0xff]
        %v895 = vld [vmem:[%s709 + $0x408] sm:$0xff]
        %v896 = vld [vmem:[%s709 + $0x410] sm:$0xff]
        %v897 = vld [vmem:[%s709 + $0x418] sm:$0xff]
        %v898 = vld [vmem:[%s709 + $0x420] sm:$0xff]
        %v899 = vld [vmem:[%s709 + $0x428] sm:$0xff]
        %v900 = vld [vmem:[%s709 + $0x430] sm:$0xff]
        %v901 = vld [vmem:[%s709 + $0x438] sm:$0xff]
        %v902 = vld [vmem:[%s709 + $0x440] sm:$0xff]
        %v903 = vld [vmem:[%s709 + $0x448] sm:$0xff]
        %v904 = vld [vmem:[%s709 + $0x450] sm:$0xff]
        %v905 = vld [vmem:[%s709 + $0x458] sm:$0xff]
        %v906 = vld [vmem:[%s709 + $0x460] sm:$0xff]
        %v907 = vld [vmem:[%s709 + $0x468] sm:$0xff]
        %v908 = vld [vmem:[%s709 + $0x470] sm:$0xff]
        %v909 = vld [vmem:[%s709 + $0x478] sm:$0xff]
        %v910 = vld [vmem:[%s709 + $0x480] sm:$0xff]
        %v911 = vld [vmem:[%s709 + $0x488] sm:$0xff]
        %v912 = vld [vmem:[%s709 + $0x490] sm:$0xff]
        %v913 = vld [vmem:[%s709 + $0x498] sm:$0xff]
        %v914 = vld [vmem:[%s709 + $0x4a0] sm:$0xff]
        %v915 = vld [vmem:[%s709 + $0x4a8] sm:$0xff]
        %v916 = vld [vmem:[%s709 + $0x4b0] sm:$0xff]
        %v917 = vld [vmem:[%s709 + $0x4b8] sm:$0xff]
        %v918 = vld [vmem:[%s709 + $0x4c0] sm:$0xff]
        %v919 = vld [vmem:[%s709 + $0x4c8] sm:$0xff]
        %v920 = vld [vmem:[%s709 + $0x4d0] sm:$0xff]
        %v921 = vld [vmem:[%s709 + $0x4d8] sm:$0xff]
        %v922 = vld [vmem:[%s709 + $0x4e0] sm:$0xff]
        %v923 = vld [vmem:[%s709 + $0x4e8] sm:$0xff]
        %v924 = vld [vmem:[%s709 + $0x4f0] sm:$0xff]
        %v925 = vld [vmem:[%s709 + $0x4f8] sm:$0xff]
        %v926 = vld [vmem:[%s709 + $0x500] sm:$0xff]
        %v927 = vld [vmem:[%s709 + $0x508] sm:$0xff]
        %v928 = vld [vmem:[%s709 + $0x510] sm:$0xff]
        %v929 = vld [vmem:[%s709 + $0x518] sm:$0xff]
        %v930 = vld [vmem:[%s709 + $0x520] sm:$0xff]
        %v931 = vld [vmem:[%s709 + $0x528] sm:$0xff]
        %v932 = vld [vmem:[%s709 + $0x530] sm:$0xff]
        %v933 = vld [vmem:[%s709 + $0x538] sm:$0xff]
        %v934 = vld [vmem:[%s709 + $0x540] sm:$0xff]
        %v935 = vld [vmem:[%s709 + $0x548] sm:$0xff]
        %v936 = vld [vmem:[%s709 + $0x550] sm:$0xff]
        %v937 = vld [vmem:[%s709 + $0x558] sm:$0xff]
        %v938 = vld [vmem:[%s709 + $0x560] sm:$0xff]
        %v939 = vld [vmem:[%s709 + $0x568] sm:$0xff]
        %v940 = vld [vmem:[%s709 + $0x570] sm:$0xff]
        %v941 = vld [vmem:[%s709 + $0x578] sm:$0xff]
        %v942 = vld [vmem:[%s709 + $0x580] sm:$0xff]
        %v943 = vld [vmem:[%s709 + $0x588] sm:$0xff]
        %v944 = vld [vmem:[%s709 + $0x590] sm:$0xff]
        %v945 = vld [vmem:[%s709 + $0x598] sm:$0xff]
        %v946 = vld [vmem:[%s709 + $0x5a0] sm:$0xff]
        %v947 = vld [vmem:[%s709 + $0x5a8] sm:$0xff]
        %v948 = vld [vmem:[%s709 + $0x5b0] sm:$0xff]
        %v949 = vld [vmem:[%s709 + $0x5b8] sm:$0xff]
        %v950 = vld [vmem:[%s709 + $0x5c0] sm:$0xff]
        %v951 = vld [vmem:[%s709 + $0x5c8] sm:$0xff]
        %v952 = vld [vmem:[%s709 + $0x5d0] sm:$0xff]
        %v953 = vld [vmem:[%s709 + $0x5d8] sm:$0xff]
        %v954 = vld [vmem:[%s709 + $0x5e0] sm:$0xff]
        %v955 = vld [vmem:[%s709 + $0x5e8] sm:$0xff]
        %v956 = vld [vmem:[%s709 + $0x5f0] sm:$0xff]
        %v957 = vld [vmem:[%s709 + $0x5f8] sm:$0xff]
        %v958 = vld [vmem:[%s709 + $0x600] sm:$0xff]
        %v959 = vld [vmem:[%s709 + $0x608] sm:$0xff]
        %v960 = vld [vmem:[%s709 + $0x610] sm:$0xff]
        %v961 = vld [vmem:[%s709 + $0x618] sm:$0xff]
        %v962 = vld [vmem:[%s709 + $0x620] sm:$0xff]
        %v963 = vld [vmem:[%s709 + $0x628] sm:$0xff]
        %v964 = vld [vmem:[%s709 + $0x630] sm:$0xff]
        %v965 = vld [vmem:[%s709 + $0x638] sm:$0xff]
        %v966 = vld [vmem:[%s709 + $0x640] sm:$0xff]
        %v967 = vld [vmem:[%s709 + $0x648] sm:$0xff]
        %v968 = vld [vmem:[%s709 + $0x650] sm:$0xff]
        %v969 = vld [vmem:[%s709 + $0x658] sm:$0xff]
        %v970 = vld [vmem:[%s709 + $0x660] sm:$0xff]
        %v971 = vld [vmem:[%s709 + $0x668] sm:$0xff]
        %v972 = vld [vmem:[%s709 + $0x670] sm:$0xff]
        %v973 = vld [vmem:[%s709 + $0x678] sm:$0xff]
        %v974 = vld [vmem:[%s709 + $0x680] sm:$0xff]
        %v975 = vld [vmem:[%s709 + $0x688] sm:$0xff]
        %v976 = vld [vmem:[%s709 + $0x690] sm:$0xff]
        %v977 = vld [vmem:[%s709 + $0x698] sm:$0xff]
        %v978 = vld [vmem:[%s709 + $0x6a0] sm:$0xff]
        %v979 = vld [vmem:[%s709 + $0x6a8] sm:$0xff]
        %v980 = vld [vmem:[%s709 + $0x6b0] sm:$0xff]
        %v981 = vld [vmem:[%s709 + $0x6b8] sm:$0xff]
        %v982 = vld [vmem:[%s709 + $0x6c0] sm:$0xff]
        %v983 = vld [vmem:[%s709 + $0x6c8] sm:$0xff]
        %v984 = vld [vmem:[%s709 + $0x6d0] sm:$0xff]
        %v985 = vld [vmem:[%s709 + $0x6d8] sm:$0xff]
        %v986 = vld [vmem:[%s709 + $0x6e0] sm:$0xff]
        %v987 = vld [vmem:[%s709 + $0x6e8] sm:$0xff]
        %v988 = vld [vmem:[%s709 + $0x6f0] sm:$0xff]
        %v989 = vld [vmem:[%s709 + $0x6f8] sm:$0xff]
        %v990 = vld [vmem:[%s709 + $0x700] sm:$0xff]
        %v991 = vld [vmem:[%s709 + $0x708] sm:$0xff]
        %v992 = vld [vmem:[%s709 + $0x710] sm:$0xff]
        %v993 = vld [vmem:[%s709 + $0x718] sm:$0xff]
        %v994 = vld [vmem:[%s709 + $0x720] sm:$0xff]
        %v995 = vld [vmem:[%s709 + $0x728] sm:$0xff]
        %v996 = vld [vmem:[%s709 + $0x730] sm:$0xff]
        %v997 = vld [vmem:[%s709 + $0x738] sm:$0xff]
        %v998 = vld [vmem:[%s709 + $0x740] sm:$0xff]
        %v999 = vld [vmem:[%s709 + $0x748] sm:$0xff]
        %v1000 = vld [vmem:[%s709 + $0x750] sm:$0xff]
        %v1001 = vld [vmem:[%s709 + $0x758] sm:$0xff]
        %v1002 = vld [vmem:[%s709 + $0x760] sm:$0xff]
        %v1003 = vld [vmem:[%s709 + $0x768] sm:$0xff]
        %v1004 = vld [vmem:[%s709 + $0x770] sm:$0xff]
        %v1005 = vld [vmem:[%s709 + $0x778] sm:$0xff]
        %v1006 = vld [vmem:[%s709 + $0x780] sm:$0xff]
        %v1007 = vld [vmem:[%s709 + $0x788] sm:$0xff]
        %v1008 = vld [vmem:[%s709 + $0x790] sm:$0xff]
        %v1009 = vld [vmem:[%s709 + $0x798] sm:$0xff]
        %v1010 = vld [vmem:[%s709 + $0x7a0] sm:$0xff]
        %v1011 = vld [vmem:[%s709 + $0x7a8] sm:$0xff]
        %v1012 = vld [vmem:[%s709 + $0x7b0] sm:$0xff]
        %v1013 = vld [vmem:[%s709 + $0x7b8] sm:$0xff]
        %v1014 = vld [vmem:[%s709 + $0x7c0] sm:$0xff]
        %v1015 = vld [vmem:[%s709 + $0x7c8] sm:$0xff]
        %v1016 = vld [vmem:[%s709 + $0x7d0] sm:$0xff]
        %v1017 = vld [vmem:[%s709 + $0x7d8] sm:$0xff]
        %v1018 = vld [vmem:[%s709 + $0x7e0] sm:$0xff]
        %v1019 = vld [vmem:[%s709 + $0x7e8] sm:$0xff]
        %v1020 = vld [vmem:[%s709 + $0x7f0] sm:$0xff]
        %v1021 = vld [vmem:[%s709 + $0x7f8] sm:$0xff]
        %v1022 = vld [vmem:[%s752] sm:$0x3]
        %v1024 = vlaneseq
        %v1025 = vshrl.u32 %v1024, 7
        %v1026 = vsub.s32 0, %v1025
        %v1027 = vrot.slane %v1022, %v1026
        %v1028 = vlaneseq
        %v1029 = vshrl.u32 %v1028, 7
        %v1030 = vsub.s32 1, %v1029
        %v1031 = vrot.slane %v1022, %v1030
        %v1036 = vcombine.high %v764, %v764
        %v1038 = vunpack.c.l.s4 1983009808
        %v1039 = vunpack.c.0.s8 %v1038
        %v1040 = vlaneseq
        %v1041 = vshrl.u32 %v1040, 7
        %v1042 = vsub.s32 %v1039, %v1041
        %v1043 = vrot.slane %v764, %v1042
        %v1045 = vunpack.c.l.s4 1983009808
        %v1046 = vunpack.c.0.s8 %v1045
        %v1047 = vlaneseq
        %v1048 = vshrl.u32 %v1047, 7
        %v1049 = vsub.s32 %v1046, %v1048
        %v1050 = vrot.slane %v1036, %v1049
        %v1051 = vcombine.high %v1043, %v1043
        %v1052 = vcombine.high %v1050, %v1050
        %v1053 = vcombine.high %v765, %v765
        %v1055 = vunpack.c.l.s4 1983009808
        %v1056 = vunpack.c.0.s8 %v1055
        %v1057 = vlaneseq
        %v1058 = vshrl.u32 %v1057, 7
        %v1059 = vsub.s32 %v1056, %v1058
        %v1060 = vrot.slane %v765, %v1059
        %v1062 = vunpack.c.l.s4 1983009808
        %v1063 = vunpack.c.0.s8 %v1062
        %v1064 = vlaneseq
        %v1065 = vshrl.u32 %v1064, 7
        %v1066 = vsub.s32 %v1063, %v1065
        %v1067 = vrot.slane %v1053, %v1066
        %v1068 = vcombine.high %v1060, %v1060
        %v1069 = vcombine.high %v1067, %v1067
        %1078 = vmatprep.subr.mxu0 %v767
        %1079 = vmatpush1.msra.mxu0 %v766
        %1080 = vmatprep.subr.mxu0 %v769
        %1081 = vmatpush1.msra.mxu0 %v768
        %1082 = vmatprep.subr.mxu0 %v771
        %1083 = vmatpush1.msra.mxu0 %v770
        %1084 = vmatprep.subr.mxu0 %v773
        %1085 = vmatpush1.msra.mxu0 %v772
        %1086 = vmatprep.subr.mxu0 %v775
        %1087 = vmatpush1.msra.mxu0 %v774
        %1088 = vmatprep.subr.mxu0 %v777
        %1089 = vmatpush1.msra.mxu0 %v776
        %1090 = vmatprep.subr.mxu0 %v779
        %1091 = vmatpush1.msra.mxu0 %v778
        %1092 = vmatprep.subr.mxu0 %v781
        %1093 = vmatpush1.msra.mxu0 %v780
        %1094 = vmatprep.subr.mxu0 %v783
        %1095 = vmatpush1.msra.mxu0 %v782
        %1096 = vmatprep.subr.mxu0 %v785
        %1097 = vmatpush1.msra.mxu0 %v784
        %1098 = vmatprep.subr.mxu0 %v787
        %1099 = vmatpush1.msra.mxu0 %v786
        %1100 = vmatprep.subr.mxu0 %v789
        %1101 = vmatpush1.msra.mxu0 %v788
        %1102 = vmatprep.subr.mxu0 %v791
        %1103 = vmatpush1.msra.mxu0 %v790
        %1104 = vmatprep.subr.mxu0 %v793
        %1105 = vmatpush1.msra.mxu0 %v792
        %1106 = vmatprep.subr.mxu0 %v795
        %1107 = vmatpush1.msra.mxu0 %v794
        %1108 = vmatprep.subr.mxu0 %v797
        %1109 = vmatpush1.msra.mxu0 %v796
        %1110 = vmatprep.subr.mxu0 %v799
        %1111 = vmatpush1.msra.mxu0 %v798
        %1112 = vmatprep.subr.mxu0 %v801
        %1113 = vmatpush1.msra.mxu0 %v800
        %1114 = vmatprep.subr.mxu0 %v803
        %1115 = vmatpush1.msra.mxu0 %v802
        %1116 = vmatprep.subr.mxu0 %v805
        %1117 = vmatpush1.msra.mxu0 %v804
        %1118 = vmatprep.subr.mxu0 %v807
        %1119 = vmatpush1.msra.mxu0 %v806
        %1120 = vmatprep.subr.mxu0 %v809
        %1121 = vmatpush1.msra.mxu0 %v808
        %1122 = vmatprep.subr.mxu0 %v811
        %1123 = vmatpush1.msra.mxu0 %v810
        %1124 = vmatprep.subr.mxu0 %v813
        %1125 = vmatpush1.msra.mxu0 %v812
        %1126 = vmatprep.subr.mxu0 %v815
        %1127 = vmatpush1.msra.mxu0 %v814
        %1128 = vmatprep.subr.mxu0 %v817
        %1129 = vmatpush1.msra.mxu0 %v816
        %1130 = vmatprep.subr.mxu0 %v819
        %1131 = vmatpush1.msra.mxu0 %v818
        %1132 = vmatprep.subr.mxu0 %v821
        %1133 = vmatpush1.msra.mxu0 %v820
        %1134 = vmatprep.subr.mxu0 %v823
        %1135 = vmatpush1.msra.mxu0 %v822
        %1136 = vmatprep.subr.mxu0 %v825
        %1137 = vmatpush1.msra.mxu0 %v824
        %1138 = vmatprep.subr.mxu0 %v827
        %1139 = vmatpush1.msra.mxu0 %v826
        %1140 = vmatprep.subr.mxu0 %v829
        %1141 = vmatpush1.msra.mxu0 %v828
        %1142 = vmatprep.mubr.f32.mxu0 %v1051
        %1143 = vmatmul.mubr.f32.gmra.mrb[0].mxu0 %v1043
        %v1144 = vpop.f32.mrb[0].mxu0
        %v1145 = vadd.f32 %v1027, %v1144
        %v1146 = vpop.f32.mrb[0].mxu0
        %v1147 = vadd.f32 %v1031, %v1146
        %1148 = vdwg.mxu0
        %1149 = vmatprep.subr.mxu0 %v831
        %1150 = vmatpush1.msra.mxu0 %v830
        %1151 = vmatprep.subr.mxu0 %v833
        %1152 = vmatpush1.msra.mxu0 %v832
        %1153 = vmatprep.subr.mxu0 %v835
        %1154 = vmatpush1.msra.mxu0 %v834
        %1155 = vmatprep.subr.mxu0 %v837
        %1156 = vmatpush1.msra.mxu0 %v836
        %1157 = vmatprep.subr.mxu0 %v839
        %1158 = vmatpush1.msra.mxu0 %v838
        %1159 = vmatprep.subr.mxu0 %v841
        %1160 = vmatpush1.msra.mxu0 %v840
        %1161 = vmatprep.subr.mxu0 %v843
        %1162 = vmatpush1.msra.mxu0 %v842
        %1163 = vmatprep.subr.mxu0 %v845
        %1164 = vmatpush1.msra.mxu0 %v844
        %1165 = vmatprep.subr.mxu0 %v847
        %1166 = vmatpush1.msra.mxu0 %v846
        %1167 = vmatprep.subr.mxu0 %v849
        %1168 = vmatpush1.msra.mxu0 %v848
        %1169 = vmatprep.subr.mxu0 %v851
        %1170 = vmatpush1.msra.mxu0 %v850
        %1171 = vmatprep.subr.mxu0 %v853
        %1172 = vmatpush1.msra.mxu0 %v852
        %1173 = vmatprep.subr.mxu0 %v855
        %1174 = vmatpush1.msra.mxu0 %v854
        %1175 = vmatprep.subr.mxu0 %v857
        %1176 = vmatpush1.msra.mxu0 %v856
        %1177 = vmatprep.subr.mxu0 %v859
        %1178 = vmatpush1.msra.mxu0 %v858
        %1179 = vmatprep.subr.mxu0 %v861
        %1180 = vmatpush1.msra.mxu0 %v860
        %1181 = vmatprep.subr.mxu0 %v863
        %1182 = vmatpush1.msra.mxu0 %v862
        %1183 = vmatprep.subr.mxu0 %v865
        %1184 = vmatpush1.msra.mxu0 %v864
        %1185 = vmatprep.subr.mxu0 %v867
        %1186 = vmatpush1.msra.mxu0 %v866
        %1187 = vmatprep.subr.mxu0 %v869
        %1188 = vmatpush1.msra.mxu0 %v868
        %1189 = vmatprep.subr.mxu0 %v871
        %1190 = vmatpush1.msra.mxu0 %v870
        %1191 = vmatprep.subr.mxu0 %v873
        %1192 = vmatpush1.msra.mxu0 %v872
        %1193 = vmatprep.subr.mxu0 %v875
        %1194 = vmatpush1.msra.mxu0 %v874
        %1195 = vmatprep.subr.mxu0 %v877
        %1196 = vmatpush1.msra.mxu0 %v876
        %1197 = vmatprep.subr.mxu0 %v879
        %1198 = vmatpush1.msra.mxu0 %v878
        %1199 = vmatprep.subr.mxu0 %v881
        %1200 = vmatpush1.msra.mxu0 %v880
        %1201 = vmatprep.subr.mxu0 %v883
        %1202 = vmatpush1.msra.mxu0 %v882
        %1203 = vmatprep.subr.mxu0 %v885
        %1204 = vmatpush1.msra.mxu0 %v884
        %1205 = vmatprep.subr.mxu0 %v887
        %1206 = vmatpush1.msra.mxu0 %v886
        %1207 = vmatprep.subr.mxu0 %v889
        %1208 = vmatpush1.msra.mxu0 %v888
        %1209 = vmatprep.subr.mxu0 %v891
        %1210 = vmatpush1.msra.mxu0 %v890
        %1211 = vmatprep.subr.mxu0 %v893
        %1212 = vmatpush1.msra.mxu0 %v892
        %1213 = vmatprep.mubr.f32.mxu0 %v1052
        %1214 = vmatmul.mubr.f32.gmra.mrb[0].mxu0 %v1050
        %v1215 = vpop.f32.mrb[0].mxu0
        %v1216 = vadd.f32 %v1145, %v1215
        %v1217 = vpop.f32.mrb[0].mxu0
        %v1218 = vadd.f32 %v1147, %v1217
        %1219 = vdwg.mxu0
        %1220 = vmatprep.subr.mxu0 %v895
        %1221 = vmatpush1.msra.mxu0 %v894
        %1222 = vmatprep.subr.mxu0 %v897
        %1223 = vmatpush1.msra.mxu0 %v896
        %1224 = vmatprep.subr.mxu0 %v899
        %1225 = vmatpush1.msra.mxu0 %v898
        %1226 = vmatprep.subr.mxu0 %v901
        %1227 = vmatpush1.msra.mxu0 %v900
        %1228 = vmatprep.subr.mxu0 %v903
        %1229 = vmatpush1.msra.mxu0 %v902
        %1230 = vmatprep.subr.mxu0 %v905
        %1231 = vmatpush1.msra.mxu0 %v904
        %1232 = vmatprep.subr.mxu0 %v907
        %1233 = vmatpush1.msra.mxu0 %v906
        %1234 = vmatprep.subr.mxu0 %v909
        %1235 = vmatpush1.msra.mxu0 %v908
        %1236 = vmatprep.subr.mxu0 %v911
        %1237 = vmatpush1.msra.mxu0 %v910
        %1238 = vmatprep.subr.mxu0 %v913
        %1239 = vmatpush1.msra.mxu0 %v912
        %1240 = vmatprep.subr.mxu0 %v915
        %1241 = vmatpush1.msra.mxu0 %v914
        %1242 = vmatprep.subr.mxu0 %v917
        %1243 = vmatpush1.msra.mxu0 %v916
        %1244 = vmatprep.subr.mxu0 %v919
        %1245 = vmatpush1.msra.mxu0 %v918
        %1246 = vmatprep.subr.mxu0 %v921
        %1247 = vmatpush1.msra.mxu0 %v920
        %1248 = vmatprep.subr.mxu0 %v923
        %1249 = vmatpush1.msra.mxu0 %v922
        %1250 = vmatprep.subr.mxu0 %v925
        %1251 = vmatpush1.msra.mxu0 %v924
        %1252 = vmatprep.subr.mxu0 %v927
        %1253 = vmatpush1.msra.mxu0 %v926
        %1254 = vmatprep.subr.mxu0 %v929
        %1255 = vmatpush1.msra.mxu0 %v928
        %1256 = vmatprep.subr.mxu0 %v931
        %1257 = vmatpush1.msra.mxu0 %v930
        %1258 = vmatprep.subr.mxu0 %v933
        %1259 = vmatpush1.msra.mxu0 %v932
        %1260 = vmatprep.subr.mxu0 %v935
        %1261 = vmatpush1.msra.mxu0 %v934
        %1262 = vmatprep.subr.mxu0 %v937
        %1263 = vmatpush1.msra.mxu0 %v936
        %1264 = vmatprep.subr.mxu0 %v939
        %1265 = vmatpush1.msra.mxu0 %v938
        %1266 = vmatprep.subr.mxu0 %v941
        %1267 = vmatpush1.msra.mxu0 %v940
        %1268 = vmatprep.subr.mxu0 %v943
        %1269 = vmatpush1.msra.mxu0 %v942
        %1270 = vmatprep.subr.mxu0 %v945
        %1271 = vmatpush1.msra.mxu0 %v944
        %1272 = vmatprep.subr.mxu0 %v947
        %1273 = vmatpush1.msra.mxu0 %v946
        %1274 = vmatprep.subr.mxu0 %v949
        %1275 = vmatpush1.msra.mxu0 %v948
        %1276 = vmatprep.subr.mxu0 %v951
        %1277 = vmatpush1.msra.mxu0 %v950
        %1278 = vmatprep.subr.mxu0 %v953
        %1279 = vmatpush1.msra.mxu0 %v952
        %1280 = vmatprep.subr.mxu0 %v955
        %1281 = vmatpush1.msra.mxu0 %v954
        %1282 = vmatprep.subr.mxu0 %v957
        %1283 = vmatpush1.msra.mxu0 %v956
        %1284 = vmatprep.mubr.f32.mxu0 %v1068
        %1285 = vmatmul.mubr.f32.gmra.mrb[0].mxu0 %v1060
        %v1286 = vpop.f32.mrb[0].mxu0
        %v1287 = vadd.f32 %v1216, %v1286
        %v1288 = vpop.f32.mrb[0].mxu0
        %v1289 = vadd.f32 %v1218, %v1288
        %1290 = vdwg.mxu0
        %1291 = vmatprep.subr.mxu0 %v959
        %1292 = vmatpush1.msra.mxu0 %v958
        %1293 = vmatprep.subr.mxu0 %v961
        %1294 = vmatpush1.msra.mxu0 %v960
        %1295 = vmatprep.subr.mxu0 %v963
        %1296 = vmatpush1.msra.mxu0 %v962
        %1297 = vmatprep.subr.mxu0 %v965
        %1298 = vmatpush1.msra.mxu0 %v964
        %1299 = vmatprep.subr.mxu0 %v967
        %1300 = vmatpush1.msra.mxu0 %v966
        %1301 = vmatprep.subr.mxu0 %v969
        %1302 = vmatpush1.msra.mxu0 %v968
        %1303 = vmatprep.subr.mxu0 %v971
        %1304 = vmatpush1.msra.mxu0 %v970
        %1305 = vmatprep.subr.mxu0 %v973
        %1306 = vmatpush1.msra.mxu0 %v972
        %1307 = vmatprep.subr.mxu0 %v975
        %1308 = vmatpush1.msra.mxu0 %v974
        %1309 = vmatprep.subr.mxu0 %v977
        %1310 = vmatpush1.msra.mxu0 %v976
        %1311 = vmatprep.subr.mxu0 %v979
        %1312 = vmatpush1.msra.mxu0 %v978
        %1313 = vmatprep.subr.mxu0 %v981
        %1314 = vmatpush1.msra.mxu0 %v980
        %1315 = vmatprep.subr.mxu0 %v983
        %1316 = vmatpush1.msra.mxu0 %v982
        %1317 = vmatprep.subr.mxu0 %v985
        %1318 = vmatpush1.msra.mxu0 %v984
        %1319 = vmatprep.subr.mxu0 %v987
        %1320 = vmatpush1.msra.mxu0 %v986
        %1321 = vmatprep.subr.mxu0 %v989
        %1322 = vmatpush1.msra.mxu0 %v988
        %1323 = vmatprep.subr.mxu0 %v991
        %1324 = vmatpush1.msra.mxu0 %v990
        %1325 = vmatprep.subr.mxu0 %v993
        %1326 = vmatpush1.msra.mxu0 %v992
        %1327 = vmatprep.subr.mxu0 %v995
        %1328 = vmatpush1.msra.mxu0 %v994
        %1329 = vmatprep.subr.mxu0 %v997
        %1330 = vmatpush1.msra.mxu0 %v996
        %1331 = vmatprep.subr.mxu0 %v999
        %1332 = vmatpush1.msra.mxu0 %v998
        %1333 = vmatprep.subr.mxu0 %v1001
        %1334 = vmatpush1.msra.mxu0 %v1000
        %1335 = vmatprep.subr.mxu0 %v1003
        %1336 = vmatpush1.msra.mxu0 %v1002
        %1337 = vmatprep.subr.mxu0 %v1005
        %1338 = vmatpush1.msra.mxu0 %v1004
        %1339 = vmatprep.subr.mxu0 %v1007
        %1340 = vmatpush1.msra.mxu0 %v1006
        %1341 = vmatprep.subr.mxu0 %v1009
        %1342 = vmatpush1.msra.mxu0 %v1008
        %1343 = vmatprep.subr.mxu0 %v1011
        %1344 = vmatpush1.msra.mxu0 %v1010
        %1345 = vmatprep.subr.mxu0 %v1013
        %1346 = vmatpush1.msra.mxu0 %v1012
        %1347 = vmatprep.subr.mxu0 %v1015
        %1348 = vmatpush1.msra.mxu0 %v1014
        %1349 = vmatprep.subr.mxu0 %v1017
        %1350 = vmatpush1.msra.mxu0 %v1016
        %1351 = vmatprep.subr.mxu0 %v1019
        %1352 = vmatpush1.msra.mxu0 %v1018
        %1353 = vmatprep.subr.mxu0 %v1021
        %1354 = vmatpush1.msra.mxu0 %v1020
        %1355 = vmatprep.mubr.f32.mxu0 %v1069
        %1356 = vmatmul.mubr.f32.gmra.mrb[0].mxu0 %v1067
        %v1357 = vpop.f32.mrb[0].mxu0
        %v1358 = vadd.f32 %v1287, %v1357
        %v1359 = vpop.f32.mrb[0].mxu0
        %v1360 = vadd.f32 %v1289, %v1359
        %1361 = vdwg.mxu0
        %v1362 = vmax.f32 %v1358, 0.0
        %v1363 = vmax.f32 %v1360, 0.0
        %v1366 = vcombine.low %v1362, %v1363
        %v1368 = vunpack.c.l.s4 1983009808
        %v1369 = vunpack.c.0.s8 %v1368
        %v1370 = vlaneseq
        %v1371 = vshrl.u32 %v1370, 7
        %v1372 = vsub.s32 %v1369, %v1371
        %v1373 = vrot.slane %v1366, %v1372
        %1375 = vst [vmem:[%s762] sm:$0xf] %v1373
        %s1376 = smul.u32 2, %s19
        %p1377 = scmp.lt.s32.totalorder %s18, 0
        %s1378 = scalar_select %p1377, %s18, 0
        %p1379 = scmp.lt.s32.totalorder %s1376, 3
        %s1380 = scalar_select %p1379, %s1376, 3
        %s1381 = smul.addr %s1378, 4
        %s1382 = sadd.s32 %s1380, %s1381
        %s1383 = smul.addr %s1382, 2
        %s1384 = scalar_lea.vmem %s3, %s1383
        // Predicated region
        $region56: #{pointnet_forward.21} parent=50 // pred_check
          %p1385 = pneg %p124
        $region57: #{pointnet_forward.21} parent=50 // pred_check_branch
          %1387 = sbr.rel (%p1385) target = $region59
        $region58: #{pointnet_forward.21} parent=50 // pred_region
          %s1388 = smul.u32 2, %s19
        $region59: #{pointnet_forward.21} parent=50 // pred_fallthru
          _
      $region51: #{pointnet_forward.21} parent=5 // pred_fallthru
        _
      %p1389 = scmp.le.s32.totalorder 2, %s9
      // Predicated region
      $region60: #{pointnet_forward.21} parent=5 // pred_check
        %p1390 = pneg %p1389
      $region61: #{pointnet_forward.21} parent=5 // pred_check_branch
        %1392 = sbr.rel (%p1390) target = $region63
      $region62: #{pointnet_forward.21} parent=5 // pred_region
        %s1393 = ssub.s32 %s9, 2
        // Predicated region
        $region64: #{pointnet_forward.21} parent=62 // pred_check
          %p1394 = pneg %p130
        $region65: #{pointnet_forward.21} parent=62 // pred_check_branch
          %1396 = sbr.rel (%p1394) target = $region67
        $region66: #{pointnet_forward.21} parent=62 // pred_region
          %s1397 = smul.u32 2, %s21
          %p1398 = scmp.lt.s32.totalorder %s20, 0
          %s1399 = scalar_select %p1398, %s20, 0
          %p1400 = scmp.lt.s32.totalorder %s1397, 3
          %s1401 = scalar_select %p1400, %s1397, 3
          %s1402 = smul.addr %s1399, 4
          %s1403 = sadd.s32 %s1401, %s1402
          %s1404 = smul.addr %s1403, 2
          %s1405 = scalar_lea.vmem %s3, %s1404
        $region67: #{pointnet_forward.21} parent=62 // pred_fallthru
          _
      $region63: #{pointnet_forward.21} parent=5 // pred_fallthru
        _
    $region6: #{pointnet_forward.21} parent=1 // loop_footer
      %s13 = sadd.s32 1, %s9
    $region7: #{pointnet_forward.21} parent=1 // loop_footer_branch
      %8 = sbr.rel target = $region3
    $region8: #{pointnet_forward.21} parent=1 // loop_exit
      _

// kernel: pointnet_forward.25
$region0: #{pointnet_forward.25}
  #allocation0 [shape = 'u32[]', space=smem, size = 0x4, offset = 0x4, fixed_abs, tag = 'smem constant byte address 0x4 - core index']
  #allocation1 [shape = 'u32[144,128]{1,0:T(1,128)}', space=vmem, size = 0x12000, scoped, tag = 'internal scratch']
  %s0 = inlined_call_operand.vmem [shape: bf16[32,64], index: 0, kind: input, shape index: {}]
  %s1 = inlined_call_operand.vmem [shape: bf16[64,64], index: 1, kind: input, shape index: {}]
  %s2 = inlined_call_operand.vmem [shape: f32[1,64], index: 2, kind: input, shape index: {}]
  %s3 = inlined_call_operand.vmem [shape: bf16[32,64], index: 3, kind: output, shape index: {}]
  %s4 = sld [smem:[#allocation0]]
  $region22: #{pointnet_forward.25} parent=0
    _
  %s6 = ssub.s32 1, %s4
  %s7 = scalar_select 0, %s6, %s4
  // Predicated region
  $region2: #{pointnet_forward.25} parent=0 // pred_check
    _
  $region3: #{pointnet_forward.25} parent=0 // pred_check_branch
    %9 = sbr.rel (0) target = $region5
  $region4: #{pointnet_forward.25} parent=0 // pred_region
    _
  $region5: #{pointnet_forward.25} parent=0 // pred_fallthru
    _
  // Predicated region
  $region6: #{pointnet_forward.25} parent=0 // pred_check
    _
  $region7: #{pointnet_forward.25} parent=0 // pred_check_branch
    %11 = sbr.rel (0) target = $region9
  $region8: #{pointnet_forward.25} parent=0 // pred_region
    _
  $region9: #{pointnet_forward.25} parent=0 // pred_fallthru
    _
  // Predicated region
  $region10: #{pointnet_forward.25} parent=0 // pred_check
    _
  $region11: #{pointnet_forward.25} parent=0 // pred_check_branch
    %13 = sbr.rel (0) target = $region13
  $region12: #{pointnet_forward.25} parent=0 // pred_region
    _
  $region13: #{pointnet_forward.25} parent=0 // pred_fallthru
    _
  %v15 = vld [vmem:[%s0] sm:$0xf]
  %v16 = vld [vmem:[%s0 + $0x4] sm:$0xf]
  %v17 = vld [vmem:[%s0 + $0x8] sm:$0xf]
  %v18 = vld [vmem:[%s0 + $0xc] sm:$0xf]
  %v19 = vld [vmem:[%s1] sm:$0xf]
  %v20 = vld [vmem:[%s1 + $0x4] sm:$0xf]
  %v21 = vld [vmem:[%s1 + $0x8] sm:$0xf]
  %v22 = vld [vmem:[%s1 + $0xc] sm:$0xf]
  %v23 = vld [vmem:[%s1 + $0x10] sm:$0xf]
  %v24 = vld [vmem:[%s1 + $0x14] sm:$0xf]
  %v25 = vld [vmem:[%s1 + $0x18] sm:$0xf]
  %v26 = vld [vmem:[%s1 + $0x1c] sm:$0xf]
  %v27 = vld [vmem:[%s2] sm:$0x1]
  %v29 = vlaneseq
  %v30 = vshrl.u32 %v29, 7
  %v31 = vsub.s32 0, %v30
  %v32 = vrot.slane %v27, %v31
  %v38 = vunpack.c.l.b16 %v15
  %v39 = vunpack.c.l.b16 %v16
  %v40 = vunpack.c.l.b16 %v17
  %v41 = vunpack.c.l.b16 %v18
  %v42 = vpack.c.b16 %v39, %v38
  %v43 = vpack.c.b16 %v41, %v40
  %v52 = vunpack.c.l.b16 %v19
  %v53 = vunpack.c.l.b16 %v20
  %v54 = vunpack.c.l.b16 %v21
  %v55 = vunpack.c.l.b16 %v22
  %v56 = vunpack.c.l.b16 %v23
  %v57 = vunpack.c.l.b16 %v24
  %v58 = vunpack.c.l.b16 %v25
  %v59 = vunpack.c.l.b16 %v26
  %v60 = vpack.c.b16 %v53, %v52
  %v61 = vpack.c.b16 %v55, %v54
  %v62 = vpack.c.b16 %v57, %v56
  %v63 = vpack.c.b16 %v59, %v58
  %vm68 = vcmask 523264
  %v70 = vsel %vm68, %v42, 0
  %v73 = vsel %vm68, %v43, 0
  %75 = vmatprep.subr.bf16.mxu0 0
  %76 = vmatpush1.bf16.msra.mxu0 %v60
  %77 = vmatprep.subr.bf16.mxu0 0
  %78 = vmatpush1.bf16.msra.mxu0 %v61
  %79 = vmatprep.subr.bf16.mxu0 0
  %80 = vmatpush1.bf16.msra.mxu0 %v62
  %81 = vmatprep.subr.bf16.mxu0 0
  %82 = vmatpush1.bf16.msra.mxu0 %v63
  %83 = vmatprep.subr.bf16.mxu0 0
  %84 = vmatpush1.bf16.msra.mxu0 0
  %85 = vmatprep.subr.bf16.mxu0 0
  %86 = vmatpush1.bf16.msra.mxu0 0
  %87 = vmatprep.subr.bf16.mxu0 0
  %88 = vmatpush1.bf16.msra.mxu0 0
  %89 = vmatprep.subr.bf16.mxu0 0
  %90 = vmatpush1.bf16.msra.mxu0 0
  %91 = vmatprep.subr.bf16.mxu0 0
  %92 = vmatpush1.bf16.msra.mxu0 0
  %93 = vmatprep.subr.bf16.mxu0 0
  %94 = vmatpush1.bf16.msra.mxu0 0
  %95 = vmatprep.subr.bf16.mxu0 0
  %96 = vmatpush1.bf16.msra.mxu0 0
  %97 = vmatprep.subr.bf16.mxu0 0
  %98 = vmatpush1.bf16.msra.mxu0 0
  %99 = vmatprep.subr.bf16.mxu0 0
  %100 = vmatpush1.bf16.msra.mxu0 0
  %101 = vmatprep.subr.bf16.mxu0 0
  %102 = vmatpush1.bf16.msra.mxu0 0
  %103 = vmatprep.subr.bf16.mxu0 0
  %104 = vmatpush1.bf16.msra.mxu0 0
  %105 = vmatprep.subr.bf16.mxu0 0
  %106 = vmatpush1.bf16.msra.mxu0 0
  %107 = vmatprep.mubr.bf16.mxu0 0
  %108 = vmatmul.mubr.bf16.gmra.mrb[0].mxu0 %v70
  %v109 = vpop.f32.mrb[0].mxu0
  %v110 = vadd.f32 %v32, %v109
  %v111 = vpop.f32.mrb[0].mxu0
  %v112 = vpop.f32.mrb[0].mxu0
  %v113 = vadd.f32 %v32, %v112
  %v114 = vpop.f32.mrb[0].mxu0
  %115 = vmatprep.mubr.bf16.mxu0 0
  %116 = vmatmul.mubr.bf16.gmra.mrb[0].mxu0 %v73
  %v117 = vpop.f32.mrb[0].mxu0
  %v118 = vadd.f32 %v32, %v117
  %v119 = vpop.f32.mrb[0].mxu0
  %v120 = vpop.f32.mrb[0].mxu0
  %v121 = vadd.f32 %v32, %v120
  %v122 = vpop.f32.mrb[0].mxu0
  %123 = vdwg.mxu0
  %v124 = vmax.f32 %v110, 0.0
  %v125 = vmax.f32 %v113, 0.0
  %v126 = vmax.f32 %v118, 0.0
  %v127 = vmax.f32 %v121, 0.0
  %v128 = vpack.c.bf16 %v125, %v124
  %v129 = vpack.c.bf16 %v127, %v126
  %v132 = vunpack.c.l.b16 %v128
  %v133 = vunpack.c.h.b16 %v128
  %v134 = vunpack.c.l.b16 %v129
  %v135 = vunpack.c.h.b16 %v129
  %v136 = vpack.c.b16 %v132, %v132
  %v137 = vpack.c.b16 %v133, %v133
  %v138 = vpack.c.b16 %v134, %v134
  %v139 = vpack.c.b16 %v135, %v135
  %vm144 = vcmask 519168
  %145 = vst.msk [vmem:[%s3] sm:$0xf] %vm144, %v136
  %146 = vst.msk [vmem:[%s3 + $0x4] sm:$0xf] %vm144, %v137
  %147 = vst.msk [vmem:[%s3 + $0x8] sm:$0xf] %vm144, %v138
  %148 = vst.msk [vmem:[%s3 + $0xc] sm:$0xf] %vm144, %v139
  // Predicated region
  $region14: #{pointnet_forward.25} parent=0 // pred_check
    _
  $region15: #{pointnet_forward.25} parent=0 // pred_check_branch
    %150 = sbr.rel (0) target = $region17
  $region16: #{pointnet_forward.25} parent=0 // pred_region
    _
  $region17: #{pointnet_forward.25} parent=0 // pred_fallthru
    _
  // Predicated region
  $region18: #{pointnet_forward.25} parent=0 // pred_check
    _
  $region19: #{pointnet_forward.25} parent=0 // pred_check_branch
    %152 = sbr.rel (0) target = $region21
  $region20: #{pointnet_forward.25} parent=0 // pred_region
    _
  $region21: #{pointnet_forward.25} parent=0 // pred_fallthru
    _

// kernel: pointnet_forward.24
$region0: #{pointnet_forward.24}
  #allocation0 [shape = 'u32[]', space=smem, size = 0x4, offset = 0x4, fixed_abs, tag = 'smem constant byte address 0x4 - core index']
  #allocation1 [shape = 'u32[144,128]{1,0:T(1,128)}', space=vmem, size = 0x12000, scoped, tag = 'internal scratch']
  %s0 = inlined_call_operand.vmem [shape: bf16[2,16,3], index: 0, kind: input, shape index: {}]
  %s1 = inlined_call_operand.vmem [shape: bf16[2,3,64], index: 1, kind: input, shape index: {}]
  %s2 = inlined_call_operand.vmem [shape: f32[1,64], index: 2, kind: input, shape index: {}]
  %s3 = inlined_call_operand.vmem [shape: bf16[2,16,64], index: 3, kind: output, shape index: {}]
  %s4 = sld [smem:[#allocation0]]
  $region45: #{pointnet_forward.24} parent=0
    _
  %s6 = ssub.s32 1, %s4
  %s7 = scalar_select 0, %s6, %s4
  loop: start=0, step=1, limit=4
  $region2: #{pointnet_forward.24} parent=0 // loop_pre_header
    _
  $region3: #{pointnet_forward.24} parent=0 // loop_header
    %s9 = sphi 0, %s13
    %p10 = scmp.ge.s32.totalorder %s9, 4
    %s16 = sphi 0, %s28
    %s17 = sphi 0, %s24
    %s18 = sphi 0, %s16
    %s19 = sphi 0, %s17
    %s20 = sphi 0, %s18
    %s21 = sphi 0, %s19
    %s33 = sphi 0, %s35
    %s36 = sphi 0, %s33
    %s37 = sphi 0, %s36
    %s53 = sphi 0, %s37
    %s59 = sphi 0, %s61
    %s62 = sphi 0, %s59
    %s63 = sphi 0, %s62
    %s79 = sphi 0, %s63
    %s83 = sphi 0, %s83
    %s85 = sphi 0, %s83
    %s86 = sphi 0, %s85
    %s100 = sphi 0, %s86
    %s108 = sphi 0, %s110
    %s111 = sphi 0, %s108
    %s112 = sphi 0, %s111
    %s128 = sphi 0, %s112
  $region4: #{pointnet_forward.24} parent=0 // loop_header_branch
    %12 = sbr.rel (%p10) target = $region8
  $region5: #{pointnet_forward.24} parent=0 // loop_body
    %s14 = ssub.s32 %s9, 1
    %s15 = ssub.s32 %s9, 2
    %s22 = sadd.s32 1, %s17
    %p23 = scmp.ge.s32.totalorder %s22, 1
    %s24 = scalar_select %p23, 0, %s22
    %s25 = sadd.s32 1, %s16
    %s26 = scalar_select %p23, %s25, %s16
    %p27 = scmp.ge.s32.totalorder %s26, 2
    %s28 = scalar_select %p27, 0, %s26
    %s29 = ssub.s32 %s16, %s28
    %s30 = ssub.s32 %s17, %s24
    %s31 = sor.u32 %s29, %s30
    %p32 = scmp.eq.s32.totalorder %s31, 0
    %s34 = sadd.s32 %s33, 1
    %s35 = scalar_select %p32, %s33, %s34
    %p38 = pneg %p32
    %p39 = scmp.eq.s32.totalorder %s9, 1
    %p40 = por %p38, %p39
    %p41 = scmp.ne.s32.totalorder %s33, %s36
    %p42 = scmp.eq.s32.totalorder %s9, 0
    %p43 = por %p41, %p42
    %p44 = scmp.ne.s32.totalorder %s33, %s36
    %p45 = scmp.eq.s32.totalorder %s14, 1
    %p46 = por %p44, %p45
    %p47 = scmp.ne.s32.totalorder %s36, %s37
    %p48 = scmp.eq.s32.totalorder %s14, 0
    %p49 = por %p47, %p48
    %p50 = scmp.ne.s32.totalorder %s36, %s37
    %p51 = scmp.eq.s32.totalorder %s15, 1
    %p52 = por %p50, %p51
    %p54 = scmp.ne.s32.totalorder %s37, %s53
    %p55 = scmp.eq.s32.totalorder %s15, 0
    %p56 = por %p54, %p55
    %s57 = ssub.s32 %s16, %s28
    %p58 = scmp.eq.s32.totalorder %s57, 0
    %s60 = sadd.s32 %s59, 1
    %s61 = scalar_select %p58, %s59, %s60
    %p64 = pneg %p58
    %p65 = scmp.eq.s32.totalorder %s9, 1
    %p66 = por %p64, %p65
    %p67 = scmp.ne.s32.totalorder %s59, %s62
    %p68 = scmp.eq.s32.totalorder %s9, 0
    %p69 = por %p67, %p68
    %p70 = scmp.ne.s32.totalorder %s59, %s62
    %p71 = scmp.eq.s32.totalorder %s14, 1
    %p72 = por %p70, %p71
    %p73 = scmp.ne.s32.totalorder %s62, %s63
    %p74 = scmp.eq.s32.totalorder %s14, 0
    %p75 = por %p73, %p74
    %p76 = scmp.ne.s32.totalorder %s62, %s63
    %p77 = scmp.eq.s32.totalorder %s15, 1
    %p78 = por %p76, %p77
    %p80 = scmp.ne.s32.totalorder %s63, %s79
    %p81 = scmp.eq.s32.totalorder %s15, 0
    %p82 = por %p80, %p81
    %s84 = sadd.s32 %s83, 1
    %p87 = scmp.eq.s32.totalorder %s9, 1
    %p88 = scmp.ne.s32.totalorder %s83, %s85
    %p89 = scmp.eq.s32.totalorder %s9, 0
    %p90 = por %p88, %p89
    %p91 = scmp.ne.s32.totalorder %s83, %s85
    %p92 = scmp.eq.s32.totalorder %s14, 1
    %p93 = por %p91, %p92
    %p94 = scmp.ne.s32.totalorder %s85, %s86
    %p95 = scmp.eq.s32.totalorder %s14, 0
    %p96 = por %p94, %p95
    %p97 = scmp.ne.s32.totalorder %s85, %s86
    %p98 = scmp.eq.s32.totalorder %s15, 1
    %p99 = por %p97, %p98
    %p101 = scmp.ne.s32.totalorder %s86, %s100
    %p102 = scmp.eq.s32.totalorder %s15, 0
    %p103 = por %p101, %p102
    %s104 = ssub.s32 %s16, %s28
    %s105 = ssub.s32 %s17, %s24
    %s106 = sor.u32 %s104, %s105
    %p107 = scmp.eq.s32.totalorder %s106, 0
    %s109 = sadd.s32 %s108, 1
    %s110 = scalar_select %p107, %s108, %s109
    %p113 = pneg %p107
    %p114 = scmp.eq.s32.totalorder %s9, 1
    %p115 = por %p113, %p114
    %p116 = scmp.ne.s32.totalorder %s108, %s111
    %p117 = scmp.eq.s32.totalorder %s9, 0
    %p118 = por %p116, %p117
    %p119 = scmp.ne.s32.totalorder %s108, %s111
    %p120 = scmp.eq.s32.totalorder %s14, 1
    %p121 = por %p119, %p120
    %p122 = scmp.ne.s32.totalorder %s111, %s112
    %p123 = scmp.eq.s32.totalorder %s14, 0
    %p124 = por %p122, %p123
    %p125 = scmp.ne.s32.totalorder %s111, %s112
    %p126 = scmp.eq.s32.totalorder %s15, 1
    %p127 = por %p125, %p126
    %p129 = scmp.ne.s32.totalorder %s112, %s128
    %p130 = scmp.eq.s32.totalorder %s15, 0
    %p131 = por %p129, %p130
    %p132 = scmp.le.s32.totalorder 1, %s9
    %p133 = scmp.lt.s32.totalorder %s9, 3
    %p134 = pnand %p132, %p133
    %p135 = pneg %p134
    // Predicated region
    $region9: #{pointnet_forward.24} parent=5 // pred_check
      _
    $region10: #{pointnet_forward.24} parent=5 // pred_check_branch
      %137 = sbr.rel (%p134) target = $region12
    $region11: #{pointnet_forward.24} parent=5 // pred_region
      %s138 = ssub.s32 %s9, 1
      // Predicated region
      $region13: #{pointnet_forward.24} parent=11 // pred_check
        %p139 = pneg %p96
      $region14: #{pointnet_forward.24} parent=11 // pred_check_branch
        %141 = sbr.rel (%p139) target = $region16
      $region15: #{pointnet_forward.24} parent=11 // pred_region
        _
      $region16: #{pointnet_forward.24} parent=11 // pred_fallthru
        _
    $region12: #{pointnet_forward.24} parent=5 // pred_fallthru
      _
    %p142 = scmp.lt.s32.totalorder %s9, 2
    // Predicated region
    $region17: #{pointnet_forward.24} parent=5 // pred_check
      %p143 = pneg %p142
    $region18: #{pointnet_forward.24} parent=5 // pred_check_branch
      %145 = sbr.rel (%p143) target = $region20
    $region19: #{pointnet_forward.24} parent=5 // pred_region
      // Predicated region
      $region21: #{pointnet_forward.24} parent=19 // pred_check
        %p146 = pneg %p43
      $region22: #{pointnet_forward.24} parent=19 // pred_check_branch
        %148 = sbr.rel (%p146) target = $region24
      $region23: #{pointnet_forward.24} parent=19 // pred_region
        %s149 = smul.u32 2, %s17
        %p150 = scmp.lt.s32.totalorder %s16, 1
        %s151 = scalar_select %p150, %s16, 1
        %p152 = scmp.lt.s32.totalorder %s149, 1
        %s153 = scalar_select %p152, %s149, 1
        %s154 = smul.addr %s151, 2
        %s155 = sadd.s32 %s153, %s154
        %s156 = smul.addr %s155, 4
        %s157 = scalar_lea.vmem %s0, %s156
        %s158 = smul.u32 2, %s17
      $region24: #{pointnet_forward.24} parent=19 // pred_fallthru
        _
      // Predicated region
      $region25: #{pointnet_forward.24} parent=19 // pred_check
        %p159 = pneg %p69
      $region26: #{pointnet_forward.24} parent=19 // pred_check_branch
        %161 = sbr.rel (%p159) target = $region28
      $region27: #{pointnet_forward.24} parent=19 // pred_region
        %p162 = scmp.lt.s32.totalorder %s16, 1
        %s163 = scalar_select %p162, %s16, 1
        %s164 = smul.addr %s163, 2
        %s165 = scalar_lea.vmem %s1, %s164
      $region28: #{pointnet_forward.24} parent=19 // pred_fallthru
        _
    $region20: #{pointnet_forward.24} parent=5 // pred_fallthru
      _
    %p166 = scmp.le.s32.totalorder 1, %s9
    %p167 = scmp.lt.s32.totalorder %s9, 3
    %p168 = pnand %p166, %p167
    %p169 = pneg %p168
    // Predicated region
    $region29: #{pointnet_forward.24} parent=5 // pred_check
      _
    $region30: #{pointnet_forward.24} parent=5 // pred_check_branch
      %171 = sbr.rel (%p168) target = $region32
    $region31: #{pointnet_forward.24} parent=5 // pred_region
      %s172 = ssub.s32 %s9, 1
      %s173 = smul.u32 2, %s19
      %p174 = scmp.lt.s32.totalorder %s18, 1
      %s175 = scalar_select %p174, %s18, 1
      %p176 = scmp.lt.s32.totalorder %s173, 1
      %s177 = scalar_select %p176, %s173, 1
      %s178 = smul.addr %s175, 2
      %s179 = sadd.s32 %s177, %s178
      %s180 = smul.addr %s179, 4
      %s181 = scalar_lea.vmem %s0, %s180
      %p182 = pneg %p49
      %p183 = pneg %p46
      %p184 = scmp.lt.s32.totalorder %s18, 1
      %s185 = scalar_select %p184, %s18, 1
      %s186 = smul.addr %s185, 2
      %s187 = scalar_lea.vmem %s1, %s186
      %p188 = pneg %p75
      %p189 = pneg %p72
      %p190 = pneg %p96
      %p191 = pneg %p93
      %p192 = pneg %p124
      %p193 = pneg %p121
      %s194 = smul.u32 2, %s19
      %p195 = scmp.lt.s32.totalorder %s18, 1
      %s196 = scalar_select %p195, %s18, 1
      %p197 = scmp.lt.s32.totalorder %s194, 1
      %s198 = scalar_select %p197, %s194, 1
      %s199 = smul.addr %s196, 2
      %s200 = sadd.s32 %s198, %s199
      %s201 = smul.addr %s200, 4
      %s202 = scalar_lea.vmem %s3, %s201
      %s203 = smul.u32 2, %s19
      %p204 = scmp.lt.s32.totalorder %s18, 1
      %s205 = scalar_select %p204, %s18, 1
      %p206 = scmp.lt.s32.totalorder %s203, 1
      %s207 = scalar_select %p206, %s203, 1
      %s208 = smul.addr %s205, 2
      %s209 = sadd.s32 %s207, %s208
      %s210 = smul.addr %s209, 4
      %s211 = scalar_lea.vmem %s0, %s210
      %s212 = smul.u32 2, %s19
      %p213 = scmp.lt.s32.totalorder %s18, 1
      %s214 = scalar_select %p213, %s18, 1
      %s215 = smul.addr %s214, 2
      %s216 = scalar_lea.vmem %s1, %s215
      %s217 = smul.u32 2, %s19
      %p218 = scmp.lt.s32.totalorder %s18, 1
      %s219 = scalar_select %p218, %s18, 1
      %p220 = scmp.lt.s32.totalorder %s217, 1
      %s221 = scalar_select %p220, %s217, 1
      %s222 = smul.addr %s219, 2
      %s223 = sadd.s32 %s221, %s222
      %s224 = smul.addr %s223, 4
      %s225 = scalar_lea.vmem %s3, %s224
      %s226 = smul.u32 2, %s19
      %v228 = vld [vmem:[%s211] sm:$0xf]
      %v229 = vld [vmem:[%s211 + $0x4] sm:$0xf]
      %v230 = vld [vmem:[%s216] sm:$0x3]
      %v231 = vld [vmem:[%s2] sm:$0x1]
      %v233 = vlaneseq
      %v234 = vshrl.u32 %v233, 7
      %v235 = vsub.s32 0, %v234
      %v236 = vrot.slane %v231, %v235
      %v240 = vunpack.c.l.b16 %v228
      %v241 = vunpack.c.l.b16 %v229
      %v242 = vpack.c.b16 %v241, %v240
      %vm243 = vcmask 23552
      %v245 = vsel %vm243, %v242, 0
      %vm247 = vcmask 1040384
      %vm248 = vcmask 1041408
      %v249 = vsel %vm247, 4294967295, 65535
      %v250 = vsel %vm248, %v249, 0
      %v252 = vand.u32 %v230, %v250
      %254 = vmatprep.subr.bf16.mxu0 0
      %255 = vmatpush1.bf16.msra.mxu0 %v252
      %256 = vmatprep.subr.bf16.mxu0 0
      %257 = vmatpush1.bf16.msra.mxu0 0
      %258 = vmatprep.subr.bf16.mxu0 0
      %259 = vmatpush1.bf16.msra.mxu0 0
      %260 = vmatprep.subr.bf16.mxu0 0
      %261 = vmatpush1.bf16.msra.mxu0 0
      %262 = vmatprep.subr.bf16.mxu0 0
      %263 = vmatpush1.bf16.msra.mxu0 0
      %264 = vmatprep.subr.bf16.mxu0 0
      %265 = vmatpush1.bf16.msra.mxu0 0
      %266 = vmatprep.subr.bf16.mxu0 0
      %267 = vmatpush1.bf16.msra.mxu0 0
      %268 = vmatprep.subr.bf16.mxu0 0
      %269 = vmatpush1.bf16.msra.mxu0 0
      %270 = vmatprep.subr.bf16.mxu0 0
      %271 = vmatpush1.bf16.msra.mxu0 0
      %272 = vmatprep.subr.bf16.mxu0 0
      %273 = vmatpush1.bf16.msra.mxu0 0
      %274 = vmatprep.subr.bf16.mxu0 0
      %275 = vmatpush1.bf16.msra.mxu0 0
      %276 = vmatprep.subr.bf16.mxu0 0
      %277 = vmatpush1.bf16.msra.mxu0 0
      %278 = vmatprep.subr.bf16.mxu0 0
      %279 = vmatpush1.bf16.msra.mxu0 0
      %280 = vmatprep.subr.bf16.mxu0 0
      %281 = vmatpush1.bf16.msra.mxu0 0
      %282 = vmatprep.subr.bf16.mxu0 0
      %283 = vmatpush1.bf16.msra.mxu0 0
      %284 = vmatprep.subr.bf16.mxu0 0
      %285 = vmatpush1.bf16.msra.mxu0 0
      %286 = vmatprep.mubr.bf16.mxu0 0
      %287 = vmatmul.mubr.bf16.gmra.mrb[0].mxu0 %v245
      %v288 = vpop.f32.mrb[0].mxu0
      %v289 = vadd.f32 %v236, %v288
      %v290 = vpop.f32.mrb[0].mxu0
      %v291 = vpop.f32.mrb[0].mxu0
      %v292 = vadd.f32 %v236, %v291
      %v293 = vpop.f32.mrb[0].mxu0
      %294 = vdwg.mxu0
      %v295 = vmax.f32 %v289, 0.0
      %v296 = vmax.f32 %v292, 0.0
      %v297 = vpack.c.bf16 %v296, %v295
      %v299 = vunpack.c.l.b16 %v297
      %v300 = vunpack.c.h.b16 %v297
      %v301 = vpack.c.b16 %v299, %v299
      %v302 = vpack.c.b16 %v300, %v300
      %vm305 = vcmask 519168
      %306 = vst.msk [vmem:[%s225] sm:$0xf] %vm305, %v301
      %307 = vst.msk [vmem:[%s225 + $0x4] sm:$0xf] %vm305, %v302
      %s308 = smul.u32 2, %s19
      %p309 = scmp.lt.s32.totalorder %s18, 1
      %s310 = scalar_select %p309, %s18, 1
      %p311 = scmp.lt.s32.totalorder %s308, 1
      %s312 = scalar_select %p311, %s308, 1
      %s313 = smul.addr %s310, 2
      %s314 = sadd.s32 %s312, %s313
      %s315 = smul.addr %s314, 4
      %s316 = scalar_lea.vmem %s3, %s315
      // Predicated region
      $region33: #{pointnet_forward.24} parent=31 // pred_check
        %p317 = pneg %p121
      $region34: #{pointnet_forward.24} parent=31 // pred_check_branch
        %319 = sbr.rel (%p317) target = $region36
      $region35: #{pointnet_forward.24} parent=31 // pred_region
        %s320 = smul.u32 2, %s19
      $region36: #{pointnet_forward.24} parent=31 // pred_fallthru
        _
    $region32: #{pointnet_forward.24} parent=5 // pred_fallthru
      _
    %p321 = scmp.le.s32.totalorder 2, %s9
    // Predicated region
    $region37: #{pointnet_forward.24} parent=5 // pred_check
      %p322 = pneg %p321
    $region38: #{pointnet_forward.24} parent=5 // pred_check_branch
      %324 = sbr.rel (%p322) target = $region40
    $region39: #{pointnet_forward.24} parent=5 // pred_region
      %s325 = ssub.s32 %s9, 2
      // Predicated region
      $region41: #{pointnet_forward.24} parent=39 // pred_check
        %p326 = pneg %p127
      $region42: #{pointnet_forward.24} parent=39 // pred_check_branch
        %328 = sbr.rel (%p326) target = $region44
      $region43: #{pointnet_forward.24} parent=39 // pred_region
        %s329 = smul.u32 2, %s21
        %p330 = scmp.lt.s32.totalorder %s20, 1
        %s331 = scalar_select %p330, %s20, 1
        %p332 = scmp.lt.s32.totalorder %s329, 1
        %s333 = scalar_select %p332, %s329, 1
        %s334 = smul.addr %s331, 2
        %s335 = sadd.s32 %s333, %s334
        %s336 = smul.addr %s335, 4
        %s337 = scalar_lea.vmem %s3, %s336
      $region44: #{pointnet_forward.24} parent=39 // pred_fallthru
        _
    $region40: #{pointnet_forward.24} parent=5 // pred_fallthru
      _
  $region6: #{pointnet_forward.24} parent=0 // loop_footer
    %s13 = sadd.s32 1, %s9
  $region7: #{pointnet_forward.24} parent=0 // loop_footer_branch
    %8 = sbr.rel target = $region3
  $region8: #{pointnet_forward.24} parent=0 // loop_exit
    _

// kernel: pointnet_forward.30
$region0: #{pointnet_forward.30}
  #allocation0 [shape = 'u32[]', space=smem, size = 0x4, offset = 0x4, fixed_abs, tag = 'smem constant byte address 0x4 - core index']
  #allocation1 [shape = 'u32[144,128]{1,0:T(1,128)}', space=vmem, size = 0x12000, scoped, tag = 'internal scratch']
  %s0 = inlined_call_operand.vmem [shape: f32[2,256], index: 0, kind: input, shape index: {}]
  %s1 = inlined_call_operand.vmem [shape: f32[256,4096], index: 1, kind: input, shape index: {}]
  %s2 = inlined_call_operand.vmem [shape: f32[1,4096], index: 2, kind: input, shape index: {}]
  %s3 = inlined_call_operand.vmem [shape: f32[2,4096], index: 3, kind: output, shape index: {}]
  %s4 = sld [smem:[#allocation0]]
  $region68: #{pointnet_forward.30} parent=0
    _
  %s6 = ssub.s32 1, %s4
  %s7 = scalar_select 0, %s6, %s4
  $region1: #{pointnet_forward.30} parent=0
    #allocation2 [shape = 'u8[524288]{0}', space=vmem, size = 0x80000, scoped, tag = 'input window, operand 1']
    loop: start=0, step=1, limit=18
    $region2: #{pointnet_forward.30} parent=1 // loop_pre_header
      _
    $region3: #{pointnet_forward.30} parent=1 // loop_header
      %s9 = sphi 0, %s13
      %p10 = scmp.ge.s32.totalorder %s9, 18
      %s16 = sphi 0, %s28
      %s17 = sphi 0, %s24
      %s18 = sphi 0, %s16
      %s19 = sphi 0, %s17
      %s20 = sphi 0, %s18
      %s21 = sphi 0, %s19
      %s31 = sphi 0, %s33
      %s34 = sphi 0, %s31
      %s35 = sphi 0, %s34
      %s51 = sphi 0, %s35
      %s57 = sphi 0, %s59
      %s60 = sphi 0, %s57
      %s61 = sphi 0, %s60
      %s77 = sphi 0, %s61
      %s83 = sphi 0, %s85
      %s86 = sphi 0, %s83
      %s87 = sphi 0, %s86
      %s103 = sphi 0, %s87
      %s111 = sphi 0, %s113
      %s114 = sphi 0, %s111
      %s115 = sphi 0, %s114
      %s131 = sphi 0, %s115
    $region4: #{pointnet_forward.30} parent=1 // loop_header_branch
      %12 = sbr.rel (%p10) target = $region8
    $region5: #{pointnet_forward.30} parent=1 // loop_body
      %s14 = ssub.s32 %s9, 1
      %s15 = ssub.s32 %s9, 2
      %s22 = sadd.s32 1, %s17
      %p23 = scmp.ge.s32.totalorder %s22, 16
      %s24 = scalar_select %p23, 0, %s22
      %s25 = sadd.s32 1, %s16
      %s26 = scalar_select %p23, %s25, %s16
      %p27 = scmp.ge.s32.totalorder %s26, 1
      %s28 = scalar_select %p27, 0, %s26
      %s29 = ssub.s32 %s16, %s28
      %p30 = scmp.eq.s32.totalorder %s29, 0
      %s32 = sadd.s32 %s31, 1
      %s33 = scalar_select %p30, %s31, %s32
      %p36 = pneg %p30
      %p37 = scmp.eq.s32.totalorder %s9, 15
      %p38 = por %p36, %p37
      %p39 = scmp.ne.s32.totalorder %s31, %s34
      %p40 = scmp.eq.s32.totalorder %s9, 0
      %p41 = por %p39, %p40
      %p42 = scmp.ne.s32.totalorder %s31, %s34
      %p43 = scmp.eq.s32.totalorder %s14, 15
      %p44 = por %p42, %p43
      %p45 = scmp.ne.s32.totalorder %s34, %s35
      %p46 = scmp.eq.s32.totalorder %s14, 0
      %p47 = por %p45, %p46
      %p48 = scmp.ne.s32.totalorder %s34, %s35
      %p49 = scmp.eq.s32.totalorder %s15, 15
      %p50 = por %p48, %p49
      %p52 = scmp.ne.s32.totalorder %s35, %s51
      %p53 = scmp.eq.s32.totalorder %s15, 0
      %p54 = por %p52, %p53
      %s55 = ssub.s32 %s17, %s24
      %p56 = scmp.eq.s32.totalorder %s55, 0
      %s58 = sadd.s32 %s57, 1
      %s59 = scalar_select %p56, %s57, %s58
      %p62 = pneg %p56
      %p63 = scmp.eq.s32.totalorder %s9, 15
      %p64 = por %p62, %p63
      %p65 = scmp.ne.s32.totalorder %s57, %s60
      %p66 = scmp.eq.s32.totalorder %s9, 0
      %p67 = por %p65, %p66
      %p68 = scmp.ne.s32.totalorder %s57, %s60
      %p69 = scmp.eq.s32.totalorder %s14, 15
      %p70 = por %p68, %p69
      %p71 = scmp.ne.s32.totalorder %s60, %s61
      %p72 = scmp.eq.s32.totalorder %s14, 0
      %p73 = por %p71, %p72
      %p74 = scmp.ne.s32.totalorder %s60, %s61
      %p75 = scmp.eq.s32.totalorder %s15, 15
      %p76 = por %p74, %p75
      %p78 = scmp.ne.s32.totalorder %s61, %s77
      %p79 = scmp.eq.s32.totalorder %s15, 0
      %p80 = por %p78, %p79
      %s81 = ssub.s32 %s17, %s24
      %p82 = scmp.eq.s32.totalorder %s81, 0
      %s84 = sadd.s32 %s83, 1
      %s85 = scalar_select %p82, %s83, %s84
      %p88 = pneg %p82
      %p89 = scmp.eq.s32.totalorder %s9, 15
      %p90 = por %p88, %p89
      %p91 = scmp.ne.s32.totalorder %s83, %s86
      %p92 = scmp.eq.s32.totalorder %s9, 0
      %p93 = por %p91, %p92
      %p94 = scmp.ne.s32.totalorder %s83, %s86
      %p95 = scmp.eq.s32.totalorder %s14, 15
      %p96 = por %p94, %p95
      %p97 = scmp.ne.s32.totalorder %s86, %s87
      %p98 = scmp.eq.s32.totalorder %s14, 0
      %p99 = por %p97, %p98
      %p100 = scmp.ne.s32.totalorder %s86, %s87
      %p101 = scmp.eq.s32.totalorder %s15, 15
      %p102 = por %p100, %p101
      %p104 = scmp.ne.s32.totalorder %s87, %s103
      %p105 = scmp.eq.s32.totalorder %s15, 0
      %p106 = por %p104, %p105
      %s107 = ssub.s32 %s16, %s28
      %s108 = ssub.s32 %s17, %s24
      %s109 = sor.u32 %s107, %s108
      %p110 = scmp.eq.s32.totalorder %s109, 0
      %s112 = sadd.s32 %s111, 1
      %s113 = scalar_select %p110, %s111, %s112
      %p116 = pneg %p110
      %p117 = scmp.eq.s32.totalorder %s9, 15
      %p118 = por %p116, %p117
      %p119 = scmp.ne.s32.totalorder %s111, %s114
      %p120 = scmp.eq.s32.totalorder %s9, 0
      %p121 = por %p119, %p120
      %p122 = scmp.ne.s32.totalorder %s111, %s114
      %p123 = scmp.eq.s32.totalorder %s14, 15
      %p124 = por %p122, %p123
      %p125 = scmp.ne.s32.totalorder %s114, %s115
      %p126 = scmp.eq.s32.totalorder %s14, 0
      %p127 = por %p125, %p126
      %p128 = scmp.ne.s32.totalorder %s114, %s115
      %p129 = scmp.eq.s32.totalorder %s15, 15
      %p130 = por %p128, %p129
      %p132 = scmp.ne.s32.totalorder %s115, %s131
      %p133 = scmp.eq.s32.totalorder %s15, 0
      %p134 = por %p132, %p133
      %p135 = scmp.le.s32.totalorder 1, %s9
      %p136 = scmp.lt.s32.totalorder %s9, 17
      %p137 = pnand %p135, %p136
      %p138 = pneg %p137
      // Predicated region
      $region9: #{pointnet_forward.30} parent=5 // pred_check
        _
      $region10: #{pointnet_forward.30} parent=5 // pred_check_branch
        %140 = sbr.rel (%p137) target = $region12
      $region11: #{pointnet_forward.30} parent=5 // pred_region
        %s141 = ssub.s32 %s9, 1
        // Predicated region
        $region13: #{pointnet_forward.30} parent=11 // pred_check
          %p142 = pneg %p47
        $region14: #{pointnet_forward.30} parent=11 // pred_check_branch
          %144 = sbr.rel (%p142) target = $region16
        $region15: #{pointnet_forward.30} parent=11 // pred_region
          %p145 = scmp.lt.s32.totalorder %s18, 0
          %s146 = scalar_select %p145, %s18, 0
          %s147 = smul.addr %s146, 2
          %s148 = smul.addr %s147, 2
          %s149 = scalar_lea.vmem %s0, %s148
        $region16: #{pointnet_forward.30} parent=11 // pred_fallthru
          _
      $region12: #{pointnet_forward.30} parent=5 // pred_fallthru
        _
      %p150 = scmp.lt.s32.totalorder %s9, 16
      // Predicated region
      $region17: #{pointnet_forward.30} parent=5 // pred_check
        %p151 = pneg %p150
      $region18: #{pointnet_forward.30} parent=5 // pred_check_branch
        %153 = sbr.rel (%p151) target = $region20
      $region19: #{pointnet_forward.30} parent=5 // pred_region
        // Predicated region
        $region21: #{pointnet_forward.30} parent=19 // pred_check
          %p154 = pneg %p67
        $region22: #{pointnet_forward.30} parent=19 // pred_check_branch
          %156 = sbr.rel (%p154) target = $region24
        $region23: #{pointnet_forward.30} parent=19 // pred_region
          %s157 = sand.u32 %s57, 1
          %s158 = sand.u32 %s57, 1
          %s159 = smul.addr %s158, 512
          %s160 = scalar_lea.vmem [#allocation2], %s159
          %s161 = smul.u32 2, %s17
          %s162 = smul.addr %s161, 8
          %s163 = scalar_lea.vmem %s1, %s162
          // Predicated region
          $region25: #{pointnet_forward.30} parent=23 // pred_check
            _
          $region26: #{pointnet_forward.30} parent=23 // pred_check_branch
            %165 = sbr.rel (0) target = $region28
          $region27: #{pointnet_forward.30} parent=23 // pred_region
            // Predicated region
            $region29: #{pointnet_forward.30} parent=27 // pred_check
              _
            $region30: #{pointnet_forward.30} parent=27 // pred_check_branch
              %167 = sbr.rel (0) target = $region32
            $region31: #{pointnet_forward.30} parent=27 // pred_region
              loop: start=0, step=1, limit=1
              $region33: #{pointnet_forward.30} parent=31 // loop_pre_header
                _
              $region34: #{pointnet_forward.30} parent=31 // loop_header
                %s169 = sphi 0, %s173
                %p170 = scmp.ge.s32.totalorder %s169, 1
                %s174 = sphi %s163, %s163
                %s175 = sphi %s160, %s160
              $region35: #{pointnet_forward.30} parent=31 // loop_header_branch
                %172 = sbr.rel (%p170) target = $region39
              $region36: #{pointnet_forward.30} parent=31 // loop_body
                %v176 = vld [vmem:[%s174] sm:$0xff]
                %177 = vst [vmem:[%s175] sm:$0xff] %v176
                %v178 = vld [vmem:[%s174 + $0x8] sm:$0xff]
                %179 = vst [vmem:[%s175 + $0x8] sm:$0xff] %v178
                %v180 = vld [vmem:[%s174 + $0x100] sm:$0xff]
                %181 = vst [vmem:[%s175 + $0x10] sm:$0xff] %v180
                %v182 = vld [vmem:[%s174 + $0x108] sm:$0xff]
                %183 = vst [vmem:[%s175 + $0x18] sm:$0xff] %v182
                %v184 = vld [vmem:[%s174 + $0x200] sm:$0xff]
                %185 = vst [vmem:[%s175 + $0x20] sm:$0xff] %v184
                %v186 = vld [vmem:[%s174 + $0x208] sm:$0xff]
                %187 = vst [vmem:[%s175 + $0x28] sm:$0xff] %v186
                %v188 = vld [vmem:[%s174 + $0x300] sm:$0xff]
                %189 = vst [vmem:[%s175 + $0x30] sm:$0xff] %v188
                %v190 = vld [vmem:[%s174 + $0x308] sm:$0xff]
                %191 = vst [vmem:[%s175 + $0x38] sm:$0xff] %v190
                %v192 = vld [vmem:[%s174 + $0x400] sm:$0xff]
                %193 = vst [vmem:[%s175 + $0x40] sm:$0xff] %v192
                %v194 = vld [vmem:[%s174 + $0x408] sm:$0xff]
                %195 = vst [vmem:[%s175 + $0x48] sm:$0xff] %v194
                %v196 = vld [vmem:[%s174 + $0x500] sm:$0xff]
                %197 = vst [vmem:[%s175 + $0x50] sm:$0xff] %v196
                %v198 = vld [vmem:[%s174 + $0x508] sm:$0xff]
                %199 = vst [vmem:[%s175 + $0x58] sm:$0xff] %v198
                %v200 = vld [vmem:[%s174 + $0x600] sm:$0xff]
                %201 = vst [vmem:[%s175 + $0x60] sm:$0xff] %v200
                %v202 = vld [vmem:[%s174 + $0x608] sm:$0xff]
                %203 = vst [vmem:[%s175 + $0x68] sm:$0xff] %v202
                %v204 = vld [vmem:[%s174 + $0x700] sm:$0xff]
                %205 = vst [vmem:[%s175 + $0x70] sm:$0xff] %v204
                %v206 = vld [vmem:[%s174 + $0x708] sm:$0xff]
                %207 = vst [vmem:[%s175 + $0x78] sm:$0xff] %v206
                %v208 = vld [vmem:[%s174 + $0x800] sm:$0xff]
                %209 = vst [vmem:[%s175 + $0x80] sm:$0xff] %v208
                %v210 = vld [vmem:[%s174 + $0x808] sm:$0xff]
                %211 = vst [vmem:[%s175 + $0x88] sm:$0xff] %v210
                %v212 = vld [vmem:[%s174 + $0x900] sm:$0xff]
                %213 = vst [vmem:[%s175 + $0x90] sm:$0xff] %v212
                %v214 = vld [vmem:[%s174 + $0x908] sm:$0xff]
                %215 = vst [vmem:[%s175 + $0x98] sm:$0xff] %v214
                %v216 = vld [vmem:[%s174 + $0xa00] sm:$0xff]
                %217 = vst [vmem:[%s175 + $0xa0] sm:$0xff] %v216
                %v218 = vld [vmem:[%s174 + $0xa08] sm:$0xff]
                %219 = vst [vmem:[%s175 + $0xa8] sm:$0xff] %v218
                %v220 = vld [vmem:[%s174 + $0xb00] sm:$0xff]
                %221 = vst [vmem:[%s175 + $0xb0] sm:$0xff] %v220
                %v222 = vld [vmem:[%s174 + $0xb08] sm:$0xff]
                %223 = vst [vmem:[%s175 + $0xb8] sm:$0xff] %v222
                %v224 = vld [vmem:[%s174 + $0xc00] sm:$0xff]
                %225 = vst [vmem:[%s175 + $0xc0] sm:$0xff] %v224
                %v226 = vld [vmem:[%s174 + $0xc08] sm:$0xff]
                %227 = vst [vmem:[%s175 + $0xc8] sm:$0xff] %v226
                %v228 = vld [vmem:[%s174 + $0xd00] sm:$0xff]
                %229 = vst [vmem:[%s175 + $0xd0] sm:$0xff] %v228
                %v230 = vld [vmem:[%s174 + $0xd08] sm:$0xff]
                %231 = vst [vmem:[%s175 + $0xd8] sm:$0xff] %v230
                %v232 = vld [vmem:[%s174 + $0xe00] sm:$0xff]
                %233 = vst [vmem:[%s175 + $0xe0] sm:$0xff] %v232
                %v234 = vld [vmem:[%s174 + $0xe08] sm:$0xff]
                %235 = vst [vmem:[%s175 + $0xe8] sm:$0xff] %v234
                %v236 = vld [vmem:[%s174 + $0xf00] sm:$0xff]
                %237 = vst [vmem:[%s175 + $0xf0] sm:$0xff] %v236
                %v238 = vld [vmem:[%s174 + $0xf08] sm:$0xff]
                %239 = vst [vmem:[%s175 + $0xf8] sm:$0xff] %v238
                %v240 = vld [vmem:[%s174 + $0x1000] sm:$0xff]
                %241 = vst [vmem:[%s175 + $0x100] sm:$0xff] %v240
                %v242 = vld [vmem:[%s174 + $0x1008] sm:$0xff]
                %243 = vst [vmem:[%s175 + $0x108] sm:$0xff] %v242
                %v244 = vld [vmem:[%s174 + $0x1100] sm:$0xff]
                %245 = vst [vmem:[%s175 + $0x110] sm:$0xff] %v244
                %v246 = vld [vmem:[%s174 + $0x1108] sm:$0xff]
                %247 = vst [vmem:[%s175 + $0x118] sm:$0xff] %v246
                %v248 = vld [vmem:[%s174 + $0x1200] sm:$0xff]
                %249 = vst [vmem:[%s175 + $0x120] sm:$0xff] %v248
                %v250 = vld [vmem:[%s174 + $0x1208] sm:$0xff]
                %251 = vst [vmem:[%s175 + $0x128] sm:$0xff] %v250
                %v252 = vld [vmem:[%s174 + $0x1300] sm:$0xff]
                %253 = vst [vmem:[%s175 + $0x130] sm:$0xff] %v252
                %v254 = vld [vmem:[%s174 + $0x1308] sm:$0xff]
                %255 = vst [vmem:[%s175 + $0x138] sm:$0xff] %v254
                %v256 = vld [vmem:[%s174 + $0x1400] sm:$0xff]
                %257 = vst [vmem:[%s175 + $0x140] sm:$0xff] %v256
                %v258 = vld [vmem:[%s174 + $0x1408] sm:$0xff]
                %259 = vst [vmem:[%s175 + $0x148] sm:$0xff] %v258
                %v260 = vld [vmem:[%s174 + $0x1500] sm:$0xff]
                %261 = vst [vmem:[%s175 + $0x150] sm:$0xff] %v260
                %v262 = vld [vmem:[%s174 + $0x1508] sm:$0xff]
                %263 = vst [vmem:[%s175 + $0x158] sm:$0xff] %v262
                %v264 = vld [vmem:[%s174 + $0x1600] sm:$0xff]
                %265 = vst [vmem:[%s175 + $0x160] sm:$0xff] %v264
                %v266 = vld [vmem:[%s174 + $0x1608] sm:$0xff]
                %267 = vst [vmem:[%s175 + $0x168] sm:$0xff] %v266
                %v268 = vld [vmem:[%s174 + $0x1700] sm:$0xff]
                %269 = vst [vmem:[%s175 + $0x170] sm:$0xff] %v268
                %v270 = vld [vmem:[%s174 + $0x1708] sm:$0xff]
                %271 = vst [vmem:[%s175 + $0x178] sm:$0xff] %v270
                %v272 = vld [vmem:[%s174 + $0x1800] sm:$0xff]
                %273 = vst [vmem:[%s175 + $0x180] sm:$0xff] %v272
                %v274 = vld [vmem:[%s174 + $0x1808] sm:$0xff]
                %275 = vst [vmem:[%s175 + $0x188] sm:$0xff] %v274
                %v276 = vld [vmem:[%s174 + $0x1900] sm:$0xff]
                %277 = vst [vmem:[%s175 + $0x190] sm:$0xff] %v276
                %v278 = vld [vmem:[%s174 + $0x1908] sm:$0xff]
                %279 = vst [vmem:[%s175 + $0x198] sm:$0xff] %v278
                %v280 = vld [vmem:[%s174 + $0x1a00] sm:$0xff]
                %281 = vst [vmem:[%s175 + $0x1a0] sm:$0xff] %v280
                %v282 = vld [vmem:[%s174 + $0x1a08] sm:$0xff]
                %283 = vst [vmem:[%s175 + $0x1a8] sm:$0xff] %v282
                %v284 = vld [vmem:[%s174 + $0x1b00] sm:$0xff]
                %285 = vst [vmem:[%s175 + $0x1b0] sm:$0xff] %v284
                %v286 = vld [vmem:[%s174 + $0x1b08] sm:$0xff]
                %287 = vst [vmem:[%s175 + $0x1b8] sm:$0xff] %v286
                %v288 = vld [vmem:[%s174 + $0x1c00] sm:$0xff]
                %289 = vst [vmem:[%s175 + $0x1c0] sm:$0xff] %v288
                %v290 = vld [vmem:[%s174 + $0x1c08] sm:$0xff]
                %291 = vst [vmem:[%s175 + $0x1c8] sm:$0xff] %v290
                %v292 = vld [vmem:[%s174 + $0x1d00] sm:$0xff]
                %293 = vst [vmem:[%s175 + $0x1d0] sm:$0xff] %v292
                %v294 = vld [vmem:[%s174 + $0x1d08] sm:$0xff]
                %295 = vst [vmem:[%s175 + $0x1d8] sm:$0xff] %v294
                %v296 = vld [vmem:[%s174 + $0x1e00] sm:$0xff]
                %297 = vst [vmem:[%s175 + $0x1e0] sm:$0xff] %v296
                %v298 = vld [vmem:[%s174 + $0x1e08] sm:$0xff]
                %299 = vst [vmem:[%s175 + $0x1e8] sm:$0xff] %v298
                %v300 = vld [vmem:[%s174 + $0x1f00] sm:$0xff]
                %301 = vst [vmem:[%s175 + $0x1f0] sm:$0xff] %v300
                %v302 = vld [vmem:[%s174 + $0x1f08] sm:$0xff]
                %303 = vst [vmem:[%s175 + $0x1f8] sm:$0xff] %v302
              $region37: #{pointnet_forward.30} parent=31 // loop_footer
                %s173 = sadd.s32 1, %s169
              $region38: #{pointnet_forward.30} parent=31 // loop_footer_branch
                %168 = sbr.rel target = $region34
              $region39: #{pointnet_forward.30} parent=31 // loop_exit
                _
            $region32: #{pointnet_forward.30} parent=27 // pred_fallthru
              _
            // Predicated region
            $region40: #{pointnet_forward.30} parent=27 // pred_check
              _
            $region41: #{pointnet_forward.30} parent=27 // pred_check_branch
              %305 = sbr.rel target = $region43
            $region42: #{pointnet_forward.30} parent=27 // pred_region
              _
            $region43: #{pointnet_forward.30} parent=27 // pred_fallthru
              _
          $region28: #{pointnet_forward.30} parent=23 // pred_fallthru
            _
          %306 = vnop
        $region24: #{pointnet_forward.30} parent=19 // pred_fallthru
          _
        // Predicated region
        $region44: #{pointnet_forward.30} parent=19 // pred_check
          %p307 = pneg %p93
        $region45: #{pointnet_forward.30} parent=19 // pred_check_branch
          %309 = sbr.rel (%p307) target = $region47
        $region46: #{pointnet_forward.30} parent=19 // pred_region
          %s310 = smul.u32 2, %s17
          %p311 = scmp.lt.s32.totalorder %s310, 31
          %s312 = scalar_select %p311, %s310, 31
          %s313 = scalar_lea.vmem %s2, %s312
          %s314 = smul.u32 2, %s17
        $region47: #{pointnet_forward.30} parent=19 // pred_fallthru
          _
      $region20: #{pointnet_forward.30} parent=5 // pred_fallthru
        _
      %p315 = scmp.le.s32.totalorder 1, %s9
      %p316 = scmp.lt.s32.totalorder %s9, 17
      %p317 = pnand %p315, %p316
      %p318 = pneg %p317
      // Predicated region
      $region48: #{pointnet_forward.30} parent=5 // pred_check
        _
      $region49: #{pointnet_forward.30} parent=5 // pred_check_branch
        %320 = sbr.rel (%p317) target = $region51
      $region50: #{pointnet_forward.30} parent=5 // pred_region
        %s321 = ssub.s32 %s9, 1
        %s322 = sand.u32 %s60, 1
        %s323 = sand.u32 %s60, 1
        %s324 = smul.addr %s323, 512
        %s325 = scalar_lea.vmem [#allocation2], %s324
        // Predicated region
        $region52: #{pointnet_forward.30} parent=50 // pred_check
          %p326 = pneg %p73
        $region53: #{pointnet_forward.30} parent=50 // pred_check_branch
          %328 = sbr.rel (%p326) target = $region55
        $region54: #{pointnet_forward.30} parent=50 // pred_region
          _
        $region55: #{pointnet_forward.30} parent=50 // pred_fallthru
          _
        %p329 = scmp.lt.s32.totalorder %s18, 0
        %s330 = scalar_select %p329, %s18, 0
        %s331 = smul.addr %s330, 2
        %s332 = smul.addr %s331, 2
        %s333 = scalar_lea.vmem %s0, %s332
        %p334 = pneg %p47
        %p335 = pneg %p44
        %s336 = sand.u32 %s60, 1
        %s337 = sand.u32 %s60, 1
        %s338 = smul.addr %s337, 512
        %s339 = scalar_lea.vmem [#allocation2], %s338
        %p340 = pneg %p73
        %p341 = pneg %p70
        %s342 = smul.u32 2, %s19
        %p343 = scmp.lt.s32.totalorder %s342, 31
        %s344 = scalar_select %p343, %s342, 31
        %s345 = scalar_lea.vmem %s2, %s344
        %p346 = pneg %p99
        %p347 = pneg %p96
        %p348 = pneg %p127
        %p349 = pneg %p124
        %s350 = smul.u32 2, %s19
        %p351 = scmp.lt.s32.totalorder %s18, 0
        %s352 = scalar_select %p351, %s18, 0
        %p353 = scmp.lt.s32.totalorder %s350, 31
        %s354 = scalar_select %p353, %s350, 31
        %s355 = smul.addr %s352, 32
        %s356 = sadd.s32 %s354, %s355
        %s357 = smul.addr %s356, 2
        %s358 = scalar_lea.vmem %s3, %s357
        %p359 = scmp.lt.s32.totalorder %s18, 0
        %s360 = scalar_select %p359, %s18, 0
        %s361 = smul.addr %s360, 2
        %s362 = smul.addr %s361, 2
        %s363 = scalar_lea.vmem %s0, %s362
        %s364 = smul.u32 2, %s19
        %s365 = smul.u32 2, %s19
        %p366 = scmp.lt.s32.totalorder %s365, 31
        %s367 = scalar_select %p366, %s365, 31
        %s368 = scalar_lea.vmem %s2, %s367
        %s369 = smul.u32 2, %s19
        %s370 = smul.u32 2, %s19
        %p371 = scmp.lt.s32.totalorder %s18, 0
        %s372 = scalar_select %p371, %s18, 0
        %p373 = scmp.lt.s32.totalorder %s370, 31
        %s374 = scalar_select %p373, %s370, 31
        %s375 = smul.addr %s372, 32
        %s376 = sadd.s32 %s374, %s375
        %s377 = smul.addr %s376, 2
        %s378 = scalar_lea.vmem %s3, %s377
        %s379 = smul.u32 2, %s19
        %v380 = vld [vmem:[%s363] sm:$0xf]
        %v381 = vld [vmem:[%s325] sm:$0xff]
        %v382 = vld [vmem:[%s325 + $0x8] sm:$0xff]
        %v383 = vld [vmem:[%s325 + $0x10] sm:$0xff]
        %v384 = vld [vmem:[%s325 + $0x18] sm:$0xff]
        %v385 = vld [vmem:[%s325 + $0x20] sm:$0xff]
        %v386 = vld [vmem:[%s325 + $0x28] sm:$0xff]
        %v387 = vld [vmem:[%s325 + $0x30] sm:$0xff]
        %v388 = vld [vmem:[%s325 + $0x38] sm:$0xff]
        %v389 = vld [vmem:[%s325 + $0x40] sm:$0xff]
        %v390 = vld [vmem:[%s325 + $0x48] sm:$0xff]
        %v391 = vld [vmem:[%s325 + $0x50] sm:$0xff]
        %v392 = vld [vmem:[%s325 + $0x58] sm:$0xff]
        %v393 = vld [vmem:[%s325 + $0x60] sm:$0xff]
        %v394 = vld [vmem:[%s325 + $0x68] sm:$0xff]
        %v395 = vld [vmem:[%s325 + $0x70] sm:$0xff]
        %v396 = vld [vmem:[%s325 + $0x78] sm:$0xff]
        %v397 = vld [vmem:[%s325 + $0x80] sm:$0xff]
        %v398 = vld [vmem:[%s325 + $0x88] sm:$0xff]
        %v399 = vld [vmem:[%s325 + $0x90] sm:$0xff]
        %v400 = vld [vmem:[%s325 + $0x98] sm:$0xff]
        %v401 = vld [vmem:[%s325 + $0xa0] sm:$0xff]
        %v402 = vld [vmem:[%s325 + $0xa8] sm:$0xff]
        %v403 = vld [vmem:[%s325 + $0xb0] sm:$0xff]
        %v404 = vld [vmem:[%s325 + $0xb8] sm:$0xff]
        %v405 = vld [vmem:[%s325 + $0xc0] sm:$0xff]
        %v406 = vld [vmem:[%s325 + $0xc8] sm:$0xff]
        %v407 = vld [vmem:[%s325 + $0xd0] sm:$0xff]
        %v408 = vld [vmem:[%s325 + $0xd8] sm:$0xff]
        %v409 = vld [vmem:[%s325 + $0xe0] sm:$0xff]
        %v410 = vld [vmem:[%s325 + $0xe8] sm:$0xff]
        %v411 = vld [vmem:[%s325 + $0xf0] sm:$0xff]
        %v412 = vld [vmem:[%s325 + $0xf8] sm:$0xff]
        %v413 = vld [vmem:[%s325 + $0x100] sm:$0xff]
        %v414 = vld [vmem:[%s325 + $0x108] sm:$0xff]
        %v415 = vld [vmem:[%s325 + $0x110] sm:$0xff]
        %v416 = vld [vmem:[%s325 + $0x118] sm:$0xff]
        %v417 = vld [vmem:[%s325 + $0x120] sm:$0xff]
        %v418 = vld [vmem:[%s325 + $0x128] sm:$0xff]
        %v419 = vld [vmem:[%s325 + $0x130] sm:$0xff]
        %v420 = vld [vmem:[%s325 + $0x138] sm:$0xff]
        %v421 = vld [vmem:[%s325 + $0x140] sm:$0xff]
        %v422 = vld [vmem:[%s325 + $0x148] sm:$0xff]
        %v423 = vld [vmem:[%s325 + $0x150] sm:$0xff]
        %v424 = vld [vmem:[%s325 + $0x158] sm:$0xff]
        %v425 = vld [vmem:[%s325 + $0x160] sm:$0xff]
        %v426 = vld [vmem:[%s325 + $0x168] sm:$0xff]
        %v427 = vld [vmem:[%s325 + $0x170] sm:$0xff]
        %v428 = vld [vmem:[%s325 + $0x178] sm:$0xff]
        %v429 = vld [vmem:[%s325 + $0x180] sm:$0xff]
        %v430 = vld [vmem:[%s325 + $0x188] sm:$0xff]
        %v431 = vld [vmem:[%s325 + $0x190] sm:$0xff]
        %v432 = vld [vmem:[%s325 + $0x198] sm:$0xff]
        %v433 = vld [vmem:[%s325 + $0x1a0] sm:$0xff]
        %v434 = vld [vmem:[%s325 + $0x1a8] sm:$0xff]
        %v435 = vld [vmem:[%s325 + $0x1b0] sm:$0xff]
        %v436 = vld [vmem:[%s325 + $0x1b8] sm:$0xff]
        %v437 = vld [vmem:[%s325 + $0x1c0] sm:$0xff]
        %v438 = vld [vmem:[%s325 + $0x1c8] sm:$0xff]
        %v439 = vld [vmem:[%s325 + $0x1d0] sm:$0xff]
        %v440 = vld [vmem:[%s325 + $0x1d8] sm:$0xff]
        %v441 = vld [vmem:[%s325 + $0x1e0] sm:$0xff]
        %v442 = vld [vmem:[%s325 + $0x1e8] sm:$0xff]
        %v443 = vld [vmem:[%s325 + $0x1f0] sm:$0xff]
        %v444 = vld [vmem:[%s325 + $0x1f8] sm:$0xff]
        %v445 = vld [vmem:[%s368] sm:$0x3]
        %v447 = vlaneseq
        %v448 = vshrl.u32 %v447, 7
        %v449 = vsub.s32 0, %v448
        %v450 = vrot.slane %v445, %v449
        %v451 = vlaneseq
        %v452 = vshrl.u32 %v451, 7
        %v453 = vsub.s32 1, %v452
        %v454 = vrot.slane %v445, %v453
        %v459 = vunpack.c.l.s4 1983009808
        %v460 = vunpack.c.0.s8 %v459
        %v461 = vlaneseq
        %v462 = vshrl.u32 %v461, 7
        %v463 = vsub.s32 %v460, %v462
        %v464 = vrot.slane %v380, %v463
        %v465 = vcombine.high %v464, %v464
        %468 = vmatprep.subr.mxu0 %v382
        %469 = vmatpush1.msra.mxu0 %v381
        %470 = vmatprep.subr.mxu0 %v384
        %471 = vmatpush1.msra.mxu0 %v383
        %472 = vmatprep.subr.mxu0 %v386
        %473 = vmatpush1.msra.mxu0 %v385
        %474 = vmatprep.subr.mxu0 %v388
        %475 = vmatpush1.msra.mxu0 %v387
        %476 = vmatprep.subr.mxu0 %v390
        %477 = vmatpush1.msra.mxu0 %v389
        %478 = vmatprep.subr.mxu0 %v392
        %479 = vmatpush1.msra.mxu0 %v391
        %480 = vmatprep.subr.mxu0 %v394
        %481 = vmatpush1.msra.mxu0 %v393
        %482 = vmatprep.subr.mxu0 %v396
        %483 = vmatpush1.msra.mxu0 %v395
        %484 = vmatprep.subr.mxu0 %v398
        %485 = vmatpush1.msra.mxu0 %v397
        %486 = vmatprep.subr.mxu0 %v400
        %487 = vmatpush1.msra.mxu0 %v399
        %488 = vmatprep.subr.mxu0 %v402
        %489 = vmatpush1.msra.mxu0 %v401
        %490 = vmatprep.subr.mxu0 %v404
        %491 = vmatpush1.msra.mxu0 %v403
        %492 = vmatprep.subr.mxu0 %v406
        %493 = vmatpush1.msra.mxu0 %v405
        %494 = vmatprep.subr.mxu0 %v408
        %495 = vmatpush1.msra.mxu0 %v407
        %496 = vmatprep.subr.mxu0 %v410
        %497 = vmatpush1.msra.mxu0 %v409
        %498 = vmatprep.subr.mxu0 %v412
        %499 = vmatpush1.msra.mxu0 %v411
        %500 = vmatprep.subr.mxu0 %v414
        %501 = vmatpush1.msra.mxu0 %v413
        %502 = vmatprep.subr.mxu0 %v416
        %503 = vmatpush1.msra.mxu0 %v415
        %504 = vmatprep.subr.mxu0 %v418
        %505 = vmatpush1.msra.mxu0 %v417
        %506 = vmatprep.subr.mxu0 %v420
        %507 = vmatpush1.msra.mxu0 %v419
        %508 = vmatprep.subr.mxu0 %v422
        %509 = vmatpush1.msra.mxu0 %v421
        %510 = vmatprep.subr.mxu0 %v424
        %511 = vmatpush1.msra.mxu0 %v423
        %512 = vmatprep.subr.mxu0 %v426
        %513 = vmatpush1.msra.mxu0 %v425
        %514 = vmatprep.subr.mxu0 %v428
        %515 = vmatpush1.msra.mxu0 %v427
        %516 = vmatprep.subr.mxu0 %v430
        %517 = vmatpush1.msra.mxu0 %v429
        %518 = vmatprep.subr.mxu0 %v432
        %519 = vmatpush1.msra.mxu0 %v431
        %520 = vmatprep.subr.mxu0 %v434
        %521 = vmatpush1.msra.mxu0 %v433
        %522 = vmatprep.subr.mxu0 %v436
        %523 = vmatpush1.msra.mxu0 %v435
        %524 = vmatprep.subr.mxu0 %v438
        %525 = vmatpush1.msra.mxu0 %v437
        %526 = vmatprep.subr.mxu0 %v440
        %527 = vmatpush1.msra.mxu0 %v439
        %528 = vmatprep.subr.mxu0 %v442
        %529 = vmatpush1.msra.mxu0 %v441
        %530 = vmatprep.subr.mxu0 %v444
        %531 = vmatpush1.msra.mxu0 %v443
        %532 = vmatprep.mubr.f32.mxu0 %v465
        %533 = vmatmul.mubr.f32.gmra.mrb[0].mxu0 %v464
        %v534 = vpop.f32.mrb[0].mxu0
        %v535 = vadd.f32 %v450, %v534
        %v536 = vpop.f32.mrb[0].mxu0
        %v537 = vadd.f32 %v454, %v536
        %538 = vdwg.mxu0
        %v541 = vcombine.low %v535, %v537
        %v543 = vunpack.c.l.s4 1983009808
        %v544 = vunpack.c.0.s8 %v543
        %v545 = vlaneseq
        %v546 = vshrl.u32 %v545, 7
        %v547 = vsub.s32 %v544, %v546
        %v548 = vrot.slane %v541, %v547
        %550 = vst [vmem:[%s378] sm:$0xf] %v548
        %s551 = smul.u32 2, %s19
        %p552 = scmp.lt.s32.totalorder %s18, 0
        %s553 = scalar_select %p552, %s18, 0
        %p554 = scmp.lt.s32.totalorder %s551, 31
        %s555 = scalar_select %p554, %s551, 31
        %s556 = smul.addr %s553, 32
        %s557 = sadd.s32 %s555, %s556
        %s558 = smul.addr %s557, 2
        %s559 = scalar_lea.vmem %s3, %s558
        // Predicated region
        $region56: #{pointnet_forward.30} parent=50 // pred_check
          %p560 = pneg %p124
        $region57: #{pointnet_forward.30} parent=50 // pred_check_branch
          %562 = sbr.rel (%p560) target = $region59
        $region58: #{pointnet_forward.30} parent=50 // pred_region
          %s563 = smul.u32 2, %s19
        $region59: #{pointnet_forward.30} parent=50 // pred_fallthru
          _
      $region51: #{pointnet_forward.30} parent=5 // pred_fallthru
        _
      %p564 = scmp.le.s32.totalorder 2, %s9
      // Predicated region
      $region60: #{pointnet_forward.30} parent=5 // pred_check
        %p565 = pneg %p564
      $region61: #{pointnet_forward.30} parent=5 // pred_check_branch
        %567 = sbr.rel (%p565) target = $region63
      $region62: #{pointnet_forward.30} parent=5 // pred_region
        %s568 = ssub.s32 %s9, 2
        // Predicated region
        $region64: #{pointnet_forward.30} parent=62 // pred_check
          %p569 = pneg %p130
        $region65: #{pointnet_forward.30} parent=62 // pred_check_branch
          %571 = sbr.rel (%p569) target = $region67
        $region66: #{pointnet_forward.30} parent=62 // pred_region
          %s572 = smul.u32 2, %s21
          %p573 = scmp.lt.s32.totalorder %s20, 0
          %s574 = scalar_select %p573, %s20, 0
          %p575 = scmp.lt.s32.totalorder %s572, 31
          %s576 = scalar_select %p575, %s572, 31
          %s577 = smul.addr %s574, 32
          %s578 = sadd.s32 %s576, %s577
          %s579 = smul.addr %s578, 2
          %s580 = scalar_lea.vmem %s3, %s579
        $region67: #{pointnet_forward.30} parent=62 // pred_fallthru
          _
      $region63: #{pointnet_forward.30} parent=5 // pred_fallthru
        _
    $region6: #{pointnet_forward.30} parent=1 // loop_footer
      %s13 = sadd.s32 1, %s9
    $region7: #{pointnet_forward.30} parent=1 // loop_footer_branch
      %8 = sbr.rel target = $region3
    $region8: #{pointnet_forward.30} parent=1 // loop_exit
      _

// kernel: pointnet_forward.32
$region0: #{pointnet_forward.32}
  #allocation0 [shape = 'u32[]', space=smem, size = 0x4, offset = 0x4, fixed_abs, tag = 'smem constant byte address 0x4 - core index']
  #allocation1 [shape = 'u32[144,128]{1,0:T(1,128)}', space=vmem, size = 0x12000, scoped, tag = 'internal scratch']
  %s0 = inlined_call_operand.vmem [shape: bf16[2,16,128], index: 0, kind: input, shape index: {}]
  %s1 = inlined_call_operand.vmem [shape: bf16[128,1024], index: 1, kind: input, shape index: {}]
  %s2 = inlined_call_operand.vmem [shape: f32[1,1024], index: 2, kind: input, shape index: {}]
  %s3 = inlined_call_operand.vmem [shape: f32[2,1,1024], index: 3, kind: output, shape index: {}]
  %s4 = sld [smem:[#allocation0]]
  $region87: #{pointnet_forward.32} parent=0
    _
  %s6 = ssub.s32 1, %s4
  %s7 = scalar_select 0, %s6, %s4
  $region1: #{pointnet_forward.32} parent=0
    #allocation2 [shape = 'u8[131072]{0}', space=vmem, size = 0x20000, scoped, tag = 'input window, operand 1']
    loop: start=0, step=1, limit=10
    $region2: #{pointnet_forward.32} parent=1 // loop_pre_header
      _
    $region3: #{pointnet_forward.32} parent=1 // loop_header
      %s9 = sphi 0, %s13
      %p10 = scmp.ge.s32.totalorder %s9, 10
      %s16 = sphi 0, %s35
      %s17 = sphi 0, %s31
      %s18 = sphi 0, %s27
      %s19 = sphi 0, %s16
      %s20 = sphi 0, %s17
      %s21 = sphi 0, %s18
      %s22 = sphi 0, %s19
      %s23 = sphi 0, %s20
      %s24 = sphi 0, %s21
      %s40 = sphi 0, %s42
      %s43 = sphi 0, %s40
      %s44 = sphi 0, %s43
      %s60 = sphi 0, %s44
      %s66 = sphi 0, %s68
      %s69 = sphi 0, %s66
      %s70 = sphi 0, %s69
      %s86 = sphi 0, %s70
      %s92 = sphi 0, %s94
      %s95 = sphi 0, %s92
      %s96 = sphi 0, %s95
      %s112 = sphi 0, %s96
      %s120 = sphi 0, %s122
      %s123 = sphi 0, %s120
      %s124 = sphi 0, %s123
      %s140 = sphi 0, %s124
    $region4: #{pointnet_forward.32} parent=1 // loop_header_branch
      %12 = sbr.rel (%p10) target = $region8
    $region5: #{pointnet_forward.32} parent=1 // loop_body
      %s14 = ssub.s32 %s9, 1
      %s15 = ssub.s32 %s9, 2
      %s25 = sadd.s32 1, %s18
      %p26 = scmp.ge.s32.totalorder %s25, 1
      %s27 = scalar_select %p26, 0, %s25
      %s28 = sadd.s32 1, %s17
      %s29 = scalar_select %p26, %s28, %s17
      %p30 = scmp.ge.s32.totalorder %s29, 4
      %s31 = scalar_select %p30, 0, %s29
      %s32 = sadd.s32 1, %s16
      %s33 = scalar_select %p30, %s32, %s16
      %p34 = scmp.ge.s32.totalorder %s33, 2
      %s35 = scalar_select %p34, 0, %s33
      %s36 = ssub.s32 %s16, %s35
      %s37 = ssub.s32 %s18, %s27
      %s38 = sor.u32 %s36, %s37
      %p39 = scmp.eq.s32.totalorder %s38, 0
      %s41 = sadd.s32 %s40, 1
      %s42 = scalar_select %p39, %s40, %s41
      %p45 = pneg %p39
      %p46 = scmp.eq.s32.totalorder %s9, 7
      %p47 = por %p45, %p46
      %p48 = scmp.ne.s32.totalorder %s40, %s43
      %p49 = scmp.eq.s32.totalorder %s9, 0
      %p50 = por %p48, %p49
      %p51 = scmp.ne.s32.totalorder %s40, %s43
      %p52 = scmp.eq.s32.totalorder %s14, 7
      %p53 = por %p51, %p52
      %p54 = scmp.ne.s32.totalorder %s43, %s44
      %p55 = scmp.eq.s32.totalorder %s14, 0
      %p56 = por %p54, %p55
      %p57 = scmp.ne.s32.totalorder %s43, %s44
      %p58 = scmp.eq.s32.totalorder %s15, 7
      %p59 = por %p57, %p58
      %p61 = scmp.ne.s32.totalorder %s44, %s60
      %p62 = scmp.eq.s32.totalorder %s15, 0
      %p63 = por %p61, %p62
      %s64 = ssub.s32 %s17, %s31
      %p65 = scmp.eq.s32.totalorder %s64, 0
      %s67 = sadd.s32 %s66, 1
      %s68 = scalar_select %p65, %s66, %s67
      %p71 = pneg %p65
      %p72 = scmp.eq.s32.totalorder %s9, 7
      %p73 = por %p71, %p72
      %p74 = scmp.ne.s32.totalorder %s66, %s69
      %p75 = scmp.eq.s32.totalorder %s9, 0
      %p76 = por %p74, %p75
      %p77 = scmp.ne.s32.totalorder %s66, %s69
      %p78 = scmp.eq.s32.totalorder %s14, 7
      %p79 = por %p77, %p78
      %p80 = scmp.ne.s32.totalorder %s69, %s70
      %p81 = scmp.eq.s32.totalorder %s14, 0
      %p82 = por %p80, %p81
      %p83 = scmp.ne.s32.totalorder %s69, %s70
      %p84 = scmp.eq.s32.totalorder %s15, 7
      %p85 = por %p83, %p84
      %p87 = scmp.ne.s32.totalorder %s70, %s86
      %p88 = scmp.eq.s32.totalorder %s15, 0
      %p89 = por %p87, %p88
      %s90 = ssub.s32 %s17, %s31
      %p91 = scmp.eq.s32.totalorder %s90, 0
      %s93 = sadd.s32 %s92, 1
      %s94 = scalar_select %p91, %s92, %s93
      %p97 = pneg %p91
      %p98 = scmp.eq.s32.totalorder %s9, 7
      %p99 = por %p97, %p98
      %p100 = scmp.ne.s32.totalorder %s92, %s95
      %p101 = scmp.eq.s32.totalorder %s9, 0
      %p102 = por %p100, %p101
      %p103 = scmp.ne.s32.totalorder %s92, %s95
      %p104 = scmp.eq.s32.totalorder %s14, 7
      %p105 = por %p103, %p104
      %p106 = scmp.ne.s32.totalorder %s95, %s96
      %p107 = scmp.eq.s32.totalorder %s14, 0
      %p108 = por %p106, %p107
      %p109 = scmp.ne.s32.totalorder %s95, %s96
      %p110 = scmp.eq.s32.totalorder %s15, 7
      %p111 = por %p109, %p110
      %p113 = scmp.ne.s32.totalorder %s96, %s112
      %p114 = scmp.eq.s32.totalorder %s15, 0
      %p115 = por %p113, %p114
      %s116 = ssub.s32 %s16, %s35
      %s117 = ssub.s32 %s17, %s31
      %s118 = sor.u32 %s116, %s117
      %p119 = scmp.eq.s32.totalorder %s118, 0
      %s121 = sadd.s32 %s120, 1
      %s122 = scalar_select %p119, %s120, %s121
      %p125 = pneg %p119
      %p126 = scmp.eq.s32.totalorder %s9, 7
      %p127 = por %p125, %p126
      %p128 = scmp.ne.s32.totalorder %s120, %s123
      %p129 = scmp.eq.s32.totalorder %s9, 0
      %p130 = por %p128, %p129
      %p131 = scmp.ne.s32.totalorder %s120, %s123
      %p132 = scmp.eq.s32.totalorder %s14, 7
      %p133 = por %p131, %p132
      %p134 = scmp.ne.s32.totalorder %s123, %s124
      %p135 = scmp.eq.s32.totalorder %s14, 0
      %p136 = por %p134, %p135
      %p137 = scmp.ne.s32.totalorder %s123, %s124
      %p138 = scmp.eq.s32.totalorder %s15, 7
      %p139 = por %p137, %p138
      %p141 = scmp.ne.s32.totalorder %s124, %s140
      %p142 = scmp.eq.s32.totalorder %s15, 0
      %p143 = por %p141, %p142
      %p144 = scmp.le.s32.totalorder 1, %s9
      %p145 = scmp.lt.s32.totalorder %s9, 9
      %p146 = pnand %p144, %p145
      %p147 = pneg %p146
      // Predicated region
      $region9: #{pointnet_forward.32} parent=5 // pred_check
        _
      $region10: #{pointnet_forward.32} parent=5 // pred_check_branch
        %149 = sbr.rel (%p146) target = $region12
      $region11: #{pointnet_forward.32} parent=5 // pred_region
        %s150 = ssub.s32 %s9, 1
      $region12: #{pointnet_forward.32} parent=5 // pred_fallthru
        _
      %p151 = scmp.lt.s32.totalorder %s9, 8
      // Predicated region
      $region13: #{pointnet_forward.32} parent=5 // pred_check
        %p152 = pneg %p151
      $region14: #{pointnet_forward.32} parent=5 // pred_check_branch
        %154 = sbr.rel (%p152) target = $region16
      $region15: #{pointnet_forward.32} parent=5 // pred_region
        // Predicated region
        $region17: #{pointnet_forward.32} parent=15 // pred_check
          %p155 = pneg %p50
        $region18: #{pointnet_forward.32} parent=15 // pred_check_branch
          %157 = sbr.rel (%p155) target = $region20
        $region19: #{pointnet_forward.32} parent=15 // pred_region
          %s158 = smul.u32 2, %s18
          %p159 = scmp.lt.s32.totalorder %s16, 1
          %s160 = scalar_select %p159, %s16, 1
          %p161 = scmp.lt.s32.totalorder %s158, 1
          %s162 = scalar_select %p161, %s158, 1
          %s163 = smul.addr %s160, 2
          %s164 = sadd.s32 %s162, %s163
          %s165 = smul.addr %s164, 4
          %s166 = scalar_lea.vmem %s0, %s165
          %s167 = smul.u32 2, %s18
        $region20: #{pointnet_forward.32} parent=15 // pred_fallthru
          _
        // Predicated region
        $region21: #{pointnet_forward.32} parent=15 // pred_check
          %p168 = pneg %p76
        $region22: #{pointnet_forward.32} parent=15 // pred_check_branch
          %170 = sbr.rel (%p168) target = $region24
        $region23: #{pointnet_forward.32} parent=15 // pred_region
          %s171 = sand.u32 %s66, 1
          %s172 = sand.u32 %s66, 1
          %s173 = smul.addr %s172, 128
          %s174 = scalar_lea.vmem [#allocation2], %s173
          %s175 = smul.u32 2, %s17
          %s176 = smul.addr %s175, 4
          %s177 = scalar_lea.vmem %s1, %s176
          // Predicated region
          $region25: #{pointnet_forward.32} parent=23 // pred_check
            _
          $region26: #{pointnet_forward.32} parent=23 // pred_check_branch
            %179 = sbr.rel (0) target = $region28
          $region27: #{pointnet_forward.32} parent=23 // pred_region
            // Predicated region
            $region29: #{pointnet_forward.32} parent=27 // pred_check
              _
            $region30: #{pointnet_forward.32} parent=27 // pred_check_branch
              %181 = sbr.rel (0) target = $region32
            $region31: #{pointnet_forward.32} parent=27 // pred_region
              // Predicated region
              $region44: #{pointnet_forward.32} parent=31 // pred_check
                _
              $region45: #{pointnet_forward.32} parent=31 // pred_check_branch
                %226 = sbr.rel (0) target = $region47
              $region46: #{pointnet_forward.32} parent=31 // pred_region
                loop: start=0, step=1, limit=1
                $region48: #{pointnet_forward.32} parent=46 // loop_pre_header
                  _
                $region49: #{pointnet_forward.32} parent=46 // loop_header
                  %s228 = sphi 0, %s232
                  %p229 = scmp.ge.s32.totalorder %s228, 1
                  %s233 = sphi %s177, %s177
                  %s234 = sphi %s174, %s174
                $region50: #{pointnet_forward.32} parent=46 // loop_header_branch
                  %231 = sbr.rel (%p229) target = $region54
                $region51: #{pointnet_forward.32} parent=46 // loop_body
                  %v235 = vld [vmem:[%s233] sm:$0xff]
                  %236 = vst [vmem:[%s234] sm:$0xff] %v235
                  %v237 = vld [vmem:[%s233 + $0x20] sm:$0xff]
                  %238 = vst [vmem:[%s234 + $0x8] sm:$0xff] %v237
                  %v239 = vld [vmem:[%s233 + $0x40] sm:$0xff]
                  %240 = vst [vmem:[%s234 + $0x10] sm:$0xff] %v239
                  %v241 = vld [vmem:[%s233 + $0x60] sm:$0xff]
                  %242 = vst [vmem:[%s234 + $0x18] sm:$0xff] %v241
                  %v243 = vld [vmem:[%s233 + $0x80] sm:$0xff]
                  %244 = vst [vmem:[%s234 + $0x20] sm:$0xff] %v243
                  %v245 = vld [vmem:[%s233 + $0xa0] sm:$0xff]
                  %246 = vst [vmem:[%s234 + $0x28] sm:$0xff] %v245
                  %v247 = vld [vmem:[%s233 + $0xc0] sm:$0xff]
                  %248 = vst [vmem:[%s234 + $0x30] sm:$0xff] %v247
                  %v249 = vld [vmem:[%s233 + $0xe0] sm:$0xff]
                  %250 = vst [vmem:[%s234 + $0x38] sm:$0xff] %v249
                  %v251 = vld [vmem:[%s233 + $0x100] sm:$0xff]
                  %252 = vst [vmem:[%s234 + $0x40] sm:$0xff] %v251
                  %v253 = vld [vmem:[%s233 + $0x120] sm:$0xff]
                  %254 = vst [vmem:[%s234 + $0x48] sm:$0xff] %v253
                  %v255 = vld [vmem:[%s233 + $0x140] sm:$0xff]
                  %256 = vst [vmem:[%s234 + $0x50] sm:$0xff] %v255
                  %v257 = vld [vmem:[%s233 + $0x160] sm:$0xff]
                  %258 = vst [vmem:[%s234 + $0x58] sm:$0xff] %v257
                  %v259 = vld [vmem:[%s233 + $0x180] sm:$0xff]
                  %260 = vst [vmem:[%s234 + $0x60] sm:$0xff] %v259
                  %v261 = vld [vmem:[%s233 + $0x1a0] sm:$0xff]
                  %262 = vst [vmem:[%s234 + $0x68] sm:$0xff] %v261
                  %v263 = vld [vmem:[%s233 + $0x1c0] sm:$0xff]
                  %264 = vst [vmem:[%s234 + $0x70] sm:$0xff] %v263
                  %v265 = vld [vmem:[%s233 + $0x1e0] sm:$0xff]
                  %266 = vst [vmem:[%s234 + $0x78] sm:$0xff] %v265
                $region52: #{pointnet_forward.32} parent=46 // loop_footer
                  %s232 = sadd.s32 1, %s228
                $region53: #{pointnet_forward.32} parent=46 // loop_footer_branch
                  %227 = sbr.rel target = $region49
                $region54: #{pointnet_forward.32} parent=46 // loop_exit
                  _
              $region47: #{pointnet_forward.32} parent=31 // pred_fallthru
                _
              // Predicated region
              $region55: #{pointnet_forward.32} parent=31 // pred_check
                _
              $region56: #{pointnet_forward.32} parent=31 // pred_check_branch
                %268 = sbr.rel target = $region58
              $region57: #{pointnet_forward.32} parent=31 // pred_region
                _
              $region58: #{pointnet_forward.32} parent=31 // pred_fallthru
                _
            $region32: #{pointnet_forward.32} parent=27 // pred_fallthru
              _
            // Predicated region
            $region33: #{pointnet_forward.32} parent=27 // pred_check
              _
            $region34: #{pointnet_forward.32} parent=27 // pred_check_branch
              %183 = sbr.rel target = $region36
            $region35: #{pointnet_forward.32} parent=27 // pred_region
              loop: start=0, step=1, limit=1
              $region37: #{pointnet_forward.32} parent=35 // loop_pre_header
                _
              $region38: #{pointnet_forward.32} parent=35 // loop_header
                %s186 = sphi 0, %s190
                %p187 = scmp.ge.s32.totalorder %s186, 1
                %s191 = sphi %s177, %s177
                %s192 = sphi %s174, %s174
              $region39: #{pointnet_forward.32} parent=35 // loop_header_branch
                %189 = sbr.rel (%p187) target = $region43
              $region40: #{pointnet_forward.32} parent=35 // loop_body
                %v193 = vld [vmem:[%s191] sm:$0xff]
                %194 = vst [vmem:[%s192] sm:$0xff] %v193
                %v195 = vld [vmem:[%s191 + $0x20] sm:$0xff]
                %196 = vst [vmem:[%s192 + $0x8] sm:$0xff] %v195
                %v197 = vld [vmem:[%s191 + $0x40] sm:$0xff]
                %198 = vst [vmem:[%s192 + $0x10] sm:$0xff] %v197
                %v199 = vld [vmem:[%s191 + $0x60] sm:$0xff]
                %200 = vst [vmem:[%s192 + $0x18] sm:$0xff] %v199
                %v201 = vld [vmem:[%s191 + $0x80] sm:$0xff]
                %202 = vst [vmem:[%s192 + $0x20] sm:$0xff] %v201
                %v203 = vld [vmem:[%s191 + $0xa0] sm:$0xff]
                %204 = vst [vmem:[%s192 + $0x28] sm:$0xff] %v203
                %v205 = vld [vmem:[%s191 + $0xc0] sm:$0xff]
                %206 = vst [vmem:[%s192 + $0x30] sm:$0xff] %v205
                %v207 = vld [vmem:[%s191 + $0xe0] sm:$0xff]
                %208 = vst [vmem:[%s192 + $0x38] sm:$0xff] %v207
                %v209 = vld [vmem:[%s191 + $0x100] sm:$0xff]
                %210 = vst [vmem:[%s192 + $0x40] sm:$0xff] %v209
                %v211 = vld [vmem:[%s191 + $0x120] sm:$0xff]
                %212 = vst [vmem:[%s192 + $0x48] sm:$0xff] %v211
                %v213 = vld [vmem:[%s191 + $0x140] sm:$0xff]
                %214 = vst [vmem:[%s192 + $0x50] sm:$0xff] %v213
                %v215 = vld [vmem:[%s191 + $0x160] sm:$0xff]
                %216 = vst [vmem:[%s192 + $0x58] sm:$0xff] %v215
                %v217 = vld [vmem:[%s191 + $0x180] sm:$0xff]
                %218 = vst [vmem:[%s192 + $0x60] sm:$0xff] %v217
                %v219 = vld [vmem:[%s191 + $0x1a0] sm:$0xff]
                %220 = vst [vmem:[%s192 + $0x68] sm:$0xff] %v219
                %v221 = vld [vmem:[%s191 + $0x1c0] sm:$0xff]
                %222 = vst [vmem:[%s192 + $0x70] sm:$0xff] %v221
                %v223 = vld [vmem:[%s191 + $0x1e0] sm:$0xff]
                %224 = vst [vmem:[%s192 + $0x78] sm:$0xff] %v223
              $region41: #{pointnet_forward.32} parent=35 // loop_footer
                %s190 = sadd.s32 1, %s186
              $region42: #{pointnet_forward.32} parent=35 // loop_footer_branch
                %185 = sbr.rel target = $region38
              $region43: #{pointnet_forward.32} parent=35 // loop_exit
                _
            $region36: #{pointnet_forward.32} parent=27 // pred_fallthru
              _
          $region28: #{pointnet_forward.32} parent=23 // pred_fallthru
            _
          %269 = vnop
        $region24: #{pointnet_forward.32} parent=15 // pred_fallthru
          _
        // Predicated region
        $region59: #{pointnet_forward.32} parent=15 // pred_check
          %p270 = pneg %p102
        $region60: #{pointnet_forward.32} parent=15 // pred_check_branch
          %272 = sbr.rel (%p270) target = $region62
        $region61: #{pointnet_forward.32} parent=15 // pred_region
          %s273 = smul.u32 2, %s17
          %p274 = scmp.lt.s32.totalorder %s273, 7
          %s275 = scalar_select %p274, %s273, 7
          %s276 = scalar_lea.vmem %s2, %s275
          %s277 = smul.u32 2, %s17
        $region62: #{pointnet_forward.32} parent=15 // pred_fallthru
          _
      $region16: #{pointnet_forward.32} parent=5 // pred_fallthru
        _
      %p278 = scmp.le.s32.totalorder 1, %s9
      %p279 = scmp.lt.s32.totalorder %s9, 9
      %p280 = pnand %p278, %p279
      %p281 = pneg %p280
      // Predicated region
      $region63: #{pointnet_forward.32} parent=5 // pred_check
        _
      $region64: #{pointnet_forward.32} parent=5 // pred_check_branch
        %283 = sbr.rel (%p280) target = $region66
      $region65: #{pointnet_forward.32} parent=5 // pred_region
        %s284 = ssub.s32 %s9, 1
        %s285 = sand.u32 %s69, 1
        %s286 = sand.u32 %s69, 1
        %s287 = smul.addr %s286, 128
        %s288 = scalar_lea.vmem [#allocation2], %s287
        // Predicated region
        $region67: #{pointnet_forward.32} parent=65 // pred_check
          %p289 = pneg %p82
        $region68: #{pointnet_forward.32} parent=65 // pred_check_branch
          %291 = sbr.rel (%p289) target = $region70
        $region69: #{pointnet_forward.32} parent=65 // pred_region
          _
        $region70: #{pointnet_forward.32} parent=65 // pred_fallthru
          _
        %s292 = smul.u32 2, %s21
        %p293 = scmp.lt.s32.totalorder %s19, 1
        %s294 = scalar_select %p293, %s19, 1
        %p295 = scmp.lt.s32.totalorder %s292, 1
        %s296 = scalar_select %p295, %s292, 1
        %s297 = smul.addr %s294, 2
        %s298 = sadd.s32 %s296, %s297
        %s299 = smul.addr %s298, 4
        %s300 = scalar_lea.vmem %s0, %s299
        %p301 = pneg %p56
        %p302 = pneg %p53
        %s303 = sand.u32 %s69, 1
        %s304 = sand.u32 %s69, 1
        %s305 = smul.addr %s304, 128
        %s306 = scalar_lea.vmem [#allocation2], %s305
        %p307 = pneg %p82
        %p308 = pneg %p79
        %s309 = smul.u32 2, %s20
        %p310 = scmp.lt.s32.totalorder %s309, 7
        %s311 = scalar_select %p310, %s309, 7
        %s312 = scalar_lea.vmem %s2, %s311
        %p313 = pneg %p108
        %p314 = pneg %p105
        %p315 = pneg %p136
        %p316 = pneg %p133
        %s317 = smul.u32 2, %s20
        %p318 = scmp.lt.s32.totalorder %s19, 1
        %s319 = scalar_select %p318, %s19, 1
        %p320 = scmp.lt.s32.totalorder %s317, 7
        %s321 = scalar_select %p320, %s317, 7
        %s322 = smul.addr %s319, 8
        %s323 = sadd.s32 %s321, %s322
        %s324 = scalar_lea.vmem %s3, %s323
        %s325 = smul.u32 2, %s21
        %p326 = scmp.lt.s32.totalorder %s19, 1
        %s327 = scalar_select %p326, %s19, 1
        %p328 = scmp.lt.s32.totalorder %s325, 1
        %s329 = scalar_select %p328, %s325, 1
        %s330 = smul.addr %s327, 2
        %s331 = sadd.s32 %s329, %s330
        %s332 = smul.addr %s331, 4
        %s333 = scalar_lea.vmem %s0, %s332
        %s334 = smul.u32 2, %s21
        %s335 = smul.u32 2, %s20
        %s336 = smul.u32 2, %s20
        %p337 = scmp.lt.s32.totalorder %s336, 7
        %s338 = scalar_select %p337, %s336, 7
        %s339 = scalar_lea.vmem %s2, %s338
        %s340 = smul.u32 2, %s20
        %s341 = smul.u32 2, %s20
        %p342 = scmp.lt.s32.totalorder %s19, 1
        %s343 = scalar_select %p342, %s19, 1
        %p344 = scmp.lt.s32.totalorder %s341, 7
        %s345 = scalar_select %p344, %s341, 7
        %s346 = smul.addr %s343, 8
        %s347 = sadd.s32 %s345, %s346
        %s348 = scalar_lea.vmem %s3, %s347
        %s349 = smul.u32 2, %s20
        %p351 = scmp.eq.s32.totalorder %s21, 0
        // Predicated region
        $region71: #{pointnet_forward.32} parent=65 // pred_check
          %p352 = pneg %p351
        $region72: #{pointnet_forward.32} parent=65 // pred_check_branch
          %354 = sbr.rel (%p352) target = $region74
        $region73: #{pointnet_forward.32} parent=65 // pred_region
          %v355 = vlaneseq
          %vm356 = vcmp.ge.s32.totalorder %v355, 0
          %vm357 = vcmp.lt.s32.totalorder %v355, 256
          %vm358 = vmand %vm356, %vm357
          %359 = vst.msk [vmem:[%s348] sm:$0x3] %vm358, -inf
        $region74: #{pointnet_forward.32} parent=65 // pred_fallthru
          _
        %v360 = vld [vmem:[%s333] sm:$0xf]
        %v361 = vld [vmem:[%s333 + $0x4] sm:$0xf]
        %v362 = vld [vmem:[%s288] sm:$0xff]
        %v363 = vld [vmem:[%s288 + $0x8] sm:$0xff]
        %v364 = vld [vmem:[%s288 + $0x10] sm:$0xff]
        %v365 = vld [vmem:[%s288 + $0x18] sm:$0xff]
        %v366 = vld [vmem:[%s288 + $0x20] sm:$0xff]
        %v367 = vld [vmem:[%s288 + $0x28] sm:$0xff]
        %v368 = vld [vmem:[%s288 + $0x30] sm:$0xff]
        %v369 = vld [vmem:[%s288 + $0x38] sm:$0xff]
        %v370 = vld [vmem:[%s288 + $0x40] sm:$0xff]
        %v371 = vld [vmem:[%s288 + $0x48] sm:$0xff]
        %v372 = vld [vmem:[%s288 + $0x50] sm:$0xff]
        %v373 = vld [vmem:[%s288 + $0x58] sm:$0xff]
        %v374 = vld [vmem:[%s288 + $0x60] sm:$0xff]
        %v375 = vld [vmem:[%s288 + $0x68] sm:$0xff]
        %v376 = vld [vmem:[%s288 + $0x70] sm:$0xff]
        %v377 = vld [vmem:[%s288 + $0x78] sm:$0xff]
        %v378 = vld [vmem:[%s339] sm:$0x3]
        %v380 = vlaneseq
        %v381 = vshrl.u32 %v380, 7
        %v382 = vsub.s32 0, %v381
        %v383 = vrot.slane %v378, %v382
        %v384 = vlaneseq
        %v385 = vshrl.u32 %v384, 7
        %v386 = vsub.s32 1, %v385
        %v387 = vrot.slane %v378, %v386
        %v392 = vunpack.c.l.b16 %v360
        %v393 = vunpack.c.l.b16 %v361
        %v394 = vpack.c.b16 %v393, %v392
        %v412 = vunpack.c.l.b16 %v362
        %v413 = vunpack.c.h.b16 %v362
        %v414 = vunpack.c.l.b16 %v363
        %v415 = vunpack.c.h.b16 %v363
        %v416 = vunpack.c.l.b16 %v364
        %v417 = vunpack.c.h.b16 %v364
        %v418 = vunpack.c.l.b16 %v365
        %v419 = vunpack.c.h.b16 %v365
        %v420 = vunpack.c.l.b16 %v366
        %v421 = vunpack.c.h.b16 %v366
        %v422 = vunpack.c.l.b16 %v367
        %v423 = vunpack.c.h.b16 %v367
        %v424 = vunpack.c.l.b16 %v368
        %v425 = vunpack.c.h.b16 %v368
        %v426 = vunpack.c.l.b16 %v369
        %v427 = vunpack.c.h.b16 %v369
        %v428 = vunpack.c.l.b16 %v370
        %v429 = vunpack.c.h.b16 %v370
        %v430 = vunpack.c.l.b16 %v371
        %v431 = vunpack.c.h.b16 %v371
        %v432 = vunpack.c.l.b16 %v372
        %v433 = vunpack.c.h.b16 %v372
        %v434 = vunpack.c.l.b16 %v373
        %v435 = vunpack.c.h.b16 %v373
        %v436 = vunpack.c.l.b16 %v374
        %v437 = vunpack.c.h.b16 %v374
        %v438 = vunpack.c.l.b16 %v375
        %v439 = vunpack.c.h.b16 %v375
        %v440 = vunpack.c.l.b16 %v376
        %v441 = vunpack.c.h.b16 %v376
        %v442 = vunpack.c.l.b16 %v377
        %v443 = vunpack.c.h.b16 %v377
        %v444 = vpack.c.b16 %v414, %v412
        %v445 = vpack.c.b16 %v415, %v413
        %v446 = vpack.c.b16 %v418, %v416
        %v447 = vpack.c.b16 %v419, %v417
        %v448 = vpack.c.b16 %v422, %v420
        %v449 = vpack.c.b16 %v423, %v421
        %v450 = vpack.c.b16 %v426, %v424
        %v451 = vpack.c.b16 %v427, %v425
        %v452 = vpack.c.b16 %v430, %v428
        %v453 = vpack.c.b16 %v431, %v429
        %v454 = vpack.c.b16 %v434, %v432
        %v455 = vpack.c.b16 %v435, %v433
        %v456 = vpack.c.b16 %v438, %v436
        %v457 = vpack.c.b16 %v439, %v437
        %v458 = vpack.c.b16 %v442, %v440
        %v459 = vpack.c.b16 %v443, %v441
        %476 = vmatprep.subr.bf16.mxu0 %v445
        %477 = vmatpush1.bf16.msra.mxu0 %v444
        %478 = vmatprep.subr.bf16.mxu0 %v447
        %479 = vmatpush1.bf16.msra.mxu0 %v446
        %480 = vmatprep.subr.bf16.mxu0 %v449
        %481 = vmatpush1.bf16.msra.mxu0 %v448
        %482 = vmatprep.subr.bf16.mxu0 %v451
        %483 = vmatpush1.bf16.msra.mxu0 %v450
        %484 = vmatprep.subr.bf16.mxu0 %v453
        %485 = vmatpush1.bf16.msra.mxu0 %v452
        %486 = vmatprep.subr.bf16.mxu0 %v455
        %487 = vmatpush1.bf16.msra.mxu0 %v454
        %488 = vmatprep.subr.bf16.mxu0 %v457
        %489 = vmatpush1.bf16.msra.mxu0 %v456
        %490 = vmatprep.subr.bf16.mxu0 %v459
        %491 = vmatpush1.bf16.msra.mxu0 %v458
        %492 = vmatprep.subr.bf16.mxu0 0
        %493 = vmatpush1.bf16.msra.mxu0 0
        %494 = vmatprep.subr.bf16.mxu0 0
        %495 = vmatpush1.bf16.msra.mxu0 0
        %496 = vmatprep.subr.bf16.mxu0 0
        %497 = vmatpush1.bf16.msra.mxu0 0
        %498 = vmatprep.subr.bf16.mxu0 0
        %499 = vmatpush1.bf16.msra.mxu0 0
        %500 = vmatprep.subr.bf16.mxu0 0
        %501 = vmatpush1.bf16.msra.mxu0 0
        %502 = vmatprep.subr.bf16.mxu0 0
        %503 = vmatpush1.bf16.msra.mxu0 0
        %504 = vmatprep.subr.bf16.mxu0 0
        %505 = vmatpush1.bf16.msra.mxu0 0
        %506 = vmatprep.subr.bf16.mxu0 0
        %507 = vmatpush1.bf16.msra.mxu0 0
        %508 = vmatprep.mubr.bf16.mxu0 0
        %509 = vmatmul.mubr.bf16.gmra.mrb[0].mxu0 %v394
        %v510 = vpop.f32.mrb[0].mxu0
        %v511 = vadd.f32 %v383, %v510
        %v512 = vpop.f32.mrb[0].mxu0
        %v513 = vadd.f32 %v387, %v512
        %v514 = vpop.f32.mrb[0].mxu0
        %v515 = vadd.f32 %v383, %v514
        %v516 = vpop.f32.mrb[0].mxu0
        %v517 = vadd.f32 %v387, %v516
        %518 = vdwg.mxu0
        %v519 = vmax.f32 %v511, %v515
        %v520 = vrot.slane %v519, 4
        %v521 = vmax.f32 %v519, %v520
        %v522 = vrot.slane %v521, 2
        %v523 = vmax.f32 %v521, %v522
        %v524 = vrot.slane %v523, 1
        %v525 = vmax.f32 %v523, %v524
        %v526 = vmax.f32 %v513, %v517
        %v527 = vrot.slane %v526, 4
        %v528 = vmax.f32 %v526, %v527
        %v529 = vrot.slane %v528, 2
        %v530 = vmax.f32 %v528, %v529
        %v531 = vrot.slane %v530, 1
        %v532 = vmax.f32 %v530, %v531
        %v533 = vld [vmem:[%s348] sm:$0x3]
        %v536 = vcombine.low %v525, %v532
        %v538 = vunpack.c.l.s4 1966171168
        %v539 = vunpack.c.0.s8 %v538
        %v540 = vlaneseq
        %v541 = vshrl.u32 %v540, 7
        %v542 = vsub.s32 %v539, %v541
        %v543 = vrot.slane %v536, %v542
        %v545 = vunpack.c.l.s4 1966171168
        %v546 = vunpack.c.0.s8 %v545
        %v547 = vlaneseq
        %v548 = vshrl.u32 %v547, 7
        %v549 = vsub.s32 %v546, %v548
        %v550 = vrot.slane %v543, %v549
        %v552 = vmax.f32 %v533, %v550
        %v553 = vlaneseq
        %vm554 = vcmp.ge.s32.totalorder %v553, 0
        %vm555 = vcmp.lt.s32.totalorder %v553, 256
        %vm556 = vmand %vm554, %vm555
        %557 = vst.msk [vmem:[%s348] sm:$0x3] %vm556, %v552
        %s558 = smul.u32 2, %s20
        %p559 = scmp.lt.s32.totalorder %s19, 1
        %s560 = scalar_select %p559, %s19, 1
        %p561 = scmp.lt.s32.totalorder %s558, 7
        %s562 = scalar_select %p561, %s558, 7
        %s563 = smul.addr %s560, 8
        %s564 = sadd.s32 %s562, %s563
        %s565 = scalar_lea.vmem %s3, %s564
        // Predicated region
        $region75: #{pointnet_forward.32} parent=65 // pred_check
          %p566 = pneg %p133
        $region76: #{pointnet_forward.32} parent=65 // pred_check_branch
          %568 = sbr.rel (%p566) target = $region78
        $region77: #{pointnet_forward.32} parent=65 // pred_region
          %s569 = smul.u32 2, %s20
        $region78: #{pointnet_forward.32} parent=65 // pred_fallthru
          _
      $region66: #{pointnet_forward.32} parent=5 // pred_fallthru
        _
      %p570 = scmp.le.s32.totalorder 2, %s9
      // Predicated region
      $region79: #{pointnet_forward.32} parent=5 // pred_check
        %p571 = pneg %p570
      $region80: #{pointnet_forward.32} parent=5 // pred_check_branch
        %573 = sbr.rel (%p571) target = $region82
      $region81: #{pointnet_forward.32} parent=5 // pred_region
        %s574 = ssub.s32 %s9, 2
        // Predicated region
        $region83: #{pointnet_forward.32} parent=81 // pred_check
          %p575 = pneg %p139
        $region84: #{pointnet_forward.32} parent=81 // pred_check_branch
          %577 = sbr.rel (%p575) target = $region86
        $region85: #{pointnet_forward.32} parent=81 // pred_region
          %s578 = smul.u32 2, %s23
          %p579 = scmp.lt.s32.totalorder %s22, 1
          %s580 = scalar_select %p579, %s22, 1
          %p581 = scmp.lt.s32.totalorder %s578, 7
          %s582 = scalar_select %p581, %s578, 7
          %s583 = smul.addr %s580, 8
          %s584 = sadd.s32 %s582, %s583
          %s585 = scalar_lea.vmem %s3, %s584
        $region86: #{pointnet_forward.32} parent=81 // pred_fallthru
          _
      $region82: #{pointnet_forward.32} parent=5 // pred_fallthru
        _
    $region6: #{pointnet_forward.32} parent=1 // loop_footer
      %s13 = sadd.s32 1, %s9
    $region7: #{pointnet_forward.32} parent=1 // loop_footer_branch
      %8 = sbr.rel target = $region3
    $region8: #{pointnet_forward.32} parent=1 // loop_exit
      _

// kernel: pointnet_forward.31
$region0: #{pointnet_forward.31}
  #allocation0 [shape = 'u32[]', space=smem, size = 0x4, offset = 0x4, fixed_abs, tag = 'smem constant byte address 0x4 - core index']
  #allocation1 [shape = 'u32[144,128]{1,0:T(1,128)}', space=vmem, size = 0x12000, scoped, tag = 'internal scratch']
  %s0 = inlined_call_operand.vmem [shape: bf16[2,16,64], index: 0, kind: input, shape index: {}]
  %s1 = inlined_call_operand.vmem [shape: bf16[2,64,128], index: 1, kind: input, shape index: {}]
  %s2 = inlined_call_operand.vmem [shape: f32[1,128], index: 2, kind: input, shape index: {}]
  %s3 = inlined_call_operand.vmem [shape: bf16[2,16,128], index: 3, kind: output, shape index: {}]
  %s4 = sld [smem:[#allocation0]]
  $region45: #{pointnet_forward.31} parent=0
    _
  %s6 = ssub.s32 1, %s4
  %s7 = scalar_select 0, %s6, %s4
  loop: start=0, step=1, limit=4
  $region2: #{pointnet_forward.31} parent=0 // loop_pre_header
    _
  $region3: #{pointnet_forward.31} parent=0 // loop_header
    %s9 = sphi 0, %s13
    %p10 = scmp.ge.s32.totalorder %s9, 4
    %s16 = sphi 0, %s28
    %s17 = sphi 0, %s24
    %s18 = sphi 0, %s16
    %s19 = sphi 0, %s17
    %s20 = sphi 0, %s18
    %s21 = sphi 0, %s19
    %s33 = sphi 0, %s35
    %s36 = sphi 0, %s33
    %s37 = sphi 0, %s36
    %s53 = sphi 0, %s37
    %s59 = sphi 0, %s61
    %s62 = sphi 0, %s59
    %s63 = sphi 0, %s62
    %s79 = sphi 0, %s63
    %s83 = sphi 0, %s83
    %s85 = sphi 0, %s83
    %s86 = sphi 0, %s85
    %s100 = sphi 0, %s86
    %s108 = sphi 0, %s110
    %s111 = sphi 0, %s108
    %s112 = sphi 0, %s111
    %s128 = sphi 0, %s112
  $region4: #{pointnet_forward.31} parent=0 // loop_header_branch
    %12 = sbr.rel (%p10) target = $region8
  $region5: #{pointnet_forward.31} parent=0 // loop_body
    %s14 = ssub.s32 %s9, 1
    %s15 = ssub.s32 %s9, 2
    %s22 = sadd.s32 1, %s17
    %p23 = scmp.ge.s32.totalorder %s22, 1
    %s24 = scalar_select %p23, 0, %s22
    %s25 = sadd.s32 1, %s16
    %s26 = scalar_select %p23, %s25, %s16
    %p27 = scmp.ge.s32.totalorder %s26, 2
    %s28 = scalar_select %p27, 0, %s26
    %s29 = ssub.s32 %s16, %s28
    %s30 = ssub.s32 %s17, %s24
    %s31 = sor.u32 %s29, %s30
    %p32 = scmp.eq.s32.totalorder %s31, 0
    %s34 = sadd.s32 %s33, 1
    %s35 = scalar_select %p32, %s33, %s34
    %p38 = pneg %p32
    %p39 = scmp.eq.s32.totalorder %s9, 1
    %p40 = por %p38, %p39
    %p41 = scmp.ne.s32.totalorder %s33, %s36
    %p42 = scmp.eq.s32.totalorder %s9, 0
    %p43 = por %p41, %p42
    %p44 = scmp.ne.s32.totalorder %s33, %s36
    %p45 = scmp.eq.s32.totalorder %s14, 1
    %p46 = por %p44, %p45
    %p47 = scmp.ne.s32.totalorder %s36, %s37
    %p48 = scmp.eq.s32.totalorder %s14, 0
    %p49 = por %p47, %p48
    %p50 = scmp.ne.s32.totalorder %s36, %s37
    %p51 = scmp.eq.s32.totalorder %s15, 1
    %p52 = por %p50, %p51
    %p54 = scmp.ne.s32.totalorder %s37, %s53
    %p55 = scmp.eq.s32.totalorder %s15, 0
    %p56 = por %p54, %p55
    %s57 = ssub.s32 %s16, %s28
    %p58 = scmp.eq.s32.totalorder %s57, 0
    %s60 = sadd.s32 %s59, 1
    %s61 = scalar_select %p58, %s59, %s60
    %p64 = pneg %p58
    %p65 = scmp.eq.s32.totalorder %s9, 1
    %p66 = por %p64, %p65
    %p67 = scmp.ne.s32.totalorder %s59, %s62
    %p68 = scmp.eq.s32.totalorder %s9, 0
    %p69 = por %p67, %p68
    %p70 = scmp.ne.s32.totalorder %s59, %s62
    %p71 = scmp.eq.s32.totalorder %s14, 1
    %p72 = por %p70, %p71
    %p73 = scmp.ne.s32.totalorder %s62, %s63
    %p74 = scmp.eq.s32.totalorder %s14, 0
    %p75 = por %p73, %p74
    %p76 = scmp.ne.s32.totalorder %s62, %s63
    %p77 = scmp.eq.s32.totalorder %s15, 1
    %p78 = por %p76, %p77
    %p80 = scmp.ne.s32.totalorder %s63, %s79
    %p81 = scmp.eq.s32.totalorder %s15, 0
    %p82 = por %p80, %p81
    %s84 = sadd.s32 %s83, 1
    %p87 = scmp.eq.s32.totalorder %s9, 1
    %p88 = scmp.ne.s32.totalorder %s83, %s85
    %p89 = scmp.eq.s32.totalorder %s9, 0
    %p90 = por %p88, %p89
    %p91 = scmp.ne.s32.totalorder %s83, %s85
    %p92 = scmp.eq.s32.totalorder %s14, 1
    %p93 = por %p91, %p92
    %p94 = scmp.ne.s32.totalorder %s85, %s86
    %p95 = scmp.eq.s32.totalorder %s14, 0
    %p96 = por %p94, %p95
    %p97 = scmp.ne.s32.totalorder %s85, %s86
    %p98 = scmp.eq.s32.totalorder %s15, 1
    %p99 = por %p97, %p98
    %p101 = scmp.ne.s32.totalorder %s86, %s100
    %p102 = scmp.eq.s32.totalorder %s15, 0
    %p103 = por %p101, %p102
    %s104 = ssub.s32 %s16, %s28
    %s105 = ssub.s32 %s17, %s24
    %s106 = sor.u32 %s104, %s105
    %p107 = scmp.eq.s32.totalorder %s106, 0
    %s109 = sadd.s32 %s108, 1
    %s110 = scalar_select %p107, %s108, %s109
    %p113 = pneg %p107
    %p114 = scmp.eq.s32.totalorder %s9, 1
    %p115 = por %p113, %p114
    %p116 = scmp.ne.s32.totalorder %s108, %s111
    %p117 = scmp.eq.s32.totalorder %s9, 0
    %p118 = por %p116, %p117
    %p119 = scmp.ne.s32.totalorder %s108, %s111
    %p120 = scmp.eq.s32.totalorder %s14, 1
    %p121 = por %p119, %p120
    %p122 = scmp.ne.s32.totalorder %s111, %s112
    %p123 = scmp.eq.s32.totalorder %s14, 0
    %p124 = por %p122, %p123
    %p125 = scmp.ne.s32.totalorder %s111, %s112
    %p126 = scmp.eq.s32.totalorder %s15, 1
    %p127 = por %p125, %p126
    %p129 = scmp.ne.s32.totalorder %s112, %s128
    %p130 = scmp.eq.s32.totalorder %s15, 0
    %p131 = por %p129, %p130
    %p132 = scmp.le.s32.totalorder 1, %s9
    %p133 = scmp.lt.s32.totalorder %s9, 3
    %p134 = pnand %p132, %p133
    %p135 = pneg %p134
    // Predicated region
    $region9: #{pointnet_forward.31} parent=5 // pred_check
      _
    $region10: #{pointnet_forward.31} parent=5 // pred_check_branch
      %137 = sbr.rel (%p134) target = $region12
    $region11: #{pointnet_forward.31} parent=5 // pred_region
      %s138 = ssub.s32 %s9, 1
      // Predicated region
      $region13: #{pointnet_forward.31} parent=11 // pred_check
        %p139 = pneg %p96
      $region14: #{pointnet_forward.31} parent=11 // pred_check_branch
        %141 = sbr.rel (%p139) target = $region16
      $region15: #{pointnet_forward.31} parent=11 // pred_region
        _
      $region16: #{pointnet_forward.31} parent=11 // pred_fallthru
        _
    $region12: #{pointnet_forward.31} parent=5 // pred_fallthru
      _
    %p142 = scmp.lt.s32.totalorder %s9, 2
    // Predicated region
    $region17: #{pointnet_forward.31} parent=5 // pred_check
      %p143 = pneg %p142
    $region18: #{pointnet_forward.31} parent=5 // pred_check_branch
      %145 = sbr.rel (%p143) target = $region20
    $region19: #{pointnet_forward.31} parent=5 // pred_region
      // Predicated region
      $region21: #{pointnet_forward.31} parent=19 // pred_check
        %p146 = pneg %p43
      $region22: #{pointnet_forward.31} parent=19 // pred_check_branch
        %148 = sbr.rel (%p146) target = $region24
      $region23: #{pointnet_forward.31} parent=19 // pred_region
        %s149 = smul.u32 2, %s17
        %p150 = scmp.lt.s32.totalorder %s16, 1
        %s151 = scalar_select %p150, %s16, 1
        %p152 = scmp.lt.s32.totalorder %s149, 1
        %s153 = scalar_select %p152, %s149, 1
        %s154 = smul.addr %s151, 2
        %s155 = sadd.s32 %s153, %s154
        %s156 = smul.addr %s155, 4
        %s157 = scalar_lea.vmem %s0, %s156
        %s158 = smul.u32 2, %s17
      $region24: #{pointnet_forward.31} parent=19 // pred_fallthru
        _
      // Predicated region
      $region25: #{pointnet_forward.31} parent=19 // pred_check
        %p159 = pneg %p69
      $region26: #{pointnet_forward.31} parent=19 // pred_check_branch
        %161 = sbr.rel (%p159) target = $region28
      $region27: #{pointnet_forward.31} parent=19 // pred_region
        %p162 = scmp.lt.s32.totalorder %s16, 1
        %s163 = scalar_select %p162, %s16, 1
        %s164 = smul.addr %s163, 8
        %s165 = smul.addr %s164, 4
        %s166 = scalar_lea.vmem %s1, %s165
      $region28: #{pointnet_forward.31} parent=19 // pred_fallthru
        _
    $region20: #{pointnet_forward.31} parent=5 // pred_fallthru
      _
    %p167 = scmp.le.s32.totalorder 1, %s9
    %p168 = scmp.lt.s32.totalorder %s9, 3
    %p169 = pnand %p167, %p168
    %p170 = pneg %p169
    // Predicated region
    $region29: #{pointnet_forward.31} parent=5 // pred_check
      _
    $region30: #{pointnet_forward.31} parent=5 // pred_check_branch
      %172 = sbr.rel (%p169) target = $region32
    $region31: #{pointnet_forward.31} parent=5 // pred_region
      %s173 = ssub.s32 %s9, 1
      %s174 = smul.u32 2, %s19
      %p175 = scmp.lt.s32.totalorder %s18, 1
      %s176 = scalar_select %p175, %s18, 1
      %p177 = scmp.lt.s32.totalorder %s174, 1
      %s178 = scalar_select %p177, %s174, 1
      %s179 = smul.addr %s176, 2
      %s180 = sadd.s32 %s178, %s179
      %s181 = smul.addr %s180, 4
      %s182 = scalar_lea.vmem %s0, %s181
      %p183 = pneg %p49
      %p184 = pneg %p46
      %p185 = scmp.lt.s32.totalorder %s18, 1
      %s186 = scalar_select %p185, %s18, 1
      %s187 = smul.addr %s186, 8
      %s188 = smul.addr %s187, 4
      %s189 = scalar_lea.vmem %s1, %s188
      %p190 = pneg %p75
      %p191 = pneg %p72
      %p192 = pneg %p96
      %p193 = pneg %p93
      %p194 = pneg %p124
      %p195 = pneg %p121
      %s196 = smul.u32 2, %s19
      %p197 = scmp.lt.s32.totalorder %s18, 1
      %s198 = scalar_select %p197, %s18, 1
      %p199 = scmp.lt.s32.totalorder %s196, 1
      %s200 = scalar_select %p199, %s196, 1
      %s201 = smul.addr %s198, 2
      %s202 = sadd.s32 %s200, %s201
      %s203 = smul.addr %s202, 4
      %s204 = scalar_lea.vmem %s3, %s203
      %s205 = smul.u32 2, %s19
      %p206 = scmp.lt.s32.totalorder %s18, 1
      %s207 = scalar_select %p206, %s18, 1
      %p208 = scmp.lt.s32.totalorder %s205, 1
      %s209 = scalar_select %p208, %s205, 1
      %s210 = smul.addr %s207, 2
      %s211 = sadd.s32 %s209, %s210
      %s212 = smul.addr %s211, 4
      %s213 = scalar_lea.vmem %s0, %s212
      %s214 = smul.u32 2, %s19
      %p215 = scmp.lt.s32.totalorder %s18, 1
      %s216 = scalar_select %p215, %s18, 1
      %s217 = smul.addr %s216, 8
      %s218 = smul.addr %s217, 4
      %s219 = scalar_lea.vmem %s1, %s218
      %s220 = smul.u32 2, %s19
      %p221 = scmp.lt.s32.totalorder %s18, 1
      %s222 = scalar_select %p221, %s18, 1
      %p223 = scmp.lt.s32.totalorder %s220, 1
      %s224 = scalar_select %p223, %s220, 1
      %s225 = smul.addr %s222, 2
      %s226 = sadd.s32 %s224, %s225
      %s227 = smul.addr %s226, 4
      %s228 = scalar_lea.vmem %s3, %s227
      %s229 = smul.u32 2, %s19
      %v231 = vld [vmem:[%s213] sm:$0xf]
      %v232 = vld [vmem:[%s213 + $0x4] sm:$0xf]
      %v233 = vld [vmem:[%s219] sm:$0xf]
      %v234 = vld [vmem:[%s219 + $0x4] sm:$0xf]
      %v235 = vld [vmem:[%s219 + $0x8] sm:$0xf]
      %v236 = vld [vmem:[%s219 + $0xc] sm:$0xf]
      %v237 = vld [vmem:[%s219 + $0x10] sm:$0xf]
      %v238 = vld [vmem:[%s219 + $0x14] sm:$0xf]
      %v239 = vld [vmem:[%s219 + $0x18] sm:$0xf]
      %v240 = vld [vmem:[%s219 + $0x1c] sm:$0xf]
      %v241 = vld [vmem:[%s2] sm:$0x1]
      %v243 = vlaneseq
      %v244 = vshrl.u32 %v243, 7
      %v245 = vsub.s32 0, %v244
      %v246 = vrot.slane %v241, %v245
      %v250 = vunpack.c.l.b16 %v231
      %v251 = vunpack.c.l.b16 %v232
      %v252 = vpack.c.b16 %v251, %v250
      %v261 = vunpack.c.l.b16 %v233
      %v262 = vunpack.c.l.b16 %v234
      %v263 = vunpack.c.l.b16 %v235
      %v264 = vunpack.c.l.b16 %v236
      %v265 = vunpack.c.l.b16 %v237
      %v266 = vunpack.c.l.b16 %v238
      %v267 = vunpack.c.l.b16 %v239
      %v268 = vunpack.c.l.b16 %v240
      %v269 = vpack.c.b16 %v262, %v261
      %v270 = vpack.c.b16 %v264, %v263
      %v271 = vpack.c.b16 %v266, %v265
      %v272 = vpack.c.b16 %v268, %v267
      %vm277 = vcmask 523264
      %v279 = vsel %vm277, %v252, 0
      %281 = vmatprep.subr.bf16.mxu0 0
      %282 = vmatpush1.bf16.msra.mxu0 %v269
      %283 = vmatprep.subr.bf16.mxu0 0
      %284 = vmatpush1.bf16.msra.mxu0 %v270
      %285 = vmatprep.subr.bf16.mxu0 0
      %286 = vmatpush1.bf16.msra.mxu0 %v271
      %287 = vmatprep.subr.bf16.mxu0 0
      %288 = vmatpush1.bf16.msra.mxu0 %v272
      %289 = vmatprep.subr.bf16.mxu0 0
      %290 = vmatpush1.bf16.msra.mxu0 0
      %291 = vmatprep.subr.bf16.mxu0 0
      %292 = vmatpush1.bf16.msra.mxu0 0
      %293 = vmatprep.subr.bf16.mxu0 0
      %294 = vmatpush1.bf16.msra.mxu0 0
      %295 = vmatprep.subr.bf16.mxu0 0
      %296 = vmatpush1.bf16.msra.mxu0 0
      %297 = vmatprep.subr.bf16.mxu0 0
      %298 = vmatpush1.bf16.msra.mxu0 0
      %299 = vmatprep.subr.bf16.mxu0 0
      %300 = vmatpush1.bf16.msra.mxu0 0
      %301 = vmatprep.subr.bf16.mxu0 0
      %302 = vmatpush1.bf16.msra.mxu0 0
      %303 = vmatprep.subr.bf16.mxu0 0
      %304 = vmatpush1.bf16.msra.mxu0 0
      %305 = vmatprep.subr.bf16.mxu0 0
      %306 = vmatpush1.bf16.msra.mxu0 0
      %307 = vmatprep.subr.bf16.mxu0 0
      %308 = vmatpush1.bf16.msra.mxu0 0
      %309 = vmatprep.subr.bf16.mxu0 0
      %310 = vmatpush1.bf16.msra.mxu0 0
      %311 = vmatprep.subr.bf16.mxu0 0
      %312 = vmatpush1.bf16.msra.mxu0 0
      %313 = vmatprep.mubr.bf16.mxu0 0
      %314 = vmatmul.mubr.bf16.gmra.mrb[0].mxu0 %v279
      %v315 = vpop.f32.mrb[0].mxu0
      %v316 = vadd.f32 %v246, %v315
      %v317 = vpop.f32.mrb[0].mxu0
      %v318 = vpop.f32.mrb[0].mxu0
      %v319 = vadd.f32 %v246, %v318
      %v320 = vpop.f32.mrb[0].mxu0
      %321 = vdwg.mxu0
      %v322 = vmax.f32 %v316, 0.0
      %v323 = vmax.f32 %v319, 0.0
      %v324 = vpack.c.bf16 %v323, %v322
      %v326 = vunpack.c.l.b16 %v324
      %v327 = vunpack.c.h.b16 %v324
      %v328 = vpack.c.b16 %v326, %v326
      %v329 = vpack.c.b16 %v327, %v327
      %332 = vst [vmem:[%s228] sm:$0xf] %v328
      %333 = vst [vmem:[%s228 + $0x4] sm:$0xf] %v329
      %s334 = smul.u32 2, %s19
      %p335 = scmp.lt.s32.totalorder %s18, 1
      %s336 = scalar_select %p335, %s18, 1
      %p337 = scmp.lt.s32.totalorder %s334, 1
      %s338 = scalar_select %p337, %s334, 1
      %s339 = smul.addr %s336, 2
      %s340 = sadd.s32 %s338, %s339
      %s341 = smul.addr %s340, 4
      %s342 = scalar_lea.vmem %s3, %s341
      // Predicated region
      $region33: #{pointnet_forward.31} parent=31 // pred_check
        %p343 = pneg %p121
      $region34: #{pointnet_forward.31} parent=31 // pred_check_branch
        %345 = sbr.rel (%p343) target = $region36
      $region35: #{pointnet_forward.31} parent=31 // pred_region
        %s346 = smul.u32 2, %s19
      $region36: #{pointnet_forward.31} parent=31 // pred_fallthru
        _
    $region32: #{pointnet_forward.31} parent=5 // pred_fallthru
      _
    %p347 = scmp.le.s32.totalorder 2, %s9
    // Predicated region
    $region37: #{pointnet_forward.31} parent=5 // pred_check
      %p348 = pneg %p347
    $region38: #{pointnet_forward.31} parent=5 // pred_check_branch
      %350 = sbr.rel (%p348) target = $region40
    $region39: #{pointnet_forward.31} parent=5 // pred_region
      %s351 = ssub.s32 %s9, 2
      // Predicated region
      $region41: #{pointnet_forward.31} parent=39 // pred_check
        %p352 = pneg %p127
      $region42: #{pointnet_forward.31} parent=39 // pred_check_branch
        %354 = sbr.rel (%p352) target = $region44
      $region43: #{pointnet_forward.31} parent=39 // pred_region
        %s355 = smul.u32 2, %s21
        %p356 = scmp.lt.s32.totalorder %s20, 1
        %s357 = scalar_select %p356, %s20, 1
        %p358 = scmp.lt.s32.totalorder %s355, 1
        %s359 = scalar_select %p358, %s355, 1
        %s360 = smul.addr %s357, 2
        %s361 = sadd.s32 %s359, %s360
        %s362 = smul.addr %s361, 4
        %s363 = scalar_lea.vmem %s3, %s362
      $region44: #{pointnet_forward.31} parent=39 // pred_fallthru
        _
    $region40: #{pointnet_forward.31} parent=5 // pred_fallthru
      _
  $region6: #{pointnet_forward.31} parent=0 // loop_footer
    %s13 = sadd.s32 1, %s9
  $region7: #{pointnet_forward.31} parent=0 // loop_footer_branch
    %8 = sbr.rel target = $region3
  $region8: #{pointnet_forward.31} parent=0 // loop_exit
    _

// kernel: pointnet_forward.35
$region0: #{pointnet_forward.35}
  #allocation0 [shape = 'u32[]', space=smem, size = 0x4, offset = 0x4, fixed_abs, tag = 'smem constant byte address 0x4 - core index']
  #allocation1 [shape = 'u32[144,128]{1,0:T(1,128)}', space=vmem, size = 0x12000, scoped, tag = 'internal scratch']
  %s0 = inlined_call_operand.vmem [shape: f32[2,256], index: 0, kind: input, shape index: {}]
  %s1 = inlined_call_operand.vmem [shape: f32[256,10], index: 1, kind: input, shape index: {}]
  %s2 = inlined_call_operand.vmem [shape: f32[1,10], index: 2, kind: input, shape index: {}]
  %s3 = inlined_call_operand.hbm [shape: f32[2,10], index: 3, kind: output, shape index: {}]
  %s4 = sld [smem:[#allocation0]]
  $region22: #{pointnet_forward.35} parent=0
    _
  %s6 = ssub.s32 1, %s4
  %s7 = scalar_select 0, %s6, %s4
  $region1: #{pointnet_forward.35} parent=0
    #allocation2 [shape = 'u8[1024]{0}', space=vmem, size = 0x400, scoped, tag = 'output window, operand 0, single buffered']
    #allocation3 [shape = 's32[1]{0}', space=sflag, size = 0x4, scoped, tag = 'scoped memory for pointnet_forward.35']
    %8 = vsyncpa [#allocation3], 0
    // Predicated region
    $region2: #{pointnet_forward.35} parent=1 // pred_check
      _
    $region3: #{pointnet_forward.35} parent=1 // pred_check_branch
      %10 = sbr.rel (0) target = $region5
    $region4: #{pointnet_forward.35} parent=1 // pred_region
      _
    $region5: #{pointnet_forward.35} parent=1 // pred_fallthru
      _
    // Predicated region
    $region6: #{pointnet_forward.35} parent=1 // pred_check
      _
    $region7: #{pointnet_forward.35} parent=1 // pred_check_branch
      %12 = sbr.rel (0) target = $region9
    $region8: #{pointnet_forward.35} parent=1 // pred_region
      _
    $region9: #{pointnet_forward.35} parent=1 // pred_fallthru
      _
    // Predicated region
    $region10: #{pointnet_forward.35} parent=1 // pred_check
      _
    $region11: #{pointnet_forward.35} parent=1 // pred_check_branch
      %14 = sbr.rel (0) target = $region13
    $region12: #{pointnet_forward.35} parent=1 // pred_region
      _
    $region13: #{pointnet_forward.35} parent=1 // pred_fallthru
      _
    %v15 = vld [vmem:[%s0] sm:$0xf]
    %v16 = vld [vmem:[%s1] sm:$0xff]
    %v17 = vld [vmem:[%s1 + $0x8] sm:$0xff]
    %v18 = vld [vmem:[%s1 + $0x10] sm:$0xff]
    %v19 = vld [vmem:[%s1 + $0x18] sm:$0xff]
    %v20 = vld [vmem:[%s1 + $0x20] sm:$0xff]
    %v21 = vld [vmem:[%s1 + $0x28] sm:$0xff]
    %v22 = vld [vmem:[%s1 + $0x30] sm:$0xff]
    %v23 = vld [vmem:[%s1 + $0x38] sm:$0xff]
    %v24 = vld [vmem:[%s1 + $0x40] sm:$0xff]
    %v25 = vld [vmem:[%s1 + $0x48] sm:$0xff]
    %v26 = vld [vmem:[%s1 + $0x50] sm:$0xff]
    %v27 = vld [vmem:[%s1 + $0x58] sm:$0xff]
    %v28 = vld [vmem:[%s1 + $0x60] sm:$0xff]
    %v29 = vld [vmem:[%s1 + $0x68] sm:$0xff]
    %v30 = vld [vmem:[%s1 + $0x70] sm:$0xff]
    %v31 = vld [vmem:[%s1 + $0x78] sm:$0xff]
    %v32 = vld [vmem:[%s1 + $0x80] sm:$0xff]
    %v33 = vld [vmem:[%s1 + $0x88] sm:$0xff]
    %v34 = vld [vmem:[%s1 + $0x90] sm:$0xff]
    %v35 = vld [vmem:[%s1 + $0x98] sm:$0xff]
    %v36 = vld [vmem:[%s1 + $0xa0] sm:$0xff]
    %v37 = vld [vmem:[%s1 + $0xa8] sm:$0xff]
    %v38 = vld [vmem:[%s1 + $0xb0] sm:$0xff]
    %v39 = vld [vmem:[%s1 + $0xb8] sm:$0xff]
    %v40 = vld [vmem:[%s1 + $0xc0] sm:$0xff]
    %v41 = vld [vmem:[%s1 + $0xc8] sm:$0xff]
    %v42 = vld [vmem:[%s1 + $0xd0] sm:$0xff]
    %v43 = vld [vmem:[%s1 + $0xd8] sm:$0xff]
    %v44 = vld [vmem:[%s1 + $0xe0] sm:$0xff]
    %v45 = vld [vmem:[%s1 + $0xe8] sm:$0xff]
    %v46 = vld [vmem:[%s1 + $0xf0] sm:$0xff]
    %v47 = vld [vmem:[%s1 + $0xf8] sm:$0xff]
    %v48 = vld [vmem:[%s2] sm:$0x1]
    %v50 = vlaneseq
    %v51 = vshrl.u32 %v50, 7
    %v52 = vsub.s32 0, %v51
    %v53 = vrot.slane %v48, %v52
    %v57 = vunpack.c.l.s4 1983009808
    %v58 = vunpack.c.0.s8 %v57
    %v59 = vlaneseq
    %v60 = vshrl.u32 %v59, 7
    %v61 = vsub.s32 %v58, %v60
    %v62 = vrot.slane %v15, %v61
    %v63 = vcombine.high %v62, %v62
    %66 = vmatprep.subr.mxu0 0.0
    %67 = vmatpush1.msra.mxu0 %v16
    %68 = vmatprep.subr.mxu0 0.0
    %69 = vmatpush1.msra.mxu0 %v17
    %70 = vmatprep.subr.mxu0 0.0
    %71 = vmatpush1.msra.mxu0 %v18
    %72 = vmatprep.subr.mxu0 0.0
    %73 = vmatpush1.msra.mxu0 %v19
    %74 = vmatprep.subr.mxu0 0.0
    %75 = vmatpush1.msra.mxu0 %v20
    %76 = vmatprep.subr.mxu0 0.0
    %77 = vmatpush1.msra.mxu0 %v21
    %78 = vmatprep.subr.mxu0 0.0
    %79 = vmatpush1.msra.mxu0 %v22
    %80 = vmatprep.subr.mxu0 0.0
    %81 = vmatpush1.msra.mxu0 %v23
    %82 = vmatprep.subr.mxu0 0.0
    %83 = vmatpush1.msra.mxu0 %v24
    %84 = vmatprep.subr.mxu0 0.0
    %85 = vmatpush1.msra.mxu0 %v25
    %86 = vmatprep.subr.mxu0 0.0
    %87 = vmatpush1.msra.mxu0 %v26
    %88 = vmatprep.subr.mxu0 0.0
    %89 = vmatpush1.msra.mxu0 %v27
    %90 = vmatprep.subr.mxu0 0.0
    %91 = vmatpush1.msra.mxu0 %v28
    %92 = vmatprep.subr.mxu0 0.0
    %93 = vmatpush1.msra.mxu0 %v29
    %94 = vmatprep.subr.mxu0 0.0
    %95 = vmatpush1.msra.mxu0 %v30
    %96 = vmatprep.subr.mxu0 0.0
    %97 = vmatpush1.msra.mxu0 %v31
    %98 = vmatprep.subr.mxu0 0.0
    %99 = vmatpush1.msra.mxu0 %v32
    %100 = vmatprep.subr.mxu0 0.0
    %101 = vmatpush1.msra.mxu0 %v33
    %102 = vmatprep.subr.mxu0 0.0
    %103 = vmatpush1.msra.mxu0 %v34
    %104 = vmatprep.subr.mxu0 0.0
    %105 = vmatpush1.msra.mxu0 %v35
    %106 = vmatprep.subr.mxu0 0.0
    %107 = vmatpush1.msra.mxu0 %v36
    %108 = vmatprep.subr.mxu0 0.0
    %109 = vmatpush1.msra.mxu0 %v37
    %110 = vmatprep.subr.mxu0 0.0
    %111 = vmatpush1.msra.mxu0 %v38
    %112 = vmatprep.subr.mxu0 0.0
    %113 = vmatpush1.msra.mxu0 %v39
    %114 = vmatprep.subr.mxu0 0.0
    %115 = vmatpush1.msra.mxu0 %v40
    %116 = vmatprep.subr.mxu0 0.0
    %117 = vmatpush1.msra.mxu0 %v41
    %118 = vmatprep.subr.mxu0 0.0
    %119 = vmatpush1.msra.mxu0 %v42
    %120 = vmatprep.subr.mxu0 0.0
    %121 = vmatpush1.msra.mxu0 %v43
    %122 = vmatprep.subr.mxu0 0.0
    %123 = vmatpush1.msra.mxu0 %v44
    %124 = vmatprep.subr.mxu0 0.0
    %125 = vmatpush1.msra.mxu0 %v45
    %126 = vmatprep.subr.mxu0 0.0
    %127 = vmatpush1.msra.mxu0 %v46
    %128 = vmatprep.subr.mxu0 0.0
    %129 = vmatpush1.msra.mxu0 %v47
    %130 = vmatprep.mubr.f32.mxu0 %v63
    %131 = vmatmul.mubr.f32.gmra.mrb[0].mxu0 %v62
    %v132 = vpop.f32.mrb[0].mxu0
    %v133 = vadd.f32 %v53, %v132
    %v134 = vpop.f32.mrb[0].mxu0
    %135 = vdwg.mxu0
    %vm136 = vcmask 74752
    %v137 = vsel %vm136, %v133, -inf
    %138 = vmax.xlane.f32.xlu0 %v137
    %v139 = vpop.xlane.xlu0 %138
    %v140 = vsub.f32 %v133, %v139
    %v141 = vmul.f32 %v140, 1.442695
    %v142 = vpow.pop %v141
    %v143 = vsel %vm136, %v142, 0.0
    %144 = vadd.xlane.f32.xlu0 %v143
    %v145 = vpop.xlane.xlu0 %144
    %v146 = vlog2.pop %v145
    %v147 = vmul.f32 %v146, 0.6931472
    %v148 = vsub.f32 %v140, %v147
    %149 = vst.msk [vmem:[#allocation2] sm:$0x3] %vm136, %v148
    // Predicated region
    $region14: #{pointnet_forward.35} parent=1 // pred_check
      _
    $region15: #{pointnet_forward.35} parent=1 // pred_check_branch
      %151 = sbr.rel (0) target = $region17
    $region16: #{pointnet_forward.35} parent=1 // pred_region
      %s153 = ssub.s32 32, 32
      %154 = vsyncadd [#allocation3], %s153
      %s156 = sshll.u32 [#allocation2], 4
      %s157 = int_to_ptr.vmem [resolvable:$true] %s156
      %159 = dma.vmem_to_hbm [thread:$0]  %s157, 32, %s3, [#allocation3]
    $region17: #{pointnet_forward.35} parent=1 // pred_fallthru
      _
    // Predicated region
    $region18: #{pointnet_forward.35} parent=1 // pred_check
      _
    $region19: #{pointnet_forward.35} parent=1 // pred_check_branch
      %161 = sbr.rel (0) target = $region21
    $region20: #{pointnet_forward.35} parent=1 // pred_region
      %162 = dma.done [#allocation3], 32
    $region21: #{pointnet_forward.35} parent=1 // pred_fallthru
      _
    %163 = vsyncpa [#allocation3], 1

</llo_original>
